<compile_context>
chip_gen: v7x
topology: tpu7x:2x2x1
jax: 0.10.0
libtpu: 0.0.40
codegen_flags: <defaults>
</compile_context>

<pallas_src>
import functools
import math

import jax
import jax.numpy as jnp
import numpy as np
from jax.experimental import pallas as pl
from jax.experimental.pallas import tpu as pltpu

SQRT_HALF = math.sqrt(0.5)


def _converter_kernel(num_layers, kernel_size, pad, seq_len, hidden,
                      x_ref, fc1w_ref, fc1b_ref, convw_ref, convb_ref,
                      fc2w_ref, fc2b_ref, o_ref):
    """fc1+relu -> L x (per-tap conv dots + GLU + residual) -> fc2+sigmoid."""
    M, _ = x_ref.shape                 # M = block_b * T fused matmul rows
    C = hidden
    T = seq_len

    # fc1 + ReLU  (bf16 MXU operands, f32 accumulate; bias/relu in f32)
    h = jnp.dot(x_ref[...].astype(jnp.bfloat16), fc1w_ref[...],
                preferred_element_type=jnp.float32)
    h = jnp.maximum(h + fc1b_ref[...], 0.0)                      # (M, C) f32

    # Row position inside its batch segment; per-shift validity masks hoisted
    # out of the layer loop (they also zero the circular wrap-around rows that
    # pltpu.roll produces, giving per-batch "same" padding).
    t_idx = jax.lax.broadcasted_iota(jnp.int32, (M, 1), 0) % T
    valid = {s: jnp.logical_and(t_idx + s >= 0, t_idx + s < T)
             for s in range(-pad, pad + 1) if s != 0}

    for l in range(num_layers):
        residual = h
        # TODO(synk): F.dropout between conv layers is identity in eval mode; skipped.
        h_bf = h.astype(jnp.bfloat16)                            # one cast per layer
        acc = convb_ref[l]                                       # (1, 2C) f32 bias

        for k in range(kernel_size):
            s = k - pad
            # Per-tap dot on the unshifted rows, then roll the 128-lane f32
            # product by -s along the row axis (XLU) and mask rows whose
            # shifted position falls outside the batch segment.
            p = jnp.dot(h_bf, convw_ref[l, k],
                        preferred_element_type=jnp.float32)       # (M, 2C) f32
            if s != 0:
                p = jnp.where(valid[s],
                              pltpu.roll(p, shift=(-s) % M, axis=0), 0.0)
            acc = acc + p

        # GLU: sigmoid on the whole 128-lane tile (EUP slot, extra lanes free),
        # one lane roll aligns sigmoid(b) under a, single slice to C lanes.
        sig = jax.nn.sigmoid(acc)
        glu = acc * pltpu.roll(sig, shift=C, axis=1)
        h = (glu[:, :C] + residual) * SQRT_HALF                  # (M, C) f32

    # fc2 + sigmoid (fc2 weight/bias zero-padded to 128 lanes host-side -> the
    # store is lane-dense; padded lanes hold sigmoid(0)=0.5, sliced off outside).
    out = jnp.dot(h.astype(jnp.bfloat16), fc2w_ref[...],
                  preferred_element_type=jnp.float32)
    o_ref[...] = jax.nn.sigmoid(out + fc2b_ref[...])


def converter_pallas(x, fc1_w, fc1_b, conv_w, conv_b, fc2_w, fc2_b, *, block_b=None):
    B, T, in_dim = x.shape
    L, K, C, C2 = conv_w.shape
    out_dim = fc2_w.shape[1]
    pad = (K - 1) // 2
    out_pad = ((out_dim + 127) // 128) * 128        # lane-dense output width

    if block_b is None:
        block_b = B   # fuse all rows at small B; use block_b=1 / T-tiling for big shapes (v7x 2 TCs)
    assert B % block_b == 0
    grid = (B // block_b,)
    m_blk = block_b * T

    # Host-side layout / dtype preprocessing (free on HBM, outside the hot path).
    x2 = x.reshape(B * T, in_dim)
    fc1_w_bf = fc1_w.astype(jnp.bfloat16)
    conv_w_bf = conv_w.astype(jnp.bfloat16)                       # (L, K, C, 2C)
    fc2_w_p = jnp.zeros((C, out_pad), jnp.bfloat16).at[:, :out_dim].set(
        fc2_w.astype(jnp.bfloat16))
    fc2_b_p = jnp.zeros((1, out_pad), jnp.float32).at[:, :out_dim].set(fc2_b)

    kernel = functools.partial(_converter_kernel, L, K, pad, T, C)

    out = pl.pallas_call(
        kernel,
        out_shape=jax.ShapeDtypeStruct((B * T, out_pad), jnp.float32),
        grid=grid,
        in_specs=[
            pl.BlockSpec((m_blk, in_dim), lambda i: (i, 0)),       # x rows for this step
            pl.BlockSpec((in_dim, C), lambda i: (0, 0)),           # fc1 weight (bf16)
            pl.BlockSpec((1, C), lambda i: (0, 0)),                # fc1 bias (f32)
            pl.BlockSpec((L, K, C, C2), lambda i: (0, 0, 0, 0)),   # conv weights (bf16)
            pl.BlockSpec((L, 1, C2), lambda i: (0, 0, 0)),         # conv biases (f32)
            pl.BlockSpec((C, out_pad), lambda i: (0, 0)),          # fc2 weight, lane-padded (bf16)
            pl.BlockSpec((1, out_pad), lambda i: (0, 0)),          # fc2 bias, lane-padded (f32)
        ],
        out_specs=pl.BlockSpec((m_blk, out_pad), lambda i: (i, 0)),
        compiler_params=pltpu.CompilerParams(dimension_semantics=("parallel",)),
    )(x2, fc1_w_bf, fc1_b, conv_w_bf, conv_b, fc2_w_p, fc2_b_p)

    return out.reshape(B, T, out_pad)[..., :out_dim]


def init_params(key, in_dim, out_dim, convolutions, dropout):
    """Deterministic init matching the PyTorch module's __init__ statistics."""
    C, K, _ = convolutions[0]
    L = len(convolutions)
    k_fc1, k_conv, k_fc2 = jax.random.split(key, 3)

    # Linear helper in deepvoice3 uses std = sqrt((1 - dropout)/in_features) with dropout=0 here.
    fc1_w = math.sqrt(1.0 / in_dim) * jax.random.normal(k_fc1, (in_dim, C), jnp.float32)
    fc1_b = jnp.zeros((1, C), jnp.float32)

    std_conv = math.sqrt(4.0 * (1.0 - dropout) / (K * C))
    conv_w = std_conv * jax.random.normal(k_conv, (L, K, C, 2 * C), jnp.float32)
    conv_b = jnp.zeros((L, 1, 2 * C), jnp.float32)

    fc2_w = math.sqrt(1.0 / C) * jax.random.normal(k_fc2, (C, out_dim), jnp.float32)
    fc2_b = jnp.zeros((1, out_dim), jnp.float32)
    return fc1_w, fc1_b, conv_w, conv_b, fc2_w, fc2_b


def converter_ref(x, fc1_w, fc1_b, conv_w, conv_b, fc2_w, fc2_b):
    """Pure-JAX reference of the PyTorch forward (eval mode), f32 HIGHEST precision."""
    hp = jax.lax.Precision.HIGHEST
    L, K, C, C2 = conv_w.shape
    pad = (K - 1) // 2
    B, T, _ = x.shape

    h = jnp.maximum(jnp.dot(x, fc1_w, precision=hp) + fc1_b[0], 0.0)   # (B,T,C)
    for l in range(L):
        residual = h
        hpad = jnp.pad(h, ((0, 0), (pad, pad), (0, 0)))
        acc = jnp.zeros((B, T, C2), jnp.float32) + conv_b[l, 0]
        for k in range(K):
            acc = acc + jnp.einsum('btc,co->bto', hpad[:, k:k + T, :], conv_w[l, k],
                                   precision=hp)
        a, b = acc[..., :C], acc[..., C:]
        h = a * jax.nn.sigmoid(b)
        h = (h + residual) * SQRT_HALF
    return jax.nn.sigmoid(jnp.dot(h, fc2_w, precision=hp) + fc2_b[0])


if __name__ == "__main__":
    B, T = 2, 16
    in_dim, out_dim = 32, 32
    convolutions = ((64, 5, 1),) * 4     # (out_channels, kernel_size, dilation=1) -> ConvTBC path
    dropout = 0.1

    key = jax.random.PRNGKey(0)
    k_x, k_p = jax.random.split(key)
    x = jax.random.normal(k_x, (B, T, in_dim), jnp.float32)
    params = init_params(k_p, in_dim, out_dim, convolutions, dropout)

    out = converter_pallas(x, *params)
    out = jax.block_until_ready(out)

    ref = converter_ref(x, *params)
    assert out.shape == (B, T, out_dim)
    # bf16 MXU operands (f32 accumulation) vs. the f32 HIGHEST-precision reference.
    np.testing.assert_allclose(np.asarray(out), np.asarray(ref), rtol=2e-2, atol=2e-2)
    print("KERNEL_OK")
</pallas_src>

<mosaic_0001>
module attributes {stable_mosaic.version = 11 : i64} {
  func.func @_converter_kernel(%arg0: i32, %arg1: memref<32x32xf32, #tpu.memory_space<vmem>>, %arg2: memref<32x64xbf16, #tpu.memory_space<vmem>>, %arg3: memref<1x64xf32, #tpu.memory_space<vmem>>, %arg4: memref<4x5x64x128xbf16, #tpu.memory_space<vmem>>, %arg5: memref<4x1x128xf32, #tpu.memory_space<vmem>>, %arg6: memref<64x128xbf16, #tpu.memory_space<vmem>>, %arg7: memref<1x128xf32, #tpu.memory_space<vmem>>, %arg8: memref<32x128xf32, #tpu.memory_space<vmem>>) attributes {dimension_semantics = [#tpu.dimension_semantics<parallel>], iteration_bounds = array<i64: 1>, scalar_prefetch = 0 : i64, scratch_operands = 0 : i64, tpu.core_type = #tpu.core_type<tc>, window_params = [{transform_indices = @transform_0, window_bounds = array<i64: 32, 32>}, {pipeline_mode = #tpu.pipeline_mode<synchronous>, transform_indices = @transform_1, window_bounds = array<i64: 32, 64>}, {pipeline_mode = #tpu.pipeline_mode<synchronous>, transform_indices = @transform_2, window_bounds = array<i64: 1, 64>}, {pipeline_mode = #tpu.pipeline_mode<synchronous>, transform_indices = @transform_3, window_bounds = array<i64: 4, 5, 64, 128>}, {pipeline_mode = #tpu.pipeline_mode<synchronous>, transform_indices = @transform_4, window_bounds = array<i64: 4, 1, 128>}, {pipeline_mode = #tpu.pipeline_mode<synchronous>, transform_indices = @transform_5, window_bounds = array<i64: 64, 128>}, {pipeline_mode = #tpu.pipeline_mode<synchronous>, transform_indices = @transform_6, window_bounds = array<i64: 1, 128>}, {transform_indices = @transform_7, window_bounds = array<i64: 32, 128>}]} {
    %c0 = arith.constant 0 : index
    %c0_0 = arith.constant 0 : index
    %0 = vector.load %arg1[%c0, %c0_0] : memref<32x32xf32, #tpu.memory_space<vmem>>, vector<32x32xf32>
    %1 = arith.truncf %0 : vector<32x32xf32> to vector<32x32xbf16>
    %c0_1 = arith.constant 0 : index
    %c0_2 = arith.constant 0 : index
    %2 = vector.load %arg2[%c0_1, %c0_2] : memref<32x64xbf16, #tpu.memory_space<vmem>>, vector<32x64xbf16>
    %cst = arith.constant dense<0.000000e+00> : vector<32x64xf32>
    %3 = tpu.matmul %1, %2, %cst {dimension_numbers = #tpu.dot_dimension_numbers<[1], [0], [0], [1], [0, 0, 1, 1], [], []>} : vector<32x32xbf16>, vector<32x64xbf16>, vector<32x64xf32> -> vector<32x64xf32>
    %c0_3 = arith.constant 0 : index
    %c0_4 = arith.constant 0 : index
    %4 = vector.load %arg3[%c0_3, %c0_4] : memref<1x64xf32, #tpu.memory_space<vmem>>, vector<1x64xf32>
    %5 = vector.broadcast %4 : vector<1x64xf32> to vector<32x64xf32>
    %6 = arith.addf %3, %5 : vector<32x64xf32>
    %cst_5 = arith.constant 0.000000e+00 : f32
    %7 = vector.broadcast %cst_5 : f32 to vector<32x64xf32>
    %8 = arith.maximumf %6, %7 : vector<32x64xf32>
    %9 = tpu.iota {dimensions = array<i32: 0>} : vector<32x1xi32>
    %c16_i32 = arith.constant 16 : i32
    %c0_i32 = arith.constant 0 : i32
    %10 = arith.cmpi eq, %c16_i32, %c0_i32 : i32
    %c1_i32 = arith.constant 1 : i32
    %11 = arith.select %10, %c1_i32, %c16_i32 : i32
    %12 = vector.broadcast %11 : i32 to vector<32x1xi32>
    %13 = arith.remsi %9, %12 : vector<32x1xi32>
    %c0_i32_6 = arith.constant 0 : i32
    %14 = vector.broadcast %c0_i32_6 : i32 to vector<32x1xi32>
    %15 = arith.cmpi ne, %13, %14 : vector<32x1xi32>
    %c0_i32_7 = arith.constant 0 : i32
    %16 = vector.broadcast %c0_i32_7 : i32 to vector<32x1xi32>
    %17 = arith.cmpi slt, %13, %16 : vector<32x1xi32>
    %c0_i32_8 = arith.constant 0 : i32
    %18 = arith.cmpi slt, %11, %c0_i32_8 : i32
    %19 = vector.broadcast %18 : i1 to vector<32x1xi1>
    %20 = vector.broadcast %19 : vector<32x1xi1> to vector<32x1xi1>
    %21 = arith.xori %17, %20 : vector<32x1xi1>
    %22 = arith.andi %21, %15 : vector<32x1xi1>
    %23 = vector.broadcast %11 : i32 to vector<32x1xi32>
    %24 = arith.addi %13, %23 : vector<32x1xi32>
    %25 = arith.select %22, %24, %13 : vector<32x1xi1>, vector<32x1xi32>
    %c-2_i32 = arith.constant -2 : i32
    %26 = vector.broadcast %c-2_i32 : i32 to vector<32x1xi32>
    %27 = arith.addi %25, %26 : vector<32x1xi32>
    %c0_i32_9 = arith.constant 0 : i32
    %28 = vector.broadcast %c0_i32_9 : i32 to vector<32x1xi32>
    %29 = arith.cmpi sge, %27, %28 : vector<32x1xi32>
    %c-2_i32_10 = arith.constant -2 : i32
    %30 = vector.broadcast %c-2_i32_10 : i32 to vector<32x1xi32>
    %31 = arith.addi %25, %30 : vector<32x1xi32>
    %c16_i32_11 = arith.constant 16 : i32
    %32 = vector.broadcast %c16_i32_11 : i32 to vector<32x1xi32>
    %33 = arith.cmpi slt, %31, %32 : vector<32x1xi32>
    %34 = arith.andi %29, %33 : vector<32x1xi1>
    %c-1_i32 = arith.constant -1 : i32
    %35 = vector.broadcast %c-1_i32 : i32 to vector<32x1xi32>
    %36 = arith.addi %25, %35 : vector<32x1xi32>
    %c0_i32_12 = arith.constant 0 : i32
    %37 = vector.broadcast %c0_i32_12 : i32 to vector<32x1xi32>
    %38 = arith.cmpi sge, %36, %37 : vector<32x1xi32>
    %c-1_i32_13 = arith.constant -1 : i32
    %39 = vector.broadcast %c-1_i32_13 : i32 to vector<32x1xi32>
    %40 = arith.addi %25, %39 : vector<32x1xi32>
    %c16_i32_14 = arith.constant 16 : i32
    %41 = vector.broadcast %c16_i32_14 : i32 to vector<32x1xi32>
    %42 = arith.cmpi slt, %40, %41 : vector<32x1xi32>
    %43 = arith.andi %38, %42 : vector<32x1xi1>
    %c1_i32_15 = arith.constant 1 : i32
    %44 = vector.broadcast %c1_i32_15 : i32 to vector<32x1xi32>
    %45 = arith.addi %25, %44 : vector<32x1xi32>
    %c0_i32_16 = arith.constant 0 : i32
    %46 = vector.broadcast %c0_i32_16 : i32 to vector<32x1xi32>
    %47 = arith.cmpi sge, %45, %46 : vector<32x1xi32>
    %c1_i32_17 = arith.constant 1 : i32
    %48 = vector.broadcast %c1_i32_17 : i32 to vector<32x1xi32>
    %49 = arith.addi %25, %48 : vector<32x1xi32>
    %c16_i32_18 = arith.constant 16 : i32
    %50 = vector.broadcast %c16_i32_18 : i32 to vector<32x1xi32>
    %51 = arith.cmpi slt, %49, %50 : vector<32x1xi32>
    %52 = arith.andi %47, %51 : vector<32x1xi1>
    %c2_i32 = arith.constant 2 : i32
    %53 = vector.broadcast %c2_i32 : i32 to vector<32x1xi32>
    %54 = arith.addi %25, %53 : vector<32x1xi32>
    %c0_i32_19 = arith.constant 0 : i32
    %55 = vector.broadcast %c0_i32_19 : i32 to vector<32x1xi32>
    %56 = arith.cmpi sge, %54, %55 : vector<32x1xi32>
    %c2_i32_20 = arith.constant 2 : i32
    %57 = vector.broadcast %c2_i32_20 : i32 to vector<32x1xi32>
    %58 = arith.addi %25, %57 : vector<32x1xi32>
    %c16_i32_21 = arith.constant 16 : i32
    %59 = vector.broadcast %c16_i32_21 : i32 to vector<32x1xi32>
    %60 = arith.cmpi slt, %58, %59 : vector<32x1xi32>
    %61 = arith.andi %56, %60 : vector<32x1xi1>
    %62 = arith.truncf %8 : vector<32x64xf32> to vector<32x64xbf16>
    %c0_22 = arith.constant 0 : index
    %c0_23 = arith.constant 0 : index
    %c0_24 = arith.constant 0 : index
    %63 = vector.load %arg5[%c0_22, %c0_23, %c0_24] : memref<4x1x128xf32, #tpu.memory_space<vmem>>, vector<1x1x128xf32>
    %64 = vector.shape_cast %63 : vector<1x1x128xf32> to vector<1x128xf32>
    %c0_25 = arith.constant 0 : index
    %c0_26 = arith.constant 0 : index
    %c0_27 = arith.constant 0 : index
    %c0_28 = arith.constant 0 : index
    %65 = vector.load %arg4[%c0_25, %c0_26, %c0_27, %c0_28] : memref<4x5x64x128xbf16, #tpu.memory_space<vmem>>, vector<1x1x64x128xbf16>
    %66 = vector.shape_cast %65 : vector<1x1x64x128xbf16> to vector<64x128xbf16>
    %cst_29 = arith.constant dense<0.000000e+00> : vector<32x128xf32>
    %67 = tpu.matmul %62, %66, %cst_29 {dimension_numbers = #tpu.dot_dimension_numbers<[1], [0], [0], [1], [0, 0, 1, 1], [], []>} : vector<32x64xbf16>, vector<64x128xbf16>, vector<32x128xf32> -> vector<32x128xf32>
    %c2_i32_30 = arith.constant 2 : i32
    %68 = tpu.dynamic_rotate %67 by %c2_i32_30 dim 0 : vector<32x128xf32>, i32 -> vector<32x128xf32>
    %cst_31 = arith.constant 0.000000e+00 : f32
    %69 = vector.shape_cast %34 : vector<32x1xi1> to vector<32x1xi1>
    %70 = vector.broadcast %69 : vector<32x1xi1> to vector<32x128xi1>
    %71 = vector.broadcast %cst_31 : f32 to vector<32x128xf32>
    %72 = arith.select %70, %68, %71 : vector<32x128xi1>, vector<32x128xf32>
    %73 = vector.broadcast %64 : vector<1x128xf32> to vector<32x128xf32>
    %74 = arith.addf %73, %72 : vector<32x128xf32>
    %c0_32 = arith.constant 0 : index
    %c1 = arith.constant 1 : index
    %c0_33 = arith.constant 0 : index
    %c0_34 = arith.constant 0 : index
    %75 = vector.load %arg4[%c0_32, %c1, %c0_33, %c0_34] : memref<4x5x64x128xbf16, #tpu.memory_space<vmem>>, vector<1x1x64x128xbf16>
    %76 = vector.shape_cast %75 : vector<1x1x64x128xbf16> to vector<64x128xbf16>
    %cst_35 = arith.constant dense<0.000000e+00> : vector<32x128xf32>
    %77 = tpu.matmul %62, %76, %cst_35 {dimension_numbers = #tpu.dot_dimension_numbers<[1], [0], [0], [1], [0, 0, 1, 1], [], []>} : vector<32x64xbf16>, vector<64x128xbf16>, vector<32x128xf32> -> vector<32x128xf32>
    %c1_i32_36 = arith.constant 1 : i32
    %78 = tpu.dynamic_rotate %77 by %c1_i32_36 dim 0 : vector<32x128xf32>, i32 -> vector<32x128xf32>
    %cst_37 = arith.constant 0.000000e+00 : f32
    %79 = vector.shape_cast %43 : vector<32x1xi1> to vector<32x1xi1>
    %80 = vector.broadcast %79 : vector<32x1xi1> to vector<32x128xi1>
    %81 = vector.broadcast %cst_37 : f32 to vector<32x128xf32>
    %82 = arith.select %80, %78, %81 : vector<32x128xi1>, vector<32x128xf32>
    %83 = arith.addf %74, %82 : vector<32x128xf32>
    %c0_38 = arith.constant 0 : index
    %c2 = arith.constant 2 : index
    %c0_39 = arith.constant 0 : index
    %c0_40 = arith.constant 0 : index
    %84 = vector.load %arg4[%c0_38, %c2, %c0_39, %c0_40] : memref<4x5x64x128xbf16, #tpu.memory_space<vmem>>, vector<1x1x64x128xbf16>
    %85 = vector.shape_cast %84 : vector<1x1x64x128xbf16> to vector<64x128xbf16>
    %cst_41 = arith.constant dense<0.000000e+00> : vector<32x128xf32>
    %86 = tpu.matmul %62, %85, %cst_41 {dimension_numbers = #tpu.dot_dimension_numbers<[1], [0], [0], [1], [0, 0, 1, 1], [], []>} : vector<32x64xbf16>, vector<64x128xbf16>, vector<32x128xf32> -> vector<32x128xf32>
    %87 = arith.addf %83, %86 : vector<32x128xf32>
    %c0_42 = arith.constant 0 : index
    %c3 = arith.constant 3 : index
    %c0_43 = arith.constant 0 : index
    %c0_44 = arith.constant 0 : index
    %88 = vector.load %arg4[%c0_42, %c3, %c0_43, %c0_44] : memref<4x5x64x128xbf16, #tpu.memory_space<vmem>>, vector<1x1x64x128xbf16>
    %89 = vector.shape_cast %88 : vector<1x1x64x128xbf16> to vector<64x128xbf16>
    %cst_45 = arith.constant dense<0.000000e+00> : vector<32x128xf32>
    %90 = tpu.matmul %62, %89, %cst_45 {dimension_numbers = #tpu.dot_dimension_numbers<[1], [0], [0], [1], [0, 0, 1, 1], [], []>} : vector<32x64xbf16>, vector<64x128xbf16>, vector<32x128xf32> -> vector<32x128xf32>
    %c31_i32 = arith.constant 31 : i32
    %91 = tpu.dynamic_rotate %90 by %c31_i32 dim 0 : vector<32x128xf32>, i32 -> vector<32x128xf32>
    %cst_46 = arith.constant 0.000000e+00 : f32
    %92 = vector.shape_cast %52 : vector<32x1xi1> to vector<32x1xi1>
    %93 = vector.broadcast %92 : vector<32x1xi1> to vector<32x128xi1>
    %94 = vector.broadcast %cst_46 : f32 to vector<32x128xf32>
    %95 = arith.select %93, %91, %94 : vector<32x128xi1>, vector<32x128xf32>
    %96 = arith.addf %87, %95 : vector<32x128xf32>
    %c0_47 = arith.constant 0 : index
    %c4 = arith.constant 4 : index
    %c0_48 = arith.constant 0 : index
    %c0_49 = arith.constant 0 : index
    %97 = vector.load %arg4[%c0_47, %c4, %c0_48, %c0_49] : memref<4x5x64x128xbf16, #tpu.memory_space<vmem>>, vector<1x1x64x128xbf16>
    %98 = vector.shape_cast %97 : vector<1x1x64x128xbf16> to vector<64x128xbf16>
    %cst_50 = arith.constant dense<0.000000e+00> : vector<32x128xf32>
    %99 = tpu.matmul %62, %98, %cst_50 {dimension_numbers = #tpu.dot_dimension_numbers<[1], [0], [0], [1], [0, 0, 1, 1], [], []>} : vector<32x64xbf16>, vector<64x128xbf16>, vector<32x128xf32> -> vector<32x128xf32>
    %c30_i32 = arith.constant 30 : i32
    %100 = tpu.dynamic_rotate %99 by %c30_i32 dim 0 : vector<32x128xf32>, i32 -> vector<32x128xf32>
    %cst_51 = arith.constant 0.000000e+00 : f32
    %101 = vector.shape_cast %61 : vector<32x1xi1> to vector<32x1xi1>
    %102 = vector.broadcast %101 : vector<32x1xi1> to vector<32x128xi1>
    %103 = vector.broadcast %cst_51 : f32 to vector<32x128xf32>
    %104 = arith.select %102, %100, %103 : vector<32x128xi1>, vector<32x128xf32>
    %105 = arith.addf %96, %104 : vector<32x128xf32>
    %106 = arith.negf %105 : vector<32x128xf32>
    %107 = math.exp %106 : vector<32x128xf32>
    %cst_52 = arith.constant 1.000000e+00 : f32
    %108 = vector.broadcast %cst_52 : f32 to vector<32x128xf32>
    %109 = arith.addf %108, %107 : vector<32x128xf32>
    %110 = arith.divf %108, %109 : vector<32x128xf32>
    %c64_i32 = arith.constant 64 : i32
    %111 = tpu.dynamic_rotate %110 by %c64_i32 dim 1 : vector<32x128xf32>, i32 -> vector<32x128xf32>
    %112 = arith.mulf %105, %111 : vector<32x128xf32>
    %113 = vector.extract_strided_slice %112 {offsets = [0, 0], sizes = [32, 64], strides = [1, 1]} : vector<32x128xf32> to vector<32x64xf32>
    %114 = arith.addf %113, %8 : vector<32x64xf32>
    %cst_53 = arith.constant 0.707106769 : f32
    %115 = vector.broadcast %cst_53 : f32 to vector<32x64xf32>
    %116 = arith.mulf %114, %115 : vector<32x64xf32>
    %117 = arith.truncf %116 : vector<32x64xf32> to vector<32x64xbf16>
    %c1_54 = arith.constant 1 : index
    %c0_55 = arith.constant 0 : index
    %c0_56 = arith.constant 0 : index
    %118 = vector.load %arg5[%c1_54, %c0_55, %c0_56] : memref<4x1x128xf32, #tpu.memory_space<vmem>>, vector<1x1x128xf32>
    %119 = vector.shape_cast %118 : vector<1x1x128xf32> to vector<1x128xf32>
    %c1_57 = arith.constant 1 : index
    %c0_58 = arith.constant 0 : index
    %c0_59 = arith.constant 0 : index
    %c0_60 = arith.constant 0 : index
    %120 = vector.load %arg4[%c1_57, %c0_58, %c0_59, %c0_60] : memref<4x5x64x128xbf16, #tpu.memory_space<vmem>>, vector<1x1x64x128xbf16>
    %121 = vector.shape_cast %120 : vector<1x1x64x128xbf16> to vector<64x128xbf16>
    %cst_61 = arith.constant dense<0.000000e+00> : vector<32x128xf32>
    %122 = tpu.matmul %117, %121, %cst_61 {dimension_numbers = #tpu.dot_dimension_numbers<[1], [0], [0], [1], [0, 0, 1, 1], [], []>} : vector<32x64xbf16>, vector<64x128xbf16>, vector<32x128xf32> -> vector<32x128xf32>
    %c2_i32_62 = arith.constant 2 : i32
    %123 = tpu.dynamic_rotate %122 by %c2_i32_62 dim 0 : vector<32x128xf32>, i32 -> vector<32x128xf32>
    %cst_63 = arith.constant 0.000000e+00 : f32
    %124 = vector.shape_cast %34 : vector<32x1xi1> to vector<32x1xi1>
    %125 = vector.broadcast %124 : vector<32x1xi1> to vector<32x128xi1>
    %126 = vector.broadcast %cst_63 : f32 to vector<32x128xf32>
    %127 = arith.select %125, %123, %126 : vector<32x128xi1>, vector<32x128xf32>
    %128 = vector.broadcast %119 : vector<1x128xf32> to vector<32x128xf32>
    %129 = arith.addf %128, %127 : vector<32x128xf32>
    %c1_64 = arith.constant 1 : index
    %c1_65 = arith.constant 1 : index
    %c0_66 = arith.constant 0 : index
    %c0_67 = arith.constant 0 : index
    %130 = vector.load %arg4[%c1_64, %c1_65, %c0_66, %c0_67] : memref<4x5x64x128xbf16, #tpu.memory_space<vmem>>, vector<1x1x64x128xbf16>
    %131 = vector.shape_cast %130 : vector<1x1x64x128xbf16> to vector<64x128xbf16>
    %cst_68 = arith.constant dense<0.000000e+00> : vector<32x128xf32>
    %132 = tpu.matmul %117, %131, %cst_68 {dimension_numbers = #tpu.dot_dimension_numbers<[1], [0], [0], [1], [0, 0, 1, 1], [], []>} : vector<32x64xbf16>, vector<64x128xbf16>, vector<32x128xf32> -> vector<32x128xf32>
    %c1_i32_69 = arith.constant 1 : i32
    %133 = tpu.dynamic_rotate %132 by %c1_i32_69 dim 0 : vector<32x128xf32>, i32 -> vector<32x128xf32>
    %cst_70 = arith.constant 0.000000e+00 : f32
    %134 = vector.shape_cast %43 : vector<32x1xi1> to vector<32x1xi1>
    %135 = vector.broadcast %134 : vector<32x1xi1> to vector<32x128xi1>
    %136 = vector.broadcast %cst_70 : f32 to vector<32x128xf32>
    %137 = arith.select %135, %133, %136 : vector<32x128xi1>, vector<32x128xf32>
    %138 = arith.addf %129, %137 : vector<32x128xf32>
    %c1_71 = arith.constant 1 : index
    %c2_72 = arith.constant 2 : index
    %c0_73 = arith.constant 0 : index
    %c0_74 = arith.constant 0 : index
    %139 = vector.load %arg4[%c1_71, %c2_72, %c0_73, %c0_74] : memref<4x5x64x128xbf16, #tpu.memory_space<vmem>>, vector<1x1x64x128xbf16>
    %140 = vector.shape_cast %139 : vector<1x1x64x128xbf16> to vector<64x128xbf16>
    %cst_75 = arith.constant dense<0.000000e+00> : vector<32x128xf32>
    %141 = tpu.matmul %117, %140, %cst_75 {dimension_numbers = #tpu.dot_dimension_numbers<[1], [0], [0], [1], [0, 0, 1, 1], [], []>} : vector<32x64xbf16>, vector<64x128xbf16>, vector<32x128xf32> -> vector<32x128xf32>
    %142 = arith.addf %138, %141 : vector<32x128xf32>
    %c1_76 = arith.constant 1 : index
    %c3_77 = arith.constant 3 : index
    %c0_78 = arith.constant 0 : index
    %c0_79 = arith.constant 0 : index
    %143 = vector.load %arg4[%c1_76, %c3_77, %c0_78, %c0_79] : memref<4x5x64x128xbf16, #tpu.memory_space<vmem>>, vector<1x1x64x128xbf16>
    %144 = vector.shape_cast %143 : vector<1x1x64x128xbf16> to vector<64x128xbf16>
    %cst_80 = arith.constant dense<0.000000e+00> : vector<32x128xf32>
    %145 = tpu.matmul %117, %144, %cst_80 {dimension_numbers = #tpu.dot_dimension_numbers<[1], [0], [0], [1], [0, 0, 1, 1], [], []>} : vector<32x64xbf16>, vector<64x128xbf16>, vector<32x128xf32> -> vector<32x128xf32>
    %c31_i32_81 = arith.constant 31 : i32
    %146 = tpu.dynamic_rotate %145 by %c31_i32_81 dim 0 : vector<32x128xf32>, i32 -> vector<32x128xf32>
    %cst_82 = arith.constant 0.000000e+00 : f32
    %147 = vector.shape_cast %52 : vector<32x1xi1> to vector<32x1xi1>
    %148 = vector.broadcast %147 : vector<32x1xi1> to vector<32x128xi1>
    %149 = vector.broadcast %cst_82 : f32 to vector<32x128xf32>
    %150 = arith.select %148, %146, %149 : vector<32x128xi1>, vector<32x128xf32>
    %151 = arith.addf %142, %150 : vector<32x128xf32>
    %c1_83 = arith.constant 1 : index
    %c4_84 = arith.constant 4 : index
    %c0_85 = arith.constant 0 : index
    %c0_86 = arith.constant 0 : index
    %152 = vector.load %arg4[%c1_83, %c4_84, %c0_85, %c0_86] : memref<4x5x64x128xbf16, #tpu.memory_space<vmem>>, vector<1x1x64x128xbf16>
    %153 = vector.shape_cast %152 : vector<1x1x64x128xbf16> to vector<64x128xbf16>
    %cst_87 = arith.constant dense<0.000000e+00> : vector<32x128xf32>
    %154 = tpu.matmul %117, %153, %cst_87 {dimension_numbers = #tpu.dot_dimension_numbers<[1], [0], [0], [1], [0, 0, 1, 1], [], []>} : vector<32x64xbf16>, vector<64x128xbf16>, vector<32x128xf32> -> vector<32x128xf32>
    %c30_i32_88 = arith.constant 30 : i32
    %155 = tpu.dynamic_rotate %154 by %c30_i32_88 dim 0 : vector<32x128xf32>, i32 -> vector<32x128xf32>
    %cst_89 = arith.constant 0.000000e+00 : f32
    %156 = vector.shape_cast %61 : vector<32x1xi1> to vector<32x1xi1>
    %157 = vector.broadcast %156 : vector<32x1xi1> to vector<32x128xi1>
    %158 = vector.broadcast %cst_89 : f32 to vector<32x128xf32>
    %159 = arith.select %157, %155, %158 : vector<32x128xi1>, vector<32x128xf32>
    %160 = arith.addf %151, %159 : vector<32x128xf32>
    %161 = arith.negf %160 : vector<32x128xf32>
    %162 = math.exp %161 : vector<32x128xf32>
    %cst_90 = arith.constant 1.000000e+00 : f32
    %163 = vector.broadcast %cst_90 : f32 to vector<32x128xf32>
    %164 = arith.addf %163, %162 : vector<32x128xf32>
    %165 = arith.divf %163, %164 : vector<32x128xf32>
    %c64_i32_91 = arith.constant 64 : i32
    %166 = tpu.dynamic_rotate %165 by %c64_i32_91 dim 1 : vector<32x128xf32>, i32 -> vector<32x128xf32>
    %167 = arith.mulf %160, %166 : vector<32x128xf32>
    %168 = vector.extract_strided_slice %167 {offsets = [0, 0], sizes = [32, 64], strides = [1, 1]} : vector<32x128xf32> to vector<32x64xf32>
    %169 = arith.addf %168, %116 : vector<32x64xf32>
    %cst_92 = arith.constant 0.707106769 : f32
    %170 = vector.broadcast %cst_92 : f32 to vector<32x64xf32>
    %171 = arith.mulf %169, %170 : vector<32x64xf32>
    %172 = arith.truncf %171 : vector<32x64xf32> to vector<32x64xbf16>
    %c2_93 = arith.constant 2 : index
    %c0_94 = arith.constant 0 : index
    %c0_95 = arith.constant 0 : index
    %173 = vector.load %arg5[%c2_93, %c0_94, %c0_95] : memref<4x1x128xf32, #tpu.memory_space<vmem>>, vector<1x1x128xf32>
    %174 = vector.shape_cast %173 : vector<1x1x128xf32> to vector<1x128xf32>
    %c2_96 = arith.constant 2 : index
    %c0_97 = arith.constant 0 : index
    %c0_98 = arith.constant 0 : index
    %c0_99 = arith.constant 0 : index
    %175 = vector.load %arg4[%c2_96, %c0_97, %c0_98, %c0_99] : memref<4x5x64x128xbf16, #tpu.memory_space<vmem>>, vector<1x1x64x128xbf16>
    %176 = vector.shape_cast %175 : vector<1x1x64x128xbf16> to vector<64x128xbf16>
    %cst_100 = arith.constant dense<0.000000e+00> : vector<32x128xf32>
    %177 = tpu.matmul %172, %176, %cst_100 {dimension_numbers = #tpu.dot_dimension_numbers<[1], [0], [0], [1], [0, 0, 1, 1], [], []>} : vector<32x64xbf16>, vector<64x128xbf16>, vector<32x128xf32> -> vector<32x128xf32>
    %c2_i32_101 = arith.constant 2 : i32
    %178 = tpu.dynamic_rotate %177 by %c2_i32_101 dim 0 : vector<32x128xf32>, i32 -> vector<32x128xf32>
    %cst_102 = arith.constant 0.000000e+00 : f32
    %179 = vector.shape_cast %34 : vector<32x1xi1> to vector<32x1xi1>
    %180 = vector.broadcast %179 : vector<32x1xi1> to vector<32x128xi1>
    %181 = vector.broadcast %cst_102 : f32 to vector<32x128xf32>
    %182 = arith.select %180, %178, %181 : vector<32x128xi1>, vector<32x128xf32>
    %183 = vector.broadcast %174 : vector<1x128xf32> to vector<32x128xf32>
    %184 = arith.addf %183, %182 : vector<32x128xf32>
    %c2_103 = arith.constant 2 : index
    %c1_104 = arith.constant 1 : index
    %c0_105 = arith.constant 0 : index
    %c0_106 = arith.constant 0 : index
    %185 = vector.load %arg4[%c2_103, %c1_104, %c0_105, %c0_106] : memref<4x5x64x128xbf16, #tpu.memory_space<vmem>>, vector<1x1x64x128xbf16>
    %186 = vector.shape_cast %185 : vector<1x1x64x128xbf16> to vector<64x128xbf16>
    %cst_107 = arith.constant dense<0.000000e+00> : vector<32x128xf32>
    %187 = tpu.matmul %172, %186, %cst_107 {dimension_numbers = #tpu.dot_dimension_numbers<[1], [0], [0], [1], [0, 0, 1, 1], [], []>} : vector<32x64xbf16>, vector<64x128xbf16>, vector<32x128xf32> -> vector<32x128xf32>
    %c1_i32_108 = arith.constant 1 : i32
    %188 = tpu.dynamic_rotate %187 by %c1_i32_108 dim 0 : vector<32x128xf32>, i32 -> vector<32x128xf32>
    %cst_109 = arith.constant 0.000000e+00 : f32
    %189 = vector.shape_cast %43 : vector<32x1xi1> to vector<32x1xi1>
    %190 = vector.broadcast %189 : vector<32x1xi1> to vector<32x128xi1>
    %191 = vector.broadcast %cst_109 : f32 to vector<32x128xf32>
    %192 = arith.select %190, %188, %191 : vector<32x128xi1>, vector<32x128xf32>
    %193 = arith.addf %184, %192 : vector<32x128xf32>
    %c2_110 = arith.constant 2 : index
    %c2_111 = arith.constant 2 : index
    %c0_112 = arith.constant 0 : index
    %c0_113 = arith.constant 0 : index
    %194 = vector.load %arg4[%c2_110, %c2_111, %c0_112, %c0_113] : memref<4x5x64x128xbf16, #tpu.memory_space<vmem>>, vector<1x1x64x128xbf16>
    %195 = vector.shape_cast %194 : vector<1x1x64x128xbf16> to vector<64x128xbf16>
    %cst_114 = arith.constant dense<0.000000e+00> : vector<32x128xf32>
    %196 = tpu.matmul %172, %195, %cst_114 {dimension_numbers = #tpu.dot_dimension_numbers<[1], [0], [0], [1], [0, 0, 1, 1], [], []>} : vector<32x64xbf16>, vector<64x128xbf16>, vector<32x128xf32> -> vector<32x128xf32>
    %197 = arith.addf %193, %196 : vector<32x128xf32>
    %c2_115 = arith.constant 2 : index
    %c3_116 = arith.constant 3 : index
    %c0_117 = arith.constant 0 : index
    %c0_118 = arith.constant 0 : index
    %198 = vector.load %arg4[%c2_115, %c3_116, %c0_117, %c0_118] : memref<4x5x64x128xbf16, #tpu.memory_space<vmem>>, vector<1x1x64x128xbf16>
    %199 = vector.shape_cast %198 : vector<1x1x64x128xbf16> to vector<64x128xbf16>
    %cst_119 = arith.constant dense<0.000000e+00> : vector<32x128xf32>
    %200 = tpu.matmul %172, %199, %cst_119 {dimension_numbers = #tpu.dot_dimension_numbers<[1], [0], [0], [1], [0, 0, 1, 1], [], []>} : vector<32x64xbf16>, vector<64x128xbf16>, vector<32x128xf32> -> vector<32x128xf32>
    %c31_i32_120 = arith.constant 31 : i32
    %201 = tpu.dynamic_rotate %200 by %c31_i32_120 dim 0 : vector<32x128xf32>, i32 -> vector<32x128xf32>
    %cst_121 = arith.constant 0.000000e+00 : f32
    %202 = vector.shape_cast %52 : vector<32x1xi1> to vector<32x1xi1>
    %203 = vector.broadcast %202 : vector<32x1xi1> to vector<32x128xi1>
    %204 = vector.broadcast %cst_121 : f32 to vector<32x128xf32>
    %205 = arith.select %203, %201, %204 : vector<32x128xi1>, vector<32x128xf32>
    %206 = arith.addf %197, %205 : vector<32x128xf32>
    %c2_122 = arith.constant 2 : index
    %c4_123 = arith.constant 4 : index
    %c0_124 = arith.constant 0 : index
    %c0_125 = arith.constant 0 : index
    %207 = vector.load %arg4[%c2_122, %c4_123, %c0_124, %c0_125] : memref<4x5x64x128xbf16, #tpu.memory_space<vmem>>, vector<1x1x64x128xbf16>
    %208 = vector.shape_cast %207 : vector<1x1x64x128xbf16> to vector<64x128xbf16>
    %cst_126 = arith.constant dense<0.000000e+00> : vector<32x128xf32>
    %209 = tpu.matmul %172, %208, %cst_126 {dimension_numbers = #tpu.dot_dimension_numbers<[1], [0], [0], [1], [0, 0, 1, 1], [], []>} : vector<32x64xbf16>, vector<64x128xbf16>, vector<32x128xf32> -> vector<32x128xf32>
    %c30_i32_127 = arith.constant 30 : i32
    %210 = tpu.dynamic_rotate %209 by %c30_i32_127 dim 0 : vector<32x128xf32>, i32 -> vector<32x128xf32>
    %cst_128 = arith.constant 0.000000e+00 : f32
    %211 = vector.shape_cast %61 : vector<32x1xi1> to vector<32x1xi1>
    %212 = vector.broadcast %211 : vector<32x1xi1> to vector<32x128xi1>
    %213 = vector.broadcast %cst_128 : f32 to vector<32x128xf32>
    %214 = arith.select %212, %210, %213 : vector<32x128xi1>, vector<32x128xf32>
    %215 = arith.addf %206, %214 : vector<32x128xf32>
    %216 = arith.negf %215 : vector<32x128xf32>
    %217 = math.exp %216 : vector<32x128xf32>
    %cst_129 = arith.constant 1.000000e+00 : f32
    %218 = vector.broadcast %cst_129 : f32 to vector<32x128xf32>
    %219 = arith.addf %218, %217 : vector<32x128xf32>
    %220 = arith.divf %218, %219 : vector<32x128xf32>
    %c64_i32_130 = arith.constant 64 : i32
    %221 = tpu.dynamic_rotate %220 by %c64_i32_130 dim 1 : vector<32x128xf32>, i32 -> vector<32x128xf32>
    %222 = arith.mulf %215, %221 : vector<32x128xf32>
    %223 = vector.extract_strided_slice %222 {offsets = [0, 0], sizes = [32, 64], strides = [1, 1]} : vector<32x128xf32> to vector<32x64xf32>
    %224 = arith.addf %223, %171 : vector<32x64xf32>
    %cst_131 = arith.constant 0.707106769 : f32
    %225 = vector.broadcast %cst_131 : f32 to vector<32x64xf32>
    %226 = arith.mulf %224, %225 : vector<32x64xf32>
    %227 = arith.truncf %226 : vector<32x64xf32> to vector<32x64xbf16>
    %c3_132 = arith.constant 3 : index
    %c0_133 = arith.constant 0 : index
    %c0_134 = arith.constant 0 : index
    %228 = vector.load %arg5[%c3_132, %c0_133, %c0_134] : memref<4x1x128xf32, #tpu.memory_space<vmem>>, vector<1x1x128xf32>
    %229 = vector.shape_cast %228 : vector<1x1x128xf32> to vector<1x128xf32>
    %c3_135 = arith.constant 3 : index
    %c0_136 = arith.constant 0 : index
    %c0_137 = arith.constant 0 : index
    %c0_138 = arith.constant 0 : index
    %230 = vector.load %arg4[%c3_135, %c0_136, %c0_137, %c0_138] : memref<4x5x64x128xbf16, #tpu.memory_space<vmem>>, vector<1x1x64x128xbf16>
    %231 = vector.shape_cast %230 : vector<1x1x64x128xbf16> to vector<64x128xbf16>
    %cst_139 = arith.constant dense<0.000000e+00> : vector<32x128xf32>
    %232 = tpu.matmul %227, %231, %cst_139 {dimension_numbers = #tpu.dot_dimension_numbers<[1], [0], [0], [1], [0, 0, 1, 1], [], []>} : vector<32x64xbf16>, vector<64x128xbf16>, vector<32x128xf32> -> vector<32x128xf32>
    %c2_i32_140 = arith.constant 2 : i32
    %233 = tpu.dynamic_rotate %232 by %c2_i32_140 dim 0 : vector<32x128xf32>, i32 -> vector<32x128xf32>
    %cst_141 = arith.constant 0.000000e+00 : f32
    %234 = vector.shape_cast %34 : vector<32x1xi1> to vector<32x1xi1>
    %235 = vector.broadcast %234 : vector<32x1xi1> to vector<32x128xi1>
    %236 = vector.broadcast %cst_141 : f32 to vector<32x128xf32>
    %237 = arith.select %235, %233, %236 : vector<32x128xi1>, vector<32x128xf32>
    %238 = vector.broadcast %229 : vector<1x128xf32> to vector<32x128xf32>
    %239 = arith.addf %238, %237 : vector<32x128xf32>
    %c3_142 = arith.constant 3 : index
    %c1_143 = arith.constant 1 : index
    %c0_144 = arith.constant 0 : index
    %c0_145 = arith.constant 0 : index
    %240 = vector.load %arg4[%c3_142, %c1_143, %c0_144, %c0_145] : memref<4x5x64x128xbf16, #tpu.memory_space<vmem>>, vector<1x1x64x128xbf16>
    %241 = vector.shape_cast %240 : vector<1x1x64x128xbf16> to vector<64x128xbf16>
    %cst_146 = arith.constant dense<0.000000e+00> : vector<32x128xf32>
    %242 = tpu.matmul %227, %241, %cst_146 {dimension_numbers = #tpu.dot_dimension_numbers<[1], [0], [0], [1], [0, 0, 1, 1], [], []>} : vector<32x64xbf16>, vector<64x128xbf16>, vector<32x128xf32> -> vector<32x128xf32>
    %c1_i32_147 = arith.constant 1 : i32
    %243 = tpu.dynamic_rotate %242 by %c1_i32_147 dim 0 : vector<32x128xf32>, i32 -> vector<32x128xf32>
    %cst_148 = arith.constant 0.000000e+00 : f32
    %244 = vector.shape_cast %43 : vector<32x1xi1> to vector<32x1xi1>
    %245 = vector.broadcast %244 : vector<32x1xi1> to vector<32x128xi1>
    %246 = vector.broadcast %cst_148 : f32 to vector<32x128xf32>
    %247 = arith.select %245, %243, %246 : vector<32x128xi1>, vector<32x128xf32>
    %248 = arith.addf %239, %247 : vector<32x128xf32>
    %c3_149 = arith.constant 3 : index
    %c2_150 = arith.constant 2 : index
    %c0_151 = arith.constant 0 : index
    %c0_152 = arith.constant 0 : index
    %249 = vector.load %arg4[%c3_149, %c2_150, %c0_151, %c0_152] : memref<4x5x64x128xbf16, #tpu.memory_space<vmem>>, vector<1x1x64x128xbf16>
    %250 = vector.shape_cast %249 : vector<1x1x64x128xbf16> to vector<64x128xbf16>
    %cst_153 = arith.constant dense<0.000000e+00> : vector<32x128xf32>
    %251 = tpu.matmul %227, %250, %cst_153 {dimension_numbers = #tpu.dot_dimension_numbers<[1], [0], [0], [1], [0, 0, 1, 1], [], []>} : vector<32x64xbf16>, vector<64x128xbf16>, vector<32x128xf32> -> vector<32x128xf32>
    %252 = arith.addf %248, %251 : vector<32x128xf32>
    %c3_154 = arith.constant 3 : index
    %c3_155 = arith.constant 3 : index
    %c0_156 = arith.constant 0 : index
    %c0_157 = arith.constant 0 : index
    %253 = vector.load %arg4[%c3_154, %c3_155, %c0_156, %c0_157] : memref<4x5x64x128xbf16, #tpu.memory_space<vmem>>, vector<1x1x64x128xbf16>
    %254 = vector.shape_cast %253 : vector<1x1x64x128xbf16> to vector<64x128xbf16>
    %cst_158 = arith.constant dense<0.000000e+00> : vector<32x128xf32>
    %255 = tpu.matmul %227, %254, %cst_158 {dimension_numbers = #tpu.dot_dimension_numbers<[1], [0], [0], [1], [0, 0, 1, 1], [], []>} : vector<32x64xbf16>, vector<64x128xbf16>, vector<32x128xf32> -> vector<32x128xf32>
    %c31_i32_159 = arith.constant 31 : i32
    %256 = tpu.dynamic_rotate %255 by %c31_i32_159 dim 0 : vector<32x128xf32>, i32 -> vector<32x128xf32>
    %cst_160 = arith.constant 0.000000e+00 : f32
    %257 = vector.shape_cast %52 : vector<32x1xi1> to vector<32x1xi1>
    %258 = vector.broadcast %257 : vector<32x1xi1> to vector<32x128xi1>
    %259 = vector.broadcast %cst_160 : f32 to vector<32x128xf32>
    %260 = arith.select %258, %256, %259 : vector<32x128xi1>, vector<32x128xf32>
    %261 = arith.addf %252, %260 : vector<32x128xf32>
    %c3_161 = arith.constant 3 : index
    %c4_162 = arith.constant 4 : index
    %c0_163 = arith.constant 0 : index
    %c0_164 = arith.constant 0 : index
    %262 = vector.load %arg4[%c3_161, %c4_162, %c0_163, %c0_164] : memref<4x5x64x128xbf16, #tpu.memory_space<vmem>>, vector<1x1x64x128xbf16>
    %263 = vector.shape_cast %262 : vector<1x1x64x128xbf16> to vector<64x128xbf16>
    %cst_165 = arith.constant dense<0.000000e+00> : vector<32x128xf32>
    %264 = tpu.matmul %227, %263, %cst_165 {dimension_numbers = #tpu.dot_dimension_numbers<[1], [0], [0], [1], [0, 0, 1, 1], [], []>} : vector<32x64xbf16>, vector<64x128xbf16>, vector<32x128xf32> -> vector<32x128xf32>
    %c30_i32_166 = arith.constant 30 : i32
    %265 = tpu.dynamic_rotate %264 by %c30_i32_166 dim 0 : vector<32x128xf32>, i32 -> vector<32x128xf32>
    %cst_167 = arith.constant 0.000000e+00 : f32
    %266 = vector.shape_cast %61 : vector<32x1xi1> to vector<32x1xi1>
    %267 = vector.broadcast %266 : vector<32x1xi1> to vector<32x128xi1>
    %268 = vector.broadcast %cst_167 : f32 to vector<32x128xf32>
    %269 = arith.select %267, %265, %268 : vector<32x128xi1>, vector<32x128xf32>
    %270 = arith.addf %261, %269 : vector<32x128xf32>
    %271 = arith.negf %270 : vector<32x128xf32>
    %272 = math.exp %271 : vector<32x128xf32>
    %cst_168 = arith.constant 1.000000e+00 : f32
    %273 = vector.broadcast %cst_168 : f32 to vector<32x128xf32>
    %274 = arith.addf %273, %272 : vector<32x128xf32>
    %275 = arith.divf %273, %274 : vector<32x128xf32>
    %c64_i32_169 = arith.constant 64 : i32
    %276 = tpu.dynamic_rotate %275 by %c64_i32_169 dim 1 : vector<32x128xf32>, i32 -> vector<32x128xf32>
    %277 = arith.mulf %270, %276 : vector<32x128xf32>
    %278 = vector.extract_strided_slice %277 {offsets = [0, 0], sizes = [32, 64], strides = [1, 1]} : vector<32x128xf32> to vector<32x64xf32>
    %279 = arith.addf %278, %226 : vector<32x64xf32>
    %cst_170 = arith.constant 0.707106769 : f32
    %280 = vector.broadcast %cst_170 : f32 to vector<32x64xf32>
    %281 = arith.mulf %279, %280 : vector<32x64xf32>
    %282 = arith.truncf %281 : vector<32x64xf32> to vector<32x64xbf16>
    %c0_171 = arith.constant 0 : index
    %c0_172 = arith.constant 0 : index
    %283 = vector.load %arg6[%c0_171, %c0_172] : memref<64x128xbf16, #tpu.memory_space<vmem>>, vector<64x128xbf16>
    %cst_173 = arith.constant dense<0.000000e+00> : vector<32x128xf32>
    %284 = tpu.matmul %282, %283, %cst_173 {dimension_numbers = #tpu.dot_dimension_numbers<[1], [0], [0], [1], [0, 0, 1, 1], [], []>} : vector<32x64xbf16>, vector<64x128xbf16>, vector<32x128xf32> -> vector<32x128xf32>
    %c0_174 = arith.constant 0 : index
    %c0_175 = arith.constant 0 : index
    %285 = vector.load %arg7[%c0_174, %c0_175] : memref<1x128xf32, #tpu.memory_space<vmem>>, vector<1x128xf32>
    %286 = vector.broadcast %285 : vector<1x128xf32> to vector<32x128xf32>
    %287 = arith.addf %284, %286 : vector<32x128xf32>
    %288 = arith.negf %287 : vector<32x128xf32>
    %289 = math.exp %288 : vector<32x128xf32>
    %cst_176 = arith.constant 1.000000e+00 : f32
    %290 = vector.broadcast %cst_176 : f32 to vector<32x128xf32>
    %291 = arith.addf %290, %289 : vector<32x128xf32>
    %292 = arith.divf %290, %291 : vector<32x128xf32>
    %c0_177 = arith.constant 0 : index
    %c0_178 = arith.constant 0 : index
    %293 = vector.load %arg8[%c0_177, %c0_178] : memref<32x128xf32, #tpu.memory_space<vmem>>, vector<32x128xf32>
    tpu.vector_store %arg8[%c0_177, %c0_178], %292 {strides = array<i32>} : memref<32x128xf32, #tpu.memory_space<vmem>>, vector<32x128xf32>,
    return
  }
  func.func @transform_0(%arg0: i32) -> (i32, i32) {
    %c0_i32 = arith.constant 0 : i32
    %c0_i32_0 = arith.constant 0 : i32
    return %arg0, %c0_i32 : i32, i32
  }
  func.func @transform_1(%arg0: i32) -> (i32, i32) {
    %c0_i32 = arith.constant 0 : i32
    %c0_i32_0 = arith.constant 0 : i32
    %c0_i32_1 = arith.constant 0 : i32
    return %c0_i32, %c0_i32_0 : i32, i32
  }
  func.func @transform_2(%arg0: i32) -> (i32, i32) {
    %c0_i32 = arith.constant 0 : i32
    %c0_i32_0 = arith.constant 0 : i32
    %c0_i32_1 = arith.constant 0 : i32
    return %c0_i32, %c0_i32_0 : i32, i32
  }
  func.func @transform_3(%arg0: i32) -> (i32, i32, i32, i32) {
    %c0_i32 = arith.constant 0 : i32
    %c0_i32_0 = arith.constant 0 : i32
    %c0_i32_1 = arith.constant 0 : i32
    %c0_i32_2 = arith.constant 0 : i32
    %c0_i32_3 = arith.constant 0 : i32
    return %c0_i32, %c0_i32_0, %c0_i32_1, %c0_i32_2 : i32, i32, i32, i32
  }
  func.func @transform_4(%arg0: i32) -> (i32, i32, i32) {
    %c0_i32 = arith.constant 0 : i32
    %c0_i32_0 = arith.constant 0 : i32
    %c0_i32_1 = arith.constant 0 : i32
    %c0_i32_2 = arith.constant 0 : i32
    return %c0_i32, %c0_i32_0, %c0_i32_1 : i32, i32, i32
  }
  func.func @transform_5(%arg0: i32) -> (i32, i32) {
    %c0_i32 = arith.constant 0 : i32
    %c0_i32_0 = arith.constant 0 : i32
    %c0_i32_1 = arith.constant 0 : i32
    return %c0_i32, %c0_i32_0 : i32, i32
  }
  func.func @transform_6(%arg0: i32) -> (i32, i32) {
    %c0_i32 = arith.constant 0 : i32
    %c0_i32_0 = arith.constant 0 : i32
    %c0_i32_1 = arith.constant 0 : i32
    return %c0_i32, %c0_i32_0 : i32, i32
  }
  func.func @transform_7(%arg0: i32) -> (i32, i32) {
    %c0_i32 = arith.constant 0 : i32
    %c0_i32_0 = arith.constant 0 : i32
    return %arg0, %c0_i32 : i32, i32
  }
}

</mosaic_0001>

<llo_original>
// kernel: tpu_custom_call.1
$region0: #{tpu_custom_call.1}
  #allocation0 [shape = 'u32[]', space=smem, size = 0x4, offset = 0x4, fixed_abs, tag = 'smem constant byte address 0x4 - core index']
  #allocation1 [shape = 'u32[144,128]{1,0:T(1,128)}', space=vmem, size = 0x12000, scoped, tag = 'internal scratch']
  %s0 = inlined_call_operand.hbm [shape: f32[32,32], index: 0, kind: input, shape index: {}]
  %s1 = inlined_call_operand.hbm [shape: bf16[32,64], index: 1, kind: input, shape index: {}]
  %s2 = inlined_call_operand.vmem [shape: f32[1,64], index: 2, kind: input, shape index: {}]
  %s3 = inlined_call_operand.hbm [shape: bf16[4,5,64,128], index: 3, kind: input, shape index: {}]
  %s4 = inlined_call_operand.vmem [shape: f32[4,1,128], index: 4, kind: input, shape index: {}]
  %s5 = inlined_call_operand.hbm [shape: bf16[64,128], index: 5, kind: input, shape index: {}]
  %s6 = inlined_call_operand.vmem [shape: f32[1,128], index: 6, kind: input, shape index: {}]
  %s7 = inlined_call_operand.hbm [shape: f32[32,128], index: 7, kind: output, shape index: {}]
  %s8 = sld [smem:[#allocation0]]
  $region54: #{tpu_custom_call.1} parent=0
    _
  %s10 = ssub.s32 1, %s8
  %s11 = scalar_select 0, %s10, %s8
  $region1: #{tpu_custom_call.1} parent=0
    #allocation2 [shape = 'u8[16384]{0}', space=vmem, size = 0x4000, scoped, tag = 'input window, operand 0, single buffered']
    #allocation3 [shape = 's32[1]{0}', space=sflag, size = 0x4, scoped, tag = 'scoped memory for tpu_custom_call.1']
    #allocation4 [shape = 's32[1]{0}', space=sflag, size = 0x4, scoped, tag = 'scoped memory for tpu_custom_call.1']
    #allocation5 [shape = 'u8[8192]{0}', space=vmem, size = 0x2000, scoped, tag = 'input window, operand 1, single buffered']
    #allocation6 [shape = 's32[1]{0}', space=sflag, size = 0x4, scoped, tag = 'scoped memory for tpu_custom_call.1']
    #allocation7 [shape = 'u8[327680]{0}', space=vmem, size = 0x50000, scoped, tag = 'input window, operand 3, single buffered']
    #allocation8 [shape = 'u8[16384]{0}', space=vmem, size = 0x4000, scoped, tag = 'input window, operand 5, single buffered']
    #allocation9 [shape = 's32[1]{0}', space=sflag, size = 0x4, scoped, tag = 'scoped memory for tpu_custom_call.1']
    #allocation10 [shape = 'u8[16384]{0}', space=vmem, size = 0x4000, scoped, tag = 'output window, operand 0, single buffered']
    %12 = vsyncpa [#allocation3], 0
    %13 = vsyncpa [#allocation6], 0
    %14 = vsyncpa [#allocation9], 0
    %15 = vsyncpa [#allocation4], 0
    // Predicated region
    $region2: #{tpu_custom_call.1} parent=1 // pred_check
      _
    $region3: #{tpu_custom_call.1} parent=1 // pred_check_branch
      %17 = sbr.rel (0) target = $region5
    $region4: #{tpu_custom_call.1} parent=1 // pred_region
      %s19 = ssub.s32 512, 512
      %20 = vsyncadd [#allocation3], %s19
      %s21 = sshll.u32 [#allocation2], 4
      %s22 = int_to_ptr.vmem [resolvable:$true] %s21
      %27 = dma.hbm_to_vmem [thread:$0]  %s0, 512, %s22, [#allocation3], 128, 128, 8
    $region5: #{tpu_custom_call.1} parent=1 // pred_fallthru
      _
    // Predicated region
    $region6: #{tpu_custom_call.1} parent=1 // pred_check
      _
    $region7: #{tpu_custom_call.1} parent=1 // pred_check_branch
      %29 = sbr.rel (0) target = $region9
    $region8: #{tpu_custom_call.1} parent=1 // pred_region
      %s31 = ssub.s32 256, 256
      %32 = vsyncadd [#allocation6], %s31
      %s33 = sshll.u32 [#allocation5], 4
      %s34 = int_to_ptr.vmem [resolvable:$true] %s33
      %39 = dma.hbm_to_vmem [thread:$0]  %s1, 256, %s34, [#allocation6], 64, 64, 4
    $region9: #{tpu_custom_call.1} parent=1 // pred_fallthru
      _
    // Predicated region
    $region10: #{tpu_custom_call.1} parent=1 // pred_check
      _
    $region11: #{tpu_custom_call.1} parent=1 // pred_check_branch
      %41 = sbr.rel (0) target = $region13
    $region12: #{tpu_custom_call.1} parent=1 // pred_region
      _
    $region13: #{tpu_custom_call.1} parent=1 // pred_fallthru
      _
    // Predicated region
    $region14: #{tpu_custom_call.1} parent=1 // pred_check
      _
    $region15: #{tpu_custom_call.1} parent=1 // pred_check_branch
      %43 = sbr.rel (0) target = $region17
    $region16: #{tpu_custom_call.1} parent=1 // pred_region
      %s45 = ssub.s32 10240, 10240
      %46 = vsyncadd [#allocation6], %s45
      %s47 = sshll.u32 [#allocation7], 4
      %s48 = int_to_ptr.vmem [resolvable:$true] %s47
      %53 = dma.hbm_to_vmem [thread:$0]  %s3, 10240, %s48, [#allocation6], 64, 64, 4
    $region17: #{tpu_custom_call.1} parent=1 // pred_fallthru
      _
    // Predicated region
    $region18: #{tpu_custom_call.1} parent=1 // pred_check
      _
    $region19: #{tpu_custom_call.1} parent=1 // pred_check_branch
      %55 = sbr.rel (0) target = $region21
    $region20: #{tpu_custom_call.1} parent=1 // pred_region
      _
    $region21: #{tpu_custom_call.1} parent=1 // pred_fallthru
      _
    // Predicated region
    $region22: #{tpu_custom_call.1} parent=1 // pred_check
      _
    $region23: #{tpu_custom_call.1} parent=1 // pred_check_branch
      %57 = sbr.rel (0) target = $region25
    $region24: #{tpu_custom_call.1} parent=1 // pred_region
      %s59 = ssub.s32 512, 512
      %60 = vsyncadd [#allocation9], %s59
      %s61 = sshll.u32 [#allocation8], 4
      %s62 = int_to_ptr.vmem [resolvable:$true] %s61
      %67 = dma.hbm_to_vmem [thread:$0]  %s5, 512, %s62, [#allocation9], 64, 64, 4
    $region25: #{tpu_custom_call.1} parent=1 // pred_fallthru
      _
    // Predicated region
    $region26: #{tpu_custom_call.1} parent=1 // pred_check
      _
    $region27: #{tpu_custom_call.1} parent=1 // pred_check_branch
      %69 = sbr.rel (0) target = $region29
    $region28: #{tpu_custom_call.1} parent=1 // pred_region
      _
    $region29: #{tpu_custom_call.1} parent=1 // pred_fallthru
      _
    // Predicated region
    $region30: #{tpu_custom_call.1} parent=1 // pred_check
      _
    $region31: #{tpu_custom_call.1} parent=1 // pred_check_branch
      %71 = sbr.rel (0) target = $region33
    $region32: #{tpu_custom_call.1} parent=1 // pred_region
      %72 = dma.done [#allocation3], 512
    $region33: #{tpu_custom_call.1} parent=1 // pred_fallthru
      _
    // Predicated region
    $region34: #{tpu_custom_call.1} parent=1 // pred_check
      _
    $region35: #{tpu_custom_call.1} parent=1 // pred_check_branch
      %74 = sbr.rel (0) target = $region37
    $region36: #{tpu_custom_call.1} parent=1 // pred_region
      %75 = dma.done [#allocation6], 256
    $region37: #{tpu_custom_call.1} parent=1 // pred_fallthru
      _
    // Predicated region
    $region38: #{tpu_custom_call.1} parent=1 // pred_check
      _
    $region39: #{tpu_custom_call.1} parent=1 // pred_check_branch
      %77 = sbr.rel (0) target = $region41
    $region40: #{tpu_custom_call.1} parent=1 // pred_region
      %78 = dma.done [#allocation6], 10240
    $region41: #{tpu_custom_call.1} parent=1 // pred_fallthru
      _
    // Predicated region
    $region42: #{tpu_custom_call.1} parent=1 // pred_check
      _
    $region43: #{tpu_custom_call.1} parent=1 // pred_check_branch
      %80 = sbr.rel (0) target = $region45
    $region44: #{tpu_custom_call.1} parent=1 // pred_region
      %81 = dma.done [#allocation9], 512
    $region45: #{tpu_custom_call.1} parent=1 // pred_fallthru
      _
    %v83 = vld [vmem:[#allocation2] sm:$0xff]
    %v84 = vld [vmem:[#allocation2 + $0x8] sm:$0xff]
    %v85 = vld [vmem:[#allocation2 + $0x10] sm:$0xff]
    %v86 = vld [vmem:[#allocation2 + $0x18] sm:$0xff]
    %v87 = vpack.c.bf16 %v84, %v83
    %v88 = vpack.c.bf16 %v86, %v85
    %v89 = vld [vmem:[#allocation5] sm:$0xf]
    %v90 = vld [vmem:[#allocation5 + $0x4] sm:$0xf]
    %v91 = vld [vmem:[#allocation5 + $0x8] sm:$0xf]
    %v92 = vld [vmem:[#allocation5 + $0xc] sm:$0xf]
    %v93 = vld [vmem:[%s2] sm:$0x1]
    %v95 = vlaneseq
    %v96 = vshrl.u32 %v95, 7
    %v97 = vsub.s32 0, %v96
    %v98 = vrot.slane %v93, %v97
    %v104 = vunpack.c.l.b16 %v89
    %v105 = vunpack.c.l.b16 %v90
    %v106 = vunpack.c.l.b16 %v91
    %v107 = vunpack.c.l.b16 %v92
    %v108 = vpack.c.b16 %v105, %v104
    %v109 = vpack.c.b16 %v107, %v106
    %vm112 = vcmask 261120
    %v114 = vsel %vm112, %v87, 0
    %v117 = vsel %vm112, %v88, 0
    %119 = vmatprep.subr.bf16.mxu0 0
    %120 = vmatpush1.bf16.msra.mxu0 %v108
    %121 = vmatprep.subr.bf16.mxu0 0
    %122 = vmatpush1.bf16.msra.mxu0 %v109
    %123 = vmatprep.subr.bf16.mxu0 0
    %124 = vmatpush1.bf16.msra.mxu0 0
    %125 = vmatprep.subr.bf16.mxu0 0
    %126 = vmatpush1.bf16.msra.mxu0 0
    %127 = vmatprep.subr.bf16.mxu0 0
    %128 = vmatpush1.bf16.msra.mxu0 0
    %129 = vmatprep.subr.bf16.mxu0 0
    %130 = vmatpush1.bf16.msra.mxu0 0
    %131 = vmatprep.subr.bf16.mxu0 0
    %132 = vmatpush1.bf16.msra.mxu0 0
    %133 = vmatprep.subr.bf16.mxu0 0
    %134 = vmatpush1.bf16.msra.mxu0 0
    %135 = vmatprep.subr.bf16.mxu0 0
    %136 = vmatpush1.bf16.msra.mxu0 0
    %137 = vmatprep.subr.bf16.mxu0 0
    %138 = vmatpush1.bf16.msra.mxu0 0
    %139 = vmatprep.subr.bf16.mxu0 0
    %140 = vmatpush1.bf16.msra.mxu0 0
    %141 = vmatprep.subr.bf16.mxu0 0
    %142 = vmatpush1.bf16.msra.mxu0 0
    %143 = vmatprep.subr.bf16.mxu0 0
    %144 = vmatpush1.bf16.msra.mxu0 0
    %145 = vmatprep.subr.bf16.mxu0 0
    %146 = vmatpush1.bf16.msra.mxu0 0
    %147 = vmatprep.subr.bf16.mxu0 0
    %148 = vmatpush1.bf16.msra.mxu0 0
    %149 = vmatprep.subr.bf16.mxu0 0
    %150 = vmatpush1.bf16.msra.mxu0 0
    %151 = vmatprep.mubr.bf16.mxu0 0
    %152 = vmatmul.mubr.bf16.gmra.mrb[0].mxu0 %v114
    %v153 = vpop.f32.mrb[0].mxu0
    %v154 = vadd.f32 %v98, %v153
    %v155 = vpop.f32.mrb[0].mxu0
    %v156 = vpop.f32.mrb[0].mxu0
    %v157 = vadd.f32 %v98, %v156
    %v158 = vpop.f32.mrb[0].mxu0
    %159 = vmatprep.mubr.bf16.mxu0 0
    %160 = vmatmul.mubr.bf16.gmra.mrb[0].mxu0 %v117
    %v161 = vpop.f32.mrb[0].mxu0
    %v162 = vadd.f32 %v98, %v161
    %v163 = vpop.f32.mrb[0].mxu0
    %v164 = vpop.f32.mrb[0].mxu0
    %v165 = vadd.f32 %v98, %v164
    %v166 = vpop.f32.mrb[0].mxu0
    %167 = vdwg.mxu0
    %v168 = vmax.f32 %v154, 0.0
    %v169 = vmax.f32 %v157, 0.0
    %v170 = vmax.f32 %v162, 0.0
    %v171 = vmax.f32 %v165, 0.0
    %v172 = vlaneseq
    %v173 = vshrl.u32 %v172, 7
    %v174 = vadd.s32 %v173, 8
    %v175 = vadd.s32 %v173, 16
    %v176 = vadd.s32 %v173, 24
    %vm177 = vcmp.lt.s32.totalorder %v173, 0
    %v178 = vsub.s32 0, %v173
    %v179 = vsel %vm177, %v178, %v173
    %v180 = vshrl.u32 %v179, 4
    %v181 = vand.u32 %v179, 15
    %v182 = vsub.s32 0, %v181
    %v183 = vsel %vm177, %v182, %v181
    %vm184 = vcmp.lt.s32.totalorder %v174, 0
    %v185 = vsub.s32 0, %v174
    %v186 = vsel %vm184, %v185, %v174
    %v187 = vshrl.u32 %v186, 4
    %v188 = vand.u32 %v186, 15
    %v189 = vsub.s32 0, %v188
    %v190 = vsel %vm184, %v189, %v188
    %vm191 = vcmp.lt.s32.totalorder %v175, 0
    %v192 = vsub.s32 0, %v175
    %v193 = vsel %vm191, %v192, %v175
    %v194 = vshrl.u32 %v193, 4
    %v195 = vand.u32 %v193, 15
    %v196 = vsub.s32 0, %v195
    %v197 = vsel %vm191, %v196, %v195
    %vm198 = vcmp.lt.s32.totalorder %v176, 0
    %v199 = vsub.s32 0, %v176
    %v200 = vsel %vm198, %v199, %v176
    %v201 = vshrl.u32 %v200, 4
    %v202 = vand.u32 %v200, 15
    %v203 = vsub.s32 0, %v202
    %v204 = vsel %vm198, %v203, %v202
    %vm205 = vcmp.ne.s32.totalorder %v183, 0
    %vm206 = vcmp.ne.s32.totalorder %v190, 0
    %vm207 = vcmp.ne.s32.totalorder %v197, 0
    %vm208 = vcmp.ne.s32.totalorder %v204, 0
    %vm209 = vcmp.lt.s32.totalorder %v183, 0
    %vm210 = vcmp.lt.s32.totalorder %v190, 0
    %vm211 = vcmp.lt.s32.totalorder %v197, 0
    %vm212 = vcmp.lt.s32.totalorder %v204, 0
    %vm213 = vmand %vm209, %vm205
    %vm214 = vmand %vm210, %vm206
    %vm215 = vmand %vm211, %vm207
    %vm216 = vmand %vm212, %vm208
    %v217 = vadd.s32 %v183, 16
    %v218 = vadd.s32 %v190, 16
    %v219 = vadd.s32 %v197, 16
    %v220 = vadd.s32 %v204, 16
    %v221 = vsel %vm213, %v217, %v183
    %v222 = vsel %vm214, %v218, %v190
    %v223 = vsel %vm215, %v219, %v197
    %v224 = vsel %vm216, %v220, %v204
    %v225 = vadd.s32 %v221, 4294967294
    %v226 = vadd.s32 %v222, 4294967294
    %v227 = vadd.s32 %v223, 4294967294
    %v228 = vadd.s32 %v224, 4294967294
    %vm229 = vcmp.ge.s32.totalorder %v225, 0
    %vm230 = vcmp.ge.s32.totalorder %v226, 0
    %vm231 = vcmp.ge.s32.totalorder %v227, 0
    %vm232 = vcmp.ge.s32.totalorder %v228, 0
    %vm233 = vcmp.lt.s32.totalorder %v225, 16
    %vm234 = vcmp.lt.s32.totalorder %v226, 16
    %vm235 = vcmp.lt.s32.totalorder %v227, 16
    %vm236 = vcmp.lt.s32.totalorder %v228, 16
    %vm237 = vmand %vm229, %vm233
    %vm238 = vmand %vm230, %vm234
    %vm239 = vmand %vm231, %vm235
    %vm240 = vmand %vm232, %vm236
    %v241 = vadd.s32 %v221, 4294967295
    %v242 = vadd.s32 %v222, 4294967295
    %v243 = vadd.s32 %v223, 4294967295
    %v244 = vadd.s32 %v224, 4294967295
    %vm245 = vcmp.ge.s32.totalorder %v241, 0
    %vm246 = vcmp.ge.s32.totalorder %v242, 0
    %vm247 = vcmp.ge.s32.totalorder %v243, 0
    %vm248 = vcmp.ge.s32.totalorder %v244, 0
    %vm249 = vcmp.lt.s32.totalorder %v241, 16
    %vm250 = vcmp.lt.s32.totalorder %v242, 16
    %vm251 = vcmp.lt.s32.totalorder %v243, 16
    %vm252 = vcmp.lt.s32.totalorder %v244, 16
    %vm253 = vmand %vm245, %vm249
    %vm254 = vmand %vm246, %vm250
    %vm255 = vmand %vm247, %vm251
    %vm256 = vmand %vm248, %vm252
    %v257 = vadd.s32 %v221, 1
    %v258 = vadd.s32 %v222, 1
    %v259 = vadd.s32 %v223, 1
    %v260 = vadd.s32 %v224, 1
    %vm261 = vcmp.ge.s32.totalorder %v257, 0
    %vm262 = vcmp.ge.s32.totalorder %v258, 0
    %vm263 = vcmp.ge.s32.totalorder %v259, 0
    %vm264 = vcmp.ge.s32.totalorder %v260, 0
    %vm265 = vcmp.lt.s32.totalorder %v257, 16
    %vm266 = vcmp.lt.s32.totalorder %v258, 16
    %vm267 = vcmp.lt.s32.totalorder %v259, 16
    %vm268 = vcmp.lt.s32.totalorder %v260, 16
    %vm269 = vmand %vm261, %vm265
    %vm270 = vmand %vm262, %vm266
    %vm271 = vmand %vm263, %vm267
    %vm272 = vmand %vm264, %vm268
    %v273 = vadd.s32 %v221, 2
    %v274 = vadd.s32 %v222, 2
    %v275 = vadd.s32 %v223, 2
    %v276 = vadd.s32 %v224, 2
    %vm277 = vcmp.ge.s32.totalorder %v273, 0
    %vm278 = vcmp.ge.s32.totalorder %v274, 0
    %vm279 = vcmp.ge.s32.totalorder %v275, 0
    %vm280 = vcmp.ge.s32.totalorder %v276, 0
    %vm281 = vcmp.lt.s32.totalorder %v273, 16
    %vm282 = vcmp.lt.s32.totalorder %v274, 16
    %vm283 = vcmp.lt.s32.totalorder %v275, 16
    %vm284 = vcmp.lt.s32.totalorder %v276, 16
    %vm285 = vmand %vm277, %vm281
    %vm286 = vmand %vm278, %vm282
    %vm287 = vmand %vm279, %vm283
    %vm288 = vmand %vm280, %vm284
    %v289 = vpack.c.bf16 %v169, %v168
    %v290 = vpack.c.bf16 %v171, %v170
    %v291 = vld [vmem:[%s4] sm:$0x1]
    %v292 = vld [vmem:[#allocation7] sm:$0xf]
    %v293 = vld [vmem:[#allocation7 + $0x4] sm:$0xf]
    %v294 = vld [vmem:[#allocation7 + $0x8] sm:$0xf]
    %v295 = vld [vmem:[#allocation7 + $0xc] sm:$0xf]
    %v296 = vld [vmem:[#allocation7 + $0x10] sm:$0xf]
    %v297 = vld [vmem:[#allocation7 + $0x14] sm:$0xf]
    %v298 = vld [vmem:[#allocation7 + $0x18] sm:$0xf]
    %v299 = vld [vmem:[#allocation7 + $0x1c] sm:$0xf]
    %v308 = vunpack.c.l.b16 %v292
    %v309 = vunpack.c.l.b16 %v293
    %v310 = vunpack.c.l.b16 %v294
    %v311 = vunpack.c.l.b16 %v295
    %v312 = vunpack.c.l.b16 %v296
    %v313 = vunpack.c.l.b16 %v297
    %v314 = vunpack.c.l.b16 %v298
    %v315 = vunpack.c.l.b16 %v299
    %v316 = vpack.c.b16 %v309, %v308
    %v317 = vpack.c.b16 %v311, %v310
    %v318 = vpack.c.b16 %v313, %v312
    %v319 = vpack.c.b16 %v315, %v314
    %vm324 = vcmask 523264
    %v326 = vsel %vm324, %v289, 0
    %v329 = vsel %vm324, %v290, 0
    %331 = vmatprep.subr.bf16.mxu0 0
    %332 = vmatpush1.bf16.msra.mxu0 %v316
    %333 = vmatprep.subr.bf16.mxu0 0
    %334 = vmatpush1.bf16.msra.mxu0 %v317
    %335 = vmatprep.subr.bf16.mxu0 0
    %336 = vmatpush1.bf16.msra.mxu0 %v318
    %337 = vmatprep.subr.bf16.mxu0 0
    %338 = vmatpush1.bf16.msra.mxu0 %v319
    %339 = vmatprep.subr.bf16.mxu0 0
    %340 = vmatpush1.bf16.msra.mxu0 0
    %341 = vmatprep.subr.bf16.mxu0 0
    %342 = vmatpush1.bf16.msra.mxu0 0
    %343 = vmatprep.subr.bf16.mxu0 0
    %344 = vmatpush1.bf16.msra.mxu0 0
    %345 = vmatprep.subr.bf16.mxu0 0
    %346 = vmatpush1.bf16.msra.mxu0 0
    %347 = vmatprep.subr.bf16.mxu0 0
    %348 = vmatpush1.bf16.msra.mxu0 0
    %349 = vmatprep.subr.bf16.mxu0 0
    %350 = vmatpush1.bf16.msra.mxu0 0
    %351 = vmatprep.subr.bf16.mxu0 0
    %352 = vmatpush1.bf16.msra.mxu0 0
    %353 = vmatprep.subr.bf16.mxu0 0
    %354 = vmatpush1.bf16.msra.mxu0 0
    %355 = vmatprep.subr.bf16.mxu0 0
    %356 = vmatpush1.bf16.msra.mxu0 0
    %357 = vmatprep.subr.bf16.mxu0 0
    %358 = vmatpush1.bf16.msra.mxu0 0
    %359 = vmatprep.subr.bf16.mxu0 0
    %360 = vmatpush1.bf16.msra.mxu0 0
    %361 = vmatprep.subr.bf16.mxu0 0
    %362 = vmatpush1.bf16.msra.mxu0 0
    %363 = vmatprep.mubr.bf16.mxu0 0
    %364 = vmatmul.mubr.bf16.gmra.mrb[0].mxu0 %v326
    %v365 = vpop.f32.mrb[0].mxu0
    %v366 = vadd.f32 0.0, %v365
    %v367 = vpop.f32.mrb[0].mxu0
    %v368 = vpop.f32.mrb[0].mxu0
    %v369 = vadd.f32 0.0, %v368
    %v370 = vpop.f32.mrb[0].mxu0
    %371 = vmatprep.mubr.bf16.mxu0 0
    %372 = vmatmul.mubr.bf16.gmra.mrb[0].mxu0 %v329
    %v373 = vpop.f32.mrb[0].mxu0
    %v374 = vadd.f32 0.0, %v373
    %v375 = vpop.f32.mrb[0].mxu0
    %v376 = vpop.f32.mrb[0].mxu0
    %v377 = vadd.f32 0.0, %v376
    %v378 = vpop.f32.mrb[0].mxu0
    %379 = vdwg.mxu0
    %v380 = vrot.slane %v366, 6
    %v381 = vrot.slane %v369, 6
    %v382 = vrot.slane %v374, 6
    %v383 = vrot.slane %v377, 6
    %vm384 = vcmp.lt.s32.totalorder %v173, 2
    %v385 = vsel %vm384, %v382, %v383
    %v386 = vsel %vm384, %v381, %v382
    %v387 = vsel %vm384, %v380, %v381
    %v388 = vsel %vm384, %v383, %v380
    %v389 = vsel %vm237, 1, 0
    %v390 = vsel %vm238, 1, 0
    %v391 = vsel %vm239, 1, 0
    %v392 = vsel %vm240, 1, 0
    %vm393 = vcmp.eq.s32.totalorder %v389, 1
    %vm394 = vcmp.eq.s32.totalorder %v390, 1
    %vm395 = vcmp.eq.s32.totalorder %v391, 1
    %vm396 = vcmp.eq.s32.totalorder %v392, 1
    %v397 = vsel %vm393, %v388, 0.0
    %v398 = vsel %vm394, %v387, 0.0
    %v399 = vsel %vm395, %v386, 0.0
    %v400 = vsel %vm396, %v385, 0.0
    %v402 = vlaneseq
    %v403 = vshrl.u32 %v402, 7
    %v404 = vsub.s32 0, %v403
    %v405 = vrot.slane %v291, %v404
    %v407 = vadd.f32 %v405, %v397
    %v408 = vadd.f32 %v405, %v398
    %v409 = vadd.f32 %v405, %v399
    %v410 = vadd.f32 %v405, %v400
    %s411 = scalar_lea.vmem [#allocation7], 32
    %v412 = vld [vmem:[%s411] sm:$0xf]
    %v413 = vld [vmem:[%s411 + $0x4] sm:$0xf]
    %v414 = vld [vmem:[%s411 + $0x8] sm:$0xf]
    %v415 = vld [vmem:[%s411 + $0xc] sm:$0xf]
    %v416 = vld [vmem:[%s411 + $0x10] sm:$0xf]
    %v417 = vld [vmem:[%s411 + $0x14] sm:$0xf]
    %v418 = vld [vmem:[%s411 + $0x18] sm:$0xf]
    %v419 = vld [vmem:[%s411 + $0x1c] sm:$0xf]
    %v428 = vunpack.c.l.b16 %v412
    %v429 = vunpack.c.l.b16 %v413
    %v430 = vunpack.c.l.b16 %v414
    %v431 = vunpack.c.l.b16 %v415
    %v432 = vunpack.c.l.b16 %v416
    %v433 = vunpack.c.l.b16 %v417
    %v434 = vunpack.c.l.b16 %v418
    %v435 = vunpack.c.l.b16 %v419
    %v436 = vpack.c.b16 %v429, %v428
    %v437 = vpack.c.b16 %v431, %v430
    %v438 = vpack.c.b16 %v433, %v432
    %v439 = vpack.c.b16 %v435, %v434
    %444 = vmatprep.subr.bf16.mxu0 0
    %445 = vmatpush1.bf16.msra.mxu0 %v436
    %446 = vmatprep.subr.bf16.mxu0 0
    %447 = vmatpush1.bf16.msra.mxu0 %v437
    %448 = vmatprep.subr.bf16.mxu0 0
    %449 = vmatpush1.bf16.msra.mxu0 %v438
    %450 = vmatprep.subr.bf16.mxu0 0
    %451 = vmatpush1.bf16.msra.mxu0 %v439
    %452 = vmatprep.subr.bf16.mxu0 0
    %453 = vmatpush1.bf16.msra.mxu0 0
    %454 = vmatprep.subr.bf16.mxu0 0
    %455 = vmatpush1.bf16.msra.mxu0 0
    %456 = vmatprep.subr.bf16.mxu0 0
    %457 = vmatpush1.bf16.msra.mxu0 0
    %458 = vmatprep.subr.bf16.mxu0 0
    %459 = vmatpush1.bf16.msra.mxu0 0
    %460 = vmatprep.subr.bf16.mxu0 0
    %461 = vmatpush1.bf16.msra.mxu0 0
    %462 = vmatprep.subr.bf16.mxu0 0
    %463 = vmatpush1.bf16.msra.mxu0 0
    %464 = vmatprep.subr.bf16.mxu0 0
    %465 = vmatpush1.bf16.msra.mxu0 0
    %466 = vmatprep.subr.bf16.mxu0 0
    %467 = vmatpush1.bf16.msra.mxu0 0
    %468 = vmatprep.subr.bf16.mxu0 0
    %469 = vmatpush1.bf16.msra.mxu0 0
    %470 = vmatprep.subr.bf16.mxu0 0
    %471 = vmatpush1.bf16.msra.mxu0 0
    %472 = vmatprep.subr.bf16.mxu0 0
    %473 = vmatpush1.bf16.msra.mxu0 0
    %474 = vmatprep.subr.bf16.mxu0 0
    %475 = vmatpush1.bf16.msra.mxu0 0
    %476 = vmatprep.mubr.bf16.mxu0 0
    %477 = vmatmul.mubr.bf16.gmra.mrb[0].mxu0 %v326
    %v478 = vpop.f32.mrb[0].mxu0
    %v479 = vadd.f32 0.0, %v478
    %v480 = vpop.f32.mrb[0].mxu0
    %v481 = vpop.f32.mrb[0].mxu0
    %v482 = vadd.f32 0.0, %v481
    %v483 = vpop.f32.mrb[0].mxu0
    %484 = vmatprep.mubr.bf16.mxu0 0
    %485 = vmatmul.mubr.bf16.gmra.mrb[0].mxu0 %v329
    %v486 = vpop.f32.mrb[0].mxu0
    %v487 = vadd.f32 0.0, %v486
    %v488 = vpop.f32.mrb[0].mxu0
    %v489 = vpop.f32.mrb[0].mxu0
    %v490 = vadd.f32 0.0, %v489
    %v491 = vpop.f32.mrb[0].mxu0
    %492 = vdwg.mxu0
    %v493 = vrot.slane %v479, 7
    %v494 = vrot.slane %v482, 7
    %v495 = vrot.slane %v487, 7
    %v496 = vrot.slane %v490, 7
    %vm497 = vcmp.lt.s32.totalorder %v173, 1
    %v498 = vsel %vm497, %v495, %v496
    %v499 = vsel %vm497, %v494, %v495
    %v500 = vsel %vm497, %v493, %v494
    %v501 = vsel %vm497, %v496, %v493
    %v502 = vsel %vm253, 1, 0
    %v503 = vsel %vm254, 1, 0
    %v504 = vsel %vm255, 1, 0
    %v505 = vsel %vm256, 1, 0
    %vm506 = vcmp.eq.s32.totalorder %v502, 1
    %vm507 = vcmp.eq.s32.totalorder %v503, 1
    %vm508 = vcmp.eq.s32.totalorder %v504, 1
    %vm509 = vcmp.eq.s32.totalorder %v505, 1
    %v510 = vsel %vm506, %v501, 0.0
    %v511 = vsel %vm507, %v500, 0.0
    %v512 = vsel %vm508, %v499, 0.0
    %v513 = vsel %vm509, %v498, 0.0
    %v514 = vadd.f32 %v407, %v510
    %v515 = vadd.f32 %v408, %v511
    %v516 = vadd.f32 %v409, %v512
    %v517 = vadd.f32 %v410, %v513
    %s518 = scalar_lea.vmem [#allocation7], 64
    %v519 = vld [vmem:[%s518] sm:$0xf]
    %v520 = vld [vmem:[%s518 + $0x4] sm:$0xf]
    %v521 = vld [vmem:[%s518 + $0x8] sm:$0xf]
    %v522 = vld [vmem:[%s518 + $0xc] sm:$0xf]
    %v523 = vld [vmem:[%s518 + $0x10] sm:$0xf]
    %v524 = vld [vmem:[%s518 + $0x14] sm:$0xf]
    %v525 = vld [vmem:[%s518 + $0x18] sm:$0xf]
    %v526 = vld [vmem:[%s518 + $0x1c] sm:$0xf]
    %v535 = vunpack.c.l.b16 %v519
    %v536 = vunpack.c.l.b16 %v520
    %v537 = vunpack.c.l.b16 %v521
    %v538 = vunpack.c.l.b16 %v522
    %v539 = vunpack.c.l.b16 %v523
    %v540 = vunpack.c.l.b16 %v524
    %v541 = vunpack.c.l.b16 %v525
    %v542 = vunpack.c.l.b16 %v526
    %v543 = vpack.c.b16 %v536, %v535
    %v544 = vpack.c.b16 %v538, %v537
    %v545 = vpack.c.b16 %v540, %v539
    %v546 = vpack.c.b16 %v542, %v541
    %551 = vmatprep.subr.bf16.mxu0 0
    %552 = vmatpush1.bf16.msra.mxu0 %v543
    %553 = vmatprep.subr.bf16.mxu0 0
    %554 = vmatpush1.bf16.msra.mxu0 %v544
    %555 = vmatprep.subr.bf16.mxu0 0
    %556 = vmatpush1.bf16.msra.mxu0 %v545
    %557 = vmatprep.subr.bf16.mxu0 0
    %558 = vmatpush1.bf16.msra.mxu0 %v546
    %559 = vmatprep.subr.bf16.mxu0 0
    %560 = vmatpush1.bf16.msra.mxu0 0
    %561 = vmatprep.subr.bf16.mxu0 0
    %562 = vmatpush1.bf16.msra.mxu0 0
    %563 = vmatprep.subr.bf16.mxu0 0
    %564 = vmatpush1.bf16.msra.mxu0 0
    %565 = vmatprep.subr.bf16.mxu0 0
    %566 = vmatpush1.bf16.msra.mxu0 0
    %567 = vmatprep.subr.bf16.mxu0 0
    %568 = vmatpush1.bf16.msra.mxu0 0
    %569 = vmatprep.subr.bf16.mxu0 0
    %570 = vmatpush1.bf16.msra.mxu0 0
    %571 = vmatprep.subr.bf16.mxu0 0
    %572 = vmatpush1.bf16.msra.mxu0 0
    %573 = vmatprep.subr.bf16.mxu0 0
    %574 = vmatpush1.bf16.msra.mxu0 0
    %575 = vmatprep.subr.bf16.mxu0 0
    %576 = vmatpush1.bf16.msra.mxu0 0
    %577 = vmatprep.subr.bf16.mxu0 0
    %578 = vmatpush1.bf16.msra.mxu0 0
    %579 = vmatprep.subr.bf16.mxu0 0
    %580 = vmatpush1.bf16.msra.mxu0 0
    %581 = vmatprep.subr.bf16.mxu0 0
    %582 = vmatpush1.bf16.msra.mxu0 0
    %583 = vmatprep.mubr.bf16.mxu0 0
    %584 = vmatmul.mubr.bf16.gmra.mrb[0].mxu0 %v326
    %v585 = vpop.f32.mrb[0].mxu0
    %v586 = vadd.f32 0.0, %v585
    %v587 = vpop.f32.mrb[0].mxu0
    %v588 = vpop.f32.mrb[0].mxu0
    %v589 = vadd.f32 0.0, %v588
    %v590 = vpop.f32.mrb[0].mxu0
    %591 = vmatprep.mubr.bf16.mxu0 0
    %592 = vmatmul.mubr.bf16.gmra.mrb[0].mxu0 %v329
    %v593 = vpop.f32.mrb[0].mxu0
    %v594 = vadd.f32 0.0, %v593
    %v595 = vpop.f32.mrb[0].mxu0
    %v596 = vpop.f32.mrb[0].mxu0
    %v597 = vadd.f32 0.0, %v596
    %v598 = vpop.f32.mrb[0].mxu0
    %599 = vdwg.mxu0
    %v600 = vadd.f32 %v514, %v586
    %v601 = vadd.f32 %v515, %v589
    %v602 = vadd.f32 %v516, %v594
    %v603 = vadd.f32 %v517, %v597
    %s604 = scalar_lea.vmem [#allocation7], 96
    %v605 = vld [vmem:[%s604] sm:$0xf]
    %v606 = vld [vmem:[%s604 + $0x4] sm:$0xf]
    %v607 = vld [vmem:[%s604 + $0x8] sm:$0xf]
    %v608 = vld [vmem:[%s604 + $0xc] sm:$0xf]
    %v609 = vld [vmem:[%s604 + $0x10] sm:$0xf]
    %v610 = vld [vmem:[%s604 + $0x14] sm:$0xf]
    %v611 = vld [vmem:[%s604 + $0x18] sm:$0xf]
    %v612 = vld [vmem:[%s604 + $0x1c] sm:$0xf]
    %v621 = vunpack.c.l.b16 %v605
    %v622 = vunpack.c.l.b16 %v606
    %v623 = vunpack.c.l.b16 %v607
    %v624 = vunpack.c.l.b16 %v608
    %v625 = vunpack.c.l.b16 %v609
    %v626 = vunpack.c.l.b16 %v610
    %v627 = vunpack.c.l.b16 %v611
    %v628 = vunpack.c.l.b16 %v612
    %v629 = vpack.c.b16 %v622, %v621
    %v630 = vpack.c.b16 %v624, %v623
    %v631 = vpack.c.b16 %v626, %v625
    %v632 = vpack.c.b16 %v628, %v627
    %637 = vmatprep.subr.bf16.mxu0 0
    %638 = vmatpush1.bf16.msra.mxu0 %v629
    %639 = vmatprep.subr.bf16.mxu0 0
    %640 = vmatpush1.bf16.msra.mxu0 %v630
    %641 = vmatprep.subr.bf16.mxu0 0
    %642 = vmatpush1.bf16.msra.mxu0 %v631
    %643 = vmatprep.subr.bf16.mxu0 0
    %644 = vmatpush1.bf16.msra.mxu0 %v632
    %645 = vmatprep.subr.bf16.mxu0 0
    %646 = vmatpush1.bf16.msra.mxu0 0
    %647 = vmatprep.subr.bf16.mxu0 0
    %648 = vmatpush1.bf16.msra.mxu0 0
    %649 = vmatprep.subr.bf16.mxu0 0
    %650 = vmatpush1.bf16.msra.mxu0 0
    %651 = vmatprep.subr.bf16.mxu0 0
    %652 = vmatpush1.bf16.msra.mxu0 0
    %653 = vmatprep.subr.bf16.mxu0 0
    %654 = vmatpush1.bf16.msra.mxu0 0
    %655 = vmatprep.subr.bf16.mxu0 0
    %656 = vmatpush1.bf16.msra.mxu0 0
    %657 = vmatprep.subr.bf16.mxu0 0
    %658 = vmatpush1.bf16.msra.mxu0 0
    %659 = vmatprep.subr.bf16.mxu0 0
    %660 = vmatpush1.bf16.msra.mxu0 0
    %661 = vmatprep.subr.bf16.mxu0 0
    %662 = vmatpush1.bf16.msra.mxu0 0
    %663 = vmatprep.subr.bf16.mxu0 0
    %664 = vmatpush1.bf16.msra.mxu0 0
    %665 = vmatprep.subr.bf16.mxu0 0
    %666 = vmatpush1.bf16.msra.mxu0 0
    %667 = vmatprep.subr.bf16.mxu0 0
    %668 = vmatpush1.bf16.msra.mxu0 0
    %669 = vmatprep.mubr.bf16.mxu0 0
    %670 = vmatmul.mubr.bf16.gmra.mrb[0].mxu0 %v326
    %v671 = vpop.f32.mrb[0].mxu0
    %v672 = vadd.f32 0.0, %v671
    %v673 = vpop.f32.mrb[0].mxu0
    %v674 = vpop.f32.mrb[0].mxu0
    %v675 = vadd.f32 0.0, %v674
    %v676 = vpop.f32.mrb[0].mxu0
    %677 = vmatprep.mubr.bf16.mxu0 0
    %678 = vmatmul.mubr.bf16.gmra.mrb[0].mxu0 %v329
    %v679 = vpop.f32.mrb[0].mxu0
    %v680 = vadd.f32 0.0, %v679
    %v681 = vpop.f32.mrb[0].mxu0
    %v682 = vpop.f32.mrb[0].mxu0
    %v683 = vadd.f32 0.0, %v682
    %v684 = vpop.f32.mrb[0].mxu0
    %685 = vdwg.mxu0
    %v686 = vrot.slane %v672, 1
    %v687 = vrot.slane %v675, 1
    %v688 = vrot.slane %v680, 1
    %v689 = vrot.slane %v683, 1
    %vm690 = vcmp.lt.s32.totalorder %v173, 7
    %v691 = vsel %vm690, %v688, %v689
    %v692 = vsel %vm690, %v687, %v688
    %v693 = vsel %vm690, %v686, %v687
    %v694 = vsel %vm690, %v689, %v686
    %v695 = vsel %vm269, 1, 0
    %v696 = vsel %vm270, 1, 0
    %v697 = vsel %vm271, 1, 0
    %v698 = vsel %vm272, 1, 0
    %vm699 = vcmp.eq.s32.totalorder %v695, 1
    %vm700 = vcmp.eq.s32.totalorder %v696, 1
    %vm701 = vcmp.eq.s32.totalorder %v697, 1
    %vm702 = vcmp.eq.s32.totalorder %v698, 1
    %v703 = vsel %vm699, %v693, 0.0
    %v704 = vsel %vm700, %v692, 0.0
    %v705 = vsel %vm701, %v691, 0.0
    %v706 = vsel %vm702, %v694, 0.0
    %v707 = vadd.f32 %v600, %v703
    %v708 = vadd.f32 %v601, %v704
    %v709 = vadd.f32 %v602, %v705
    %v710 = vadd.f32 %v603, %v706
    %s711 = scalar_lea.vmem [#allocation7], 128
    %v712 = vld [vmem:[%s711] sm:$0xf]
    %v713 = vld [vmem:[%s711 + $0x4] sm:$0xf]
    %v714 = vld [vmem:[%s711 + $0x8] sm:$0xf]
    %v715 = vld [vmem:[%s711 + $0xc] sm:$0xf]
    %v716 = vld [vmem:[%s711 + $0x10] sm:$0xf]
    %v717 = vld [vmem:[%s711 + $0x14] sm:$0xf]
    %v718 = vld [vmem:[%s711 + $0x18] sm:$0xf]
    %v719 = vld [vmem:[%s711 + $0x1c] sm:$0xf]
    %v728 = vunpack.c.l.b16 %v712
    %v729 = vunpack.c.l.b16 %v713
    %v730 = vunpack.c.l.b16 %v714
    %v731 = vunpack.c.l.b16 %v715
    %v732 = vunpack.c.l.b16 %v716
    %v733 = vunpack.c.l.b16 %v717
    %v734 = vunpack.c.l.b16 %v718
    %v735 = vunpack.c.l.b16 %v719
    %v736 = vpack.c.b16 %v729, %v728
    %v737 = vpack.c.b16 %v731, %v730
    %v738 = vpack.c.b16 %v733, %v732
    %v739 = vpack.c.b16 %v735, %v734
    %744 = vmatprep.subr.bf16.mxu0 0
    %745 = vmatpush1.bf16.msra.mxu0 %v736
    %746 = vmatprep.subr.bf16.mxu0 0
    %747 = vmatpush1.bf16.msra.mxu0 %v737
    %748 = vmatprep.subr.bf16.mxu0 0
    %749 = vmatpush1.bf16.msra.mxu0 %v738
    %750 = vmatprep.subr.bf16.mxu0 0
    %751 = vmatpush1.bf16.msra.mxu0 %v739
    %752 = vmatprep.subr.bf16.mxu0 0
    %753 = vmatpush1.bf16.msra.mxu0 0
    %754 = vmatprep.subr.bf16.mxu0 0
    %755 = vmatpush1.bf16.msra.mxu0 0
    %756 = vmatprep.subr.bf16.mxu0 0
    %757 = vmatpush1.bf16.msra.mxu0 0
    %758 = vmatprep.subr.bf16.mxu0 0
    %759 = vmatpush1.bf16.msra.mxu0 0
    %760 = vmatprep.subr.bf16.mxu0 0
    %761 = vmatpush1.bf16.msra.mxu0 0
    %762 = vmatprep.subr.bf16.mxu0 0
    %763 = vmatpush1.bf16.msra.mxu0 0
    %764 = vmatprep.subr.bf16.mxu0 0
    %765 = vmatpush1.bf16.msra.mxu0 0
    %766 = vmatprep.subr.bf16.mxu0 0
    %767 = vmatpush1.bf16.msra.mxu0 0
    %768 = vmatprep.subr.bf16.mxu0 0
    %769 = vmatpush1.bf16.msra.mxu0 0
    %770 = vmatprep.subr.bf16.mxu0 0
    %771 = vmatpush1.bf16.msra.mxu0 0
    %772 = vmatprep.subr.bf16.mxu0 0
    %773 = vmatpush1.bf16.msra.mxu0 0
    %774 = vmatprep.subr.bf16.mxu0 0
    %775 = vmatpush1.bf16.msra.mxu0 0
    %776 = vmatprep.mubr.bf16.mxu0 0
    %777 = vmatmul.mubr.bf16.gmra.mrb[0].mxu0 %v326
    %v778 = vpop.f32.mrb[0].mxu0
    %v779 = vadd.f32 0.0, %v778
    %v780 = vpop.f32.mrb[0].mxu0
    %v781 = vpop.f32.mrb[0].mxu0
    %v782 = vadd.f32 0.0, %v781
    %v783 = vpop.f32.mrb[0].mxu0
    %784 = vmatprep.mubr.bf16.mxu0 0
    %785 = vmatmul.mubr.bf16.gmra.mrb[0].mxu0 %v329
    %v786 = vpop.f32.mrb[0].mxu0
    %v787 = vadd.f32 0.0, %v786
    %v788 = vpop.f32.mrb[0].mxu0
    %v789 = vpop.f32.mrb[0].mxu0
    %v790 = vadd.f32 0.0, %v789
    %v791 = vpop.f32.mrb[0].mxu0
    %792 = vdwg.mxu0
    %v793 = vrot.slane %v779, 2
    %v794 = vrot.slane %v782, 2
    %v795 = vrot.slane %v787, 2
    %v796 = vrot.slane %v790, 2
    %vm797 = vcmp.lt.s32.totalorder %v173, 6
    %v798 = vsel %vm797, %v795, %v796
    %v799 = vsel %vm797, %v794, %v795
    %v800 = vsel %vm797, %v793, %v794
    %v801 = vsel %vm797, %v796, %v793
    %v802 = vsel %vm285, 1, 0
    %v803 = vsel %vm286, 1, 0
    %v804 = vsel %vm287, 1, 0
    %v805 = vsel %vm288, 1, 0
    %vm806 = vcmp.eq.s32.totalorder %v802, 1
    %vm807 = vcmp.eq.s32.totalorder %v803, 1
    %vm808 = vcmp.eq.s32.totalorder %v804, 1
    %vm809 = vcmp.eq.s32.totalorder %v805, 1
    %v810 = vsel %vm806, %v800, 0.0
    %v811 = vsel %vm807, %v799, 0.0
    %v812 = vsel %vm808, %v798, 0.0
    %v813 = vsel %vm809, %v801, 0.0
    %v814 = vadd.f32 %v707, %v810
    %v815 = vadd.f32 %v708, %v811
    %v816 = vadd.f32 %v709, %v812
    %v817 = vadd.f32 %v710, %v813
    %v818 = vxor.u32 %v814, 2147483648
    %v819 = vxor.u32 %v815, 2147483648
    %v820 = vxor.u32 %v816, 2147483648
    %v821 = vxor.u32 %v817, 2147483648
    %v822 = vmul.f32 %v818, 1.442695
    %v823 = vpow.pop %v822
    %v824 = vmul.f32 %v819, 1.442695
    %v825 = vpow.pop %v824
    %v826 = vmul.f32 %v820, 1.442695
    %v827 = vpow.pop %v826
    %v828 = vmul.f32 %v821, 1.442695
    %v829 = vpow.pop %v828
    %v830 = vadd.f32 %v823, 1.0
    %v831 = vadd.f32 %v825, 1.0
    %v832 = vadd.f32 %v827, 1.0
    %v833 = vadd.f32 %v829, 1.0
    %v834 = vrcp.pop %v830
    %v835 = vmul.f32 1.0, %v834
    %v836 = vrcp.pop %v831
    %v837 = vmul.f32 1.0, %v836
    %v838 = vrcp.pop %v832
    %v839 = vmul.f32 1.0, %v838
    %v840 = vrcp.pop %v833
    %v841 = vmul.f32 1.0, %v840
    %842 = vrot.lane.b32.xlu0 %v835, 64
    %v843 = vpop.permute.xlu0 %842
    %844 = vrot.lane.b32.xlu0 %v837, 64
    %v845 = vpop.permute.xlu0 %844
    %846 = vrot.lane.b32.xlu0 %v839, 64
    %v847 = vpop.permute.xlu0 %846
    %848 = vrot.lane.b32.xlu0 %v841, 64
    %v849 = vpop.permute.xlu0 %848
    %v850 = vmul.f32 %v814, %v843
    %v851 = vmul.f32 %v815, %v845
    %v852 = vmul.f32 %v816, %v847
    %v853 = vmul.f32 %v817, %v849
    %v854 = vadd.f32 %v850, %v168
    %v855 = vadd.f32 %v851, %v169
    %v856 = vadd.f32 %v852, %v170
    %v857 = vadd.f32 %v853, %v171
    %v858 = vmul.f32 %v854, 0.70710677
    %v859 = vmul.f32 %v855, 0.70710677
    %v860 = vmul.f32 %v856, 0.70710677
    %v861 = vmul.f32 %v857, 0.70710677
    %v862 = vpack.c.bf16 %v859, %v858
    %v863 = vpack.c.bf16 %v861, %v860
    %s864 = scalar_lea.vmem %s4, 1
    %v865 = vld [vmem:[%s864] sm:$0x1]
    %s866 = scalar_lea.vmem [#allocation7], 160
    %v867 = vld [vmem:[%s866] sm:$0xf]
    %v868 = vld [vmem:[%s866 + $0x4] sm:$0xf]
    %v869 = vld [vmem:[%s866 + $0x8] sm:$0xf]
    %v870 = vld [vmem:[%s866 + $0xc] sm:$0xf]
    %v871 = vld [vmem:[%s866 + $0x10] sm:$0xf]
    %v872 = vld [vmem:[%s866 + $0x14] sm:$0xf]
    %v873 = vld [vmem:[%s866 + $0x18] sm:$0xf]
    %v874 = vld [vmem:[%s866 + $0x1c] sm:$0xf]
    %v883 = vunpack.c.l.b16 %v867
    %v884 = vunpack.c.l.b16 %v868
    %v885 = vunpack.c.l.b16 %v869
    %v886 = vunpack.c.l.b16 %v870
    %v887 = vunpack.c.l.b16 %v871
    %v888 = vunpack.c.l.b16 %v872
    %v889 = vunpack.c.l.b16 %v873
    %v890 = vunpack.c.l.b16 %v874
    %v891 = vpack.c.b16 %v884, %v883
    %v892 = vpack.c.b16 %v886, %v885
    %v893 = vpack.c.b16 %v888, %v887
    %v894 = vpack.c.b16 %v890, %v889
    %v900 = vsel %vm324, %v862, 0
    %v903 = vsel %vm324, %v863, 0
    %905 = vmatprep.subr.bf16.mxu0 0
    %906 = vmatpush1.bf16.msra.mxu0 %v891
    %907 = vmatprep.subr.bf16.mxu0 0
    %908 = vmatpush1.bf16.msra.mxu0 %v892
    %909 = vmatprep.subr.bf16.mxu0 0
    %910 = vmatpush1.bf16.msra.mxu0 %v893
    %911 = vmatprep.subr.bf16.mxu0 0
    %912 = vmatpush1.bf16.msra.mxu0 %v894
    %913 = vmatprep.subr.bf16.mxu0 0
    %914 = vmatpush1.bf16.msra.mxu0 0
    %915 = vmatprep.subr.bf16.mxu0 0
    %916 = vmatpush1.bf16.msra.mxu0 0
    %917 = vmatprep.subr.bf16.mxu0 0
    %918 = vmatpush1.bf16.msra.mxu0 0
    %919 = vmatprep.subr.bf16.mxu0 0
    %920 = vmatpush1.bf16.msra.mxu0 0
    %921 = vmatprep.subr.bf16.mxu0 0
    %922 = vmatpush1.bf16.msra.mxu0 0
    %923 = vmatprep.subr.bf16.mxu0 0
    %924 = vmatpush1.bf16.msra.mxu0 0
    %925 = vmatprep.subr.bf16.mxu0 0
    %926 = vmatpush1.bf16.msra.mxu0 0
    %927 = vmatprep.subr.bf16.mxu0 0
    %928 = vmatpush1.bf16.msra.mxu0 0
    %929 = vmatprep.subr.bf16.mxu0 0
    %930 = vmatpush1.bf16.msra.mxu0 0
    %931 = vmatprep.subr.bf16.mxu0 0
    %932 = vmatpush1.bf16.msra.mxu0 0
    %933 = vmatprep.subr.bf16.mxu0 0
    %934 = vmatpush1.bf16.msra.mxu0 0
    %935 = vmatprep.subr.bf16.mxu0 0
    %936 = vmatpush1.bf16.msra.mxu0 0
    %937 = vmatprep.mubr.bf16.mxu0 0
    %938 = vmatmul.mubr.bf16.gmra.mrb[0].mxu0 %v900
    %v939 = vpop.f32.mrb[0].mxu0
    %v940 = vadd.f32 0.0, %v939
    %v941 = vpop.f32.mrb[0].mxu0
    %v942 = vpop.f32.mrb[0].mxu0
    %v943 = vadd.f32 0.0, %v942
    %v944 = vpop.f32.mrb[0].mxu0
    %945 = vmatprep.mubr.bf16.mxu0 0
    %946 = vmatmul.mubr.bf16.gmra.mrb[0].mxu0 %v903
    %v947 = vpop.f32.mrb[0].mxu0
    %v948 = vadd.f32 0.0, %v947
    %v949 = vpop.f32.mrb[0].mxu0
    %v950 = vpop.f32.mrb[0].mxu0
    %v951 = vadd.f32 0.0, %v950
    %v952 = vpop.f32.mrb[0].mxu0
    %953 = vdwg.mxu0
    %v954 = vrot.slane %v940, 6
    %v955 = vrot.slane %v943, 6
    %v956 = vrot.slane %v948, 6
    %v957 = vrot.slane %v951, 6
    %v958 = vsel %vm384, %v956, %v957
    %v959 = vsel %vm384, %v955, %v956
    %v960 = vsel %vm384, %v954, %v955
    %v961 = vsel %vm384, %v957, %v954
    %v962 = vsel %vm393, %v961, 0.0
    %v963 = vsel %vm394, %v960, 0.0
    %v964 = vsel %vm395, %v959, 0.0
    %v965 = vsel %vm396, %v958, 0.0
    %v967 = vlaneseq
    %v968 = vshrl.u32 %v967, 7
    %v969 = vsub.s32 0, %v968
    %v970 = vrot.slane %v865, %v969
    %v972 = vadd.f32 %v970, %v962
    %v973 = vadd.f32 %v970, %v963
    %v974 = vadd.f32 %v970, %v964
    %v975 = vadd.f32 %v970, %v965
    %s976 = scalar_lea.vmem [#allocation7], 192
    %v977 = vld [vmem:[%s976] sm:$0xf]
    %v978 = vld [vmem:[%s976 + $0x4] sm:$0xf]
    %v979 = vld [vmem:[%s976 + $0x8] sm:$0xf]
    %v980 = vld [vmem:[%s976 + $0xc] sm:$0xf]
    %v981 = vld [vmem:[%s976 + $0x10] sm:$0xf]
    %v982 = vld [vmem:[%s976 + $0x14] sm:$0xf]
    %v983 = vld [vmem:[%s976 + $0x18] sm:$0xf]
    %v984 = vld [vmem:[%s976 + $0x1c] sm:$0xf]
    %v993 = vunpack.c.l.b16 %v977
    %v994 = vunpack.c.l.b16 %v978
    %v995 = vunpack.c.l.b16 %v979
    %v996 = vunpack.c.l.b16 %v980
    %v997 = vunpack.c.l.b16 %v981
    %v998 = vunpack.c.l.b16 %v982
    %v999 = vunpack.c.l.b16 %v983
    %v1000 = vunpack.c.l.b16 %v984
    %v1001 = vpack.c.b16 %v994, %v993
    %v1002 = vpack.c.b16 %v996, %v995
    %v1003 = vpack.c.b16 %v998, %v997
    %v1004 = vpack.c.b16 %v1000, %v999
    %1009 = vmatprep.subr.bf16.mxu0 0
    %1010 = vmatpush1.bf16.msra.mxu0 %v1001
    %1011 = vmatprep.subr.bf16.mxu0 0
    %1012 = vmatpush1.bf16.msra.mxu0 %v1002
    %1013 = vmatprep.subr.bf16.mxu0 0
    %1014 = vmatpush1.bf16.msra.mxu0 %v1003
    %1015 = vmatprep.subr.bf16.mxu0 0
    %1016 = vmatpush1.bf16.msra.mxu0 %v1004
    %1017 = vmatprep.subr.bf16.mxu0 0
    %1018 = vmatpush1.bf16.msra.mxu0 0
    %1019 = vmatprep.subr.bf16.mxu0 0
    %1020 = vmatpush1.bf16.msra.mxu0 0
    %1021 = vmatprep.subr.bf16.mxu0 0
    %1022 = vmatpush1.bf16.msra.mxu0 0
    %1023 = vmatprep.subr.bf16.mxu0 0
    %1024 = vmatpush1.bf16.msra.mxu0 0
    %1025 = vmatprep.subr.bf16.mxu0 0
    %1026 = vmatpush1.bf16.msra.mxu0 0
    %1027 = vmatprep.subr.bf16.mxu0 0
    %1028 = vmatpush1.bf16.msra.mxu0 0
    %1029 = vmatprep.subr.bf16.mxu0 0
    %1030 = vmatpush1.bf16.msra.mxu0 0
    %1031 = vmatprep.subr.bf16.mxu0 0
    %1032 = vmatpush1.bf16.msra.mxu0 0
    %1033 = vmatprep.subr.bf16.mxu0 0
    %1034 = vmatpush1.bf16.msra.mxu0 0
    %1035 = vmatprep.subr.bf16.mxu0 0
    %1036 = vmatpush1.bf16.msra.mxu0 0
    %1037 = vmatprep.subr.bf16.mxu0 0
    %1038 = vmatpush1.bf16.msra.mxu0 0
    %1039 = vmatprep.subr.bf16.mxu0 0
    %1040 = vmatpush1.bf16.msra.mxu0 0
    %1041 = vmatprep.mubr.bf16.mxu0 0
    %1042 = vmatmul.mubr.bf16.gmra.mrb[0].mxu0 %v900
    %v1043 = vpop.f32.mrb[0].mxu0
    %v1044 = vadd.f32 0.0, %v1043
    %v1045 = vpop.f32.mrb[0].mxu0
    %v1046 = vpop.f32.mrb[0].mxu0
    %v1047 = vadd.f32 0.0, %v1046
    %v1048 = vpop.f32.mrb[0].mxu0
    %1049 = vmatprep.mubr.bf16.mxu0 0
    %1050 = vmatmul.mubr.bf16.gmra.mrb[0].mxu0 %v903
    %v1051 = vpop.f32.mrb[0].mxu0
    %v1052 = vadd.f32 0.0, %v1051
    %v1053 = vpop.f32.mrb[0].mxu0
    %v1054 = vpop.f32.mrb[0].mxu0
    %v1055 = vadd.f32 0.0, %v1054
    %v1056 = vpop.f32.mrb[0].mxu0
    %1057 = vdwg.mxu0
    %v1058 = vrot.slane %v1044, 7
    %v1059 = vrot.slane %v1047, 7
    %v1060 = vrot.slane %v1052, 7
    %v1061 = vrot.slane %v1055, 7
    %v1062 = vsel %vm497, %v1060, %v1061
    %v1063 = vsel %vm497, %v1059, %v1060
    %v1064 = vsel %vm497, %v1058, %v1059
    %v1065 = vsel %vm497, %v1061, %v1058
    %v1066 = vsel %vm506, %v1065, 0.0
    %v1067 = vsel %vm507, %v1064, 0.0
    %v1068 = vsel %vm508, %v1063, 0.0
    %v1069 = vsel %vm509, %v1062, 0.0
    %v1070 = vadd.f32 %v972, %v1066
    %v1071 = vadd.f32 %v973, %v1067
    %v1072 = vadd.f32 %v974, %v1068
    %v1073 = vadd.f32 %v975, %v1069
    %s1074 = scalar_lea.vmem [#allocation7], 224
    %v1075 = vld [vmem:[%s1074] sm:$0xf]
    %v1076 = vld [vmem:[%s1074 + $0x4] sm:$0xf]
    %v1077 = vld [vmem:[%s1074 + $0x8] sm:$0xf]
    %v1078 = vld [vmem:[%s1074 + $0xc] sm:$0xf]
    %v1079 = vld [vmem:[%s1074 + $0x10] sm:$0xf]
    %v1080 = vld [vmem:[%s1074 + $0x14] sm:$0xf]
    %v1081 = vld [vmem:[%s1074 + $0x18] sm:$0xf]
    %v1082 = vld [vmem:[%s1074 + $0x1c] sm:$0xf]
    %v1091 = vunpack.c.l.b16 %v1075
    %v1092 = vunpack.c.l.b16 %v1076
    %v1093 = vunpack.c.l.b16 %v1077
    %v1094 = vunpack.c.l.b16 %v1078
    %v1095 = vunpack.c.l.b16 %v1079
    %v1096 = vunpack.c.l.b16 %v1080
    %v1097 = vunpack.c.l.b16 %v1081
    %v1098 = vunpack.c.l.b16 %v1082
    %v1099 = vpack.c.b16 %v1092, %v1091
    %v1100 = vpack.c.b16 %v1094, %v1093
    %v1101 = vpack.c.b16 %v1096, %v1095
    %v1102 = vpack.c.b16 %v1098, %v1097
    %1107 = vmatprep.subr.bf16.mxu0 0
    %1108 = vmatpush1.bf16.msra.mxu0 %v1099
    %1109 = vmatprep.subr.bf16.mxu0 0
    %1110 = vmatpush1.bf16.msra.mxu0 %v1100
    %1111 = vmatprep.subr.bf16.mxu0 0
    %1112 = vmatpush1.bf16.msra.mxu0 %v1101
    %1113 = vmatprep.subr.bf16.mxu0 0
    %1114 = vmatpush1.bf16.msra.mxu0 %v1102
    %1115 = vmatprep.subr.bf16.mxu0 0
    %1116 = vmatpush1.bf16.msra.mxu0 0
    %1117 = vmatprep.subr.bf16.mxu0 0
    %1118 = vmatpush1.bf16.msra.mxu0 0
    %1119 = vmatprep.subr.bf16.mxu0 0
    %1120 = vmatpush1.bf16.msra.mxu0 0
    %1121 = vmatprep.subr.bf16.mxu0 0
    %1122 = vmatpush1.bf16.msra.mxu0 0
    %1123 = vmatprep.subr.bf16.mxu0 0
    %1124 = vmatpush1.bf16.msra.mxu0 0
    %1125 = vmatprep.subr.bf16.mxu0 0
    %1126 = vmatpush1.bf16.msra.mxu0 0
    %1127 = vmatprep.subr.bf16.mxu0 0
    %1128 = vmatpush1.bf16.msra.mxu0 0
    %1129 = vmatprep.subr.bf16.mxu0 0
    %1130 = vmatpush1.bf16.msra.mxu0 0
    %1131 = vmatprep.subr.bf16.mxu0 0
    %1132 = vmatpush1.bf16.msra.mxu0 0
    %1133 = vmatprep.subr.bf16.mxu0 0
    %1134 = vmatpush1.bf16.msra.mxu0 0
    %1135 = vmatprep.subr.bf16.mxu0 0
    %1136 = vmatpush1.bf16.msra.mxu0 0
    %1137 = vmatprep.subr.bf16.mxu0 0
    %1138 = vmatpush1.bf16.msra.mxu0 0
    %1139 = vmatprep.mubr.bf16.mxu0 0
    %1140 = vmatmul.mubr.bf16.gmra.mrb[0].mxu0 %v900
    %v1141 = vpop.f32.mrb[0].mxu0
    %v1142 = vadd.f32 0.0, %v1141
    %v1143 = vpop.f32.mrb[0].mxu0
    %v1144 = vpop.f32.mrb[0].mxu0
    %v1145 = vadd.f32 0.0, %v1144
    %v1146 = vpop.f32.mrb[0].mxu0
    %1147 = vmatprep.mubr.bf16.mxu0 0
    %1148 = vmatmul.mubr.bf16.gmra.mrb[0].mxu0 %v903
    %v1149 = vpop.f32.mrb[0].mxu0
    %v1150 = vadd.f32 0.0, %v1149
    %v1151 = vpop.f32.mrb[0].mxu0
    %v1152 = vpop.f32.mrb[0].mxu0
    %v1153 = vadd.f32 0.0, %v1152
    %v1154 = vpop.f32.mrb[0].mxu0
    %1155 = vdwg.mxu0
    %v1156 = vadd.f32 %v1070, %v1142
    %v1157 = vadd.f32 %v1071, %v1145
    %v1158 = vadd.f32 %v1072, %v1150
    %v1159 = vadd.f32 %v1073, %v1153
    %s1160 = scalar_lea.vmem [#allocation7], 256
    %v1161 = vld [vmem:[%s1160] sm:$0xf]
    %v1162 = vld [vmem:[%s1160 + $0x4] sm:$0xf]
    %v1163 = vld [vmem:[%s1160 + $0x8] sm:$0xf]
    %v1164 = vld [vmem:[%s1160 + $0xc] sm:$0xf]
    %v1165 = vld [vmem:[%s1160 + $0x10] sm:$0xf]
    %v1166 = vld [vmem:[%s1160 + $0x14] sm:$0xf]
    %v1167 = vld [vmem:[%s1160 + $0x18] sm:$0xf]
    %v1168 = vld [vmem:[%s1160 + $0x1c] sm:$0xf]
    %v1177 = vunpack.c.l.b16 %v1161
    %v1178 = vunpack.c.l.b16 %v1162
    %v1179 = vunpack.c.l.b16 %v1163
    %v1180 = vunpack.c.l.b16 %v1164
    %v1181 = vunpack.c.l.b16 %v1165
    %v1182 = vunpack.c.l.b16 %v1166
    %v1183 = vunpack.c.l.b16 %v1167
    %v1184 = vunpack.c.l.b16 %v1168
    %v1185 = vpack.c.b16 %v1178, %v1177
    %v1186 = vpack.c.b16 %v1180, %v1179
    %v1187 = vpack.c.b16 %v1182, %v1181
    %v1188 = vpack.c.b16 %v1184, %v1183
    %1193 = vmatprep.subr.bf16.mxu0 0
    %1194 = vmatpush1.bf16.msra.mxu0 %v1185
    %1195 = vmatprep.subr.bf16.mxu0 0
    %1196 = vmatpush1.bf16.msra.mxu0 %v1186
    %1197 = vmatprep.subr.bf16.mxu0 0
    %1198 = vmatpush1.bf16.msra.mxu0 %v1187
    %1199 = vmatprep.subr.bf16.mxu0 0
    %1200 = vmatpush1.bf16.msra.mxu0 %v1188
    %1201 = vmatprep.subr.bf16.mxu0 0
    %1202 = vmatpush1.bf16.msra.mxu0 0
    %1203 = vmatprep.subr.bf16.mxu0 0
    %1204 = vmatpush1.bf16.msra.mxu0 0
    %1205 = vmatprep.subr.bf16.mxu0 0
    %1206 = vmatpush1.bf16.msra.mxu0 0
    %1207 = vmatprep.subr.bf16.mxu0 0
    %1208 = vmatpush1.bf16.msra.mxu0 0
    %1209 = vmatprep.subr.bf16.mxu0 0
    %1210 = vmatpush1.bf16.msra.mxu0 0
    %1211 = vmatprep.subr.bf16.mxu0 0
    %1212 = vmatpush1.bf16.msra.mxu0 0
    %1213 = vmatprep.subr.bf16.mxu0 0
    %1214 = vmatpush1.bf16.msra.mxu0 0
    %1215 = vmatprep.subr.bf16.mxu0 0
    %1216 = vmatpush1.bf16.msra.mxu0 0
    %1217 = vmatprep.subr.bf16.mxu0 0
    %1218 = vmatpush1.bf16.msra.mxu0 0
    %1219 = vmatprep.subr.bf16.mxu0 0
    %1220 = vmatpush1.bf16.msra.mxu0 0
    %1221 = vmatprep.subr.bf16.mxu0 0
    %1222 = vmatpush1.bf16.msra.mxu0 0
    %1223 = vmatprep.subr.bf16.mxu0 0
    %1224 = vmatpush1.bf16.msra.mxu0 0
    %1225 = vmatprep.mubr.bf16.mxu0 0
    %1226 = vmatmul.mubr.bf16.gmra.mrb[0].mxu0 %v900
    %v1227 = vpop.f32.mrb[0].mxu0
    %v1228 = vadd.f32 0.0, %v1227
    %v1229 = vpop.f32.mrb[0].mxu0
    %v1230 = vpop.f32.mrb[0].mxu0
    %v1231 = vadd.f32 0.0, %v1230
    %v1232 = vpop.f32.mrb[0].mxu0
    %1233 = vmatprep.mubr.bf16.mxu0 0
    %1234 = vmatmul.mubr.bf16.gmra.mrb[0].mxu0 %v903
    %v1235 = vpop.f32.mrb[0].mxu0
    %v1236 = vadd.f32 0.0, %v1235
    %v1237 = vpop.f32.mrb[0].mxu0
    %v1238 = vpop.f32.mrb[0].mxu0
    %v1239 = vadd.f32 0.0, %v1238
    %v1240 = vpop.f32.mrb[0].mxu0
    %1241 = vdwg.mxu0
    %v1242 = vrot.slane %v1228, 1
    %v1243 = vrot.slane %v1231, 1
    %v1244 = vrot.slane %v1236, 1
    %v1245 = vrot.slane %v1239, 1
    %v1246 = vsel %vm690, %v1244, %v1245
    %v1247 = vsel %vm690, %v1243, %v1244
    %v1248 = vsel %vm690, %v1242, %v1243
    %v1249 = vsel %vm690, %v1245, %v1242
    %v1250 = vsel %vm699, %v1248, 0.0
    %v1251 = vsel %vm700, %v1247, 0.0
    %v1252 = vsel %vm701, %v1246, 0.0
    %v1253 = vsel %vm702, %v1249, 0.0
    %v1254 = vadd.f32 %v1156, %v1250
    %v1255 = vadd.f32 %v1157, %v1251
    %v1256 = vadd.f32 %v1158, %v1252
    %v1257 = vadd.f32 %v1159, %v1253
    %s1258 = scalar_lea.vmem [#allocation7], 288
    %v1259 = vld [vmem:[%s1258] sm:$0xf]
    %v1260 = vld [vmem:[%s1258 + $0x4] sm:$0xf]
    %v1261 = vld [vmem:[%s1258 + $0x8] sm:$0xf]
    %v1262 = vld [vmem:[%s1258 + $0xc] sm:$0xf]
    %v1263 = vld [vmem:[%s1258 + $0x10] sm:$0xf]
    %v1264 = vld [vmem:[%s1258 + $0x14] sm:$0xf]
    %v1265 = vld [vmem:[%s1258 + $0x18] sm:$0xf]
    %v1266 = vld [vmem:[%s1258 + $0x1c] sm:$0xf]
    %v1275 = vunpack.c.l.b16 %v1259
    %v1276 = vunpack.c.l.b16 %v1260
    %v1277 = vunpack.c.l.b16 %v1261
    %v1278 = vunpack.c.l.b16 %v1262
    %v1279 = vunpack.c.l.b16 %v1263
    %v1280 = vunpack.c.l.b16 %v1264
    %v1281 = vunpack.c.l.b16 %v1265
    %v1282 = vunpack.c.l.b16 %v1266
    %v1283 = vpack.c.b16 %v1276, %v1275
    %v1284 = vpack.c.b16 %v1278, %v1277
    %v1285 = vpack.c.b16 %v1280, %v1279
    %v1286 = vpack.c.b16 %v1282, %v1281
    %1291 = vmatprep.subr.bf16.mxu0 0
    %1292 = vmatpush1.bf16.msra.mxu0 %v1283
    %1293 = vmatprep.subr.bf16.mxu0 0
    %1294 = vmatpush1.bf16.msra.mxu0 %v1284
    %1295 = vmatprep.subr.bf16.mxu0 0
    %1296 = vmatpush1.bf16.msra.mxu0 %v1285
    %1297 = vmatprep.subr.bf16.mxu0 0
    %1298 = vmatpush1.bf16.msra.mxu0 %v1286
    %1299 = vmatprep.subr.bf16.mxu0 0
    %1300 = vmatpush1.bf16.msra.mxu0 0
    %1301 = vmatprep.subr.bf16.mxu0 0
    %1302 = vmatpush1.bf16.msra.mxu0 0
    %1303 = vmatprep.subr.bf16.mxu0 0
    %1304 = vmatpush1.bf16.msra.mxu0 0
    %1305 = vmatprep.subr.bf16.mxu0 0
    %1306 = vmatpush1.bf16.msra.mxu0 0
    %1307 = vmatprep.subr.bf16.mxu0 0
    %1308 = vmatpush1.bf16.msra.mxu0 0
    %1309 = vmatprep.subr.bf16.mxu0 0
    %1310 = vmatpush1.bf16.msra.mxu0 0
    %1311 = vmatprep.subr.bf16.mxu0 0
    %1312 = vmatpush1.bf16.msra.mxu0 0
    %1313 = vmatprep.subr.bf16.mxu0 0
    %1314 = vmatpush1.bf16.msra.mxu0 0
    %1315 = vmatprep.subr.bf16.mxu0 0
    %1316 = vmatpush1.bf16.msra.mxu0 0
    %1317 = vmatprep.subr.bf16.mxu0 0
    %1318 = vmatpush1.bf16.msra.mxu0 0
    %1319 = vmatprep.subr.bf16.mxu0 0
    %1320 = vmatpush1.bf16.msra.mxu0 0
    %1321 = vmatprep.subr.bf16.mxu0 0
    %1322 = vmatpush1.bf16.msra.mxu0 0
    %1323 = vmatprep.mubr.bf16.mxu0 0
    %1324 = vmatmul.mubr.bf16.gmra.mrb[0].mxu0 %v900
    %v1325 = vpop.f32.mrb[0].mxu0
    %v1326 = vadd.f32 0.0, %v1325
    %v1327 = vpop.f32.mrb[0].mxu0
    %v1328 = vpop.f32.mrb[0].mxu0
    %v1329 = vadd.f32 0.0, %v1328
    %v1330 = vpop.f32.mrb[0].mxu0
    %1331 = vmatprep.mubr.bf16.mxu0 0
    %1332 = vmatmul.mubr.bf16.gmra.mrb[0].mxu0 %v903
    %v1333 = vpop.f32.mrb[0].mxu0
    %v1334 = vadd.f32 0.0, %v1333
    %v1335 = vpop.f32.mrb[0].mxu0
    %v1336 = vpop.f32.mrb[0].mxu0
    %v1337 = vadd.f32 0.0, %v1336
    %v1338 = vpop.f32.mrb[0].mxu0
    %1339 = vdwg.mxu0
    %v1340 = vrot.slane %v1326, 2
    %v1341 = vrot.slane %v1329, 2
    %v1342 = vrot.slane %v1334, 2
    %v1343 = vrot.slane %v1337, 2
    %v1344 = vsel %vm797, %v1342, %v1343
    %v1345 = vsel %vm797, %v1341, %v1342
    %v1346 = vsel %vm797, %v1340, %v1341
    %v1347 = vsel %vm797, %v1343, %v1340
    %v1348 = vsel %vm806, %v1346, 0.0
    %v1349 = vsel %vm807, %v1345, 0.0
    %v1350 = vsel %vm808, %v1344, 0.0
    %v1351 = vsel %vm809, %v1347, 0.0
    %v1352 = vadd.f32 %v1254, %v1348
    %v1353 = vadd.f32 %v1255, %v1349
    %v1354 = vadd.f32 %v1256, %v1350
    %v1355 = vadd.f32 %v1257, %v1351
    %v1356 = vxor.u32 %v1352, 2147483648
    %v1357 = vxor.u32 %v1353, 2147483648
    %v1358 = vxor.u32 %v1354, 2147483648
    %v1359 = vxor.u32 %v1355, 2147483648
    %v1360 = vmul.f32 %v1356, 1.442695
    %v1361 = vpow.pop %v1360
    %v1362 = vmul.f32 %v1357, 1.442695
    %v1363 = vpow.pop %v1362
    %v1364 = vmul.f32 %v1358, 1.442695
    %v1365 = vpow.pop %v1364
    %v1366 = vmul.f32 %v1359, 1.442695
    %v1367 = vpow.pop %v1366
    %v1368 = vadd.f32 %v1361, 1.0
    %v1369 = vadd.f32 %v1363, 1.0
    %v1370 = vadd.f32 %v1365, 1.0
    %v1371 = vadd.f32 %v1367, 1.0
    %v1372 = vrcp.pop %v1368
    %v1373 = vmul.f32 1.0, %v1372
    %v1374 = vrcp.pop %v1369
    %v1375 = vmul.f32 1.0, %v1374
    %v1376 = vrcp.pop %v1370
    %v1377 = vmul.f32 1.0, %v1376
    %v1378 = vrcp.pop %v1371
    %v1379 = vmul.f32 1.0, %v1378
    %1380 = vrot.lane.b32.xlu0 %v1373, 64
    %v1381 = vpop.permute.xlu0 %1380
    %1382 = vrot.lane.b32.xlu0 %v1375, 64
    %v1383 = vpop.permute.xlu0 %1382
    %1384 = vrot.lane.b32.xlu0 %v1377, 64
    %v1385 = vpop.permute.xlu0 %1384
    %1386 = vrot.lane.b32.xlu0 %v1379, 64
    %v1387 = vpop.permute.xlu0 %1386
    %v1388 = vmul.f32 %v1352, %v1381
    %v1389 = vmul.f32 %v1353, %v1383
    %v1390 = vmul.f32 %v1354, %v1385
    %v1391 = vmul.f32 %v1355, %v1387
    %v1392 = vadd.f32 %v1388, %v858
    %v1393 = vadd.f32 %v1389, %v859
    %v1394 = vadd.f32 %v1390, %v860
    %v1395 = vadd.f32 %v1391, %v861
    %v1396 = vmul.f32 %v1392, 0.70710677
    %v1397 = vmul.f32 %v1393, 0.70710677
    %v1398 = vmul.f32 %v1394, 0.70710677
    %v1399 = vmul.f32 %v1395, 0.70710677
    %v1400 = vpack.c.bf16 %v1397, %v1396
    %v1401 = vpack.c.bf16 %v1399, %v1398
    %s1402 = scalar_lea.vmem %s4, 2
    %v1403 = vld [vmem:[%s1402] sm:$0x1]
    %s1404 = scalar_lea.vmem [#allocation7], 320
    %v1405 = vld [vmem:[%s1404] sm:$0xf]
    %v1406 = vld [vmem:[%s1404 + $0x4] sm:$0xf]
    %v1407 = vld [vmem:[%s1404 + $0x8] sm:$0xf]
    %v1408 = vld [vmem:[%s1404 + $0xc] sm:$0xf]
    %v1409 = vld [vmem:[%s1404 + $0x10] sm:$0xf]
    %v1410 = vld [vmem:[%s1404 + $0x14] sm:$0xf]
    %v1411 = vld [vmem:[%s1404 + $0x18] sm:$0xf]
    %v1412 = vld [vmem:[%s1404 + $0x1c] sm:$0xf]
    %v1421 = vunpack.c.l.b16 %v1405
    %v1422 = vunpack.c.l.b16 %v1406
    %v1423 = vunpack.c.l.b16 %v1407
    %v1424 = vunpack.c.l.b16 %v1408
    %v1425 = vunpack.c.l.b16 %v1409
    %v1426 = vunpack.c.l.b16 %v1410
    %v1427 = vunpack.c.l.b16 %v1411
    %v1428 = vunpack.c.l.b16 %v1412
    %v1429 = vpack.c.b16 %v1422, %v1421
    %v1430 = vpack.c.b16 %v1424, %v1423
    %v1431 = vpack.c.b16 %v1426, %v1425
    %v1432 = vpack.c.b16 %v1428, %v1427
    %v1438 = vsel %vm324, %v1400, 0
    %v1441 = vsel %vm324, %v1401, 0
    %1443 = vmatprep.subr.bf16.mxu0 0
    %1444 = vmatpush1.bf16.msra.mxu0 %v1429
    %1445 = vmatprep.subr.bf16.mxu0 0
    %1446 = vmatpush1.bf16.msra.mxu0 %v1430
    %1447 = vmatprep.subr.bf16.mxu0 0
    %1448 = vmatpush1.bf16.msra.mxu0 %v1431
    %1449 = vmatprep.subr.bf16.mxu0 0
    %1450 = vmatpush1.bf16.msra.mxu0 %v1432
    %1451 = vmatprep.subr.bf16.mxu0 0
    %1452 = vmatpush1.bf16.msra.mxu0 0
    %1453 = vmatprep.subr.bf16.mxu0 0
    %1454 = vmatpush1.bf16.msra.mxu0 0
    %1455 = vmatprep.subr.bf16.mxu0 0
    %1456 = vmatpush1.bf16.msra.mxu0 0
    %1457 = vmatprep.subr.bf16.mxu0 0
    %1458 = vmatpush1.bf16.msra.mxu0 0
    %1459 = vmatprep.subr.bf16.mxu0 0
    %1460 = vmatpush1.bf16.msra.mxu0 0
    %1461 = vmatprep.subr.bf16.mxu0 0
    %1462 = vmatpush1.bf16.msra.mxu0 0
    %1463 = vmatprep.subr.bf16.mxu0 0
    %1464 = vmatpush1.bf16.msra.mxu0 0
    %1465 = vmatprep.subr.bf16.mxu0 0
    %1466 = vmatpush1.bf16.msra.mxu0 0
    %1467 = vmatprep.subr.bf16.mxu0 0
    %1468 = vmatpush1.bf16.msra.mxu0 0
    %1469 = vmatprep.subr.bf16.mxu0 0
    %1470 = vmatpush1.bf16.msra.mxu0 0
    %1471 = vmatprep.subr.bf16.mxu0 0
    %1472 = vmatpush1.bf16.msra.mxu0 0
    %1473 = vmatprep.subr.bf16.mxu0 0
    %1474 = vmatpush1.bf16.msra.mxu0 0
    %1475 = vmatprep.mubr.bf16.mxu0 0
    %1476 = vmatmul.mubr.bf16.gmra.mrb[0].mxu0 %v1438
    %v1477 = vpop.f32.mrb[0].mxu0
    %v1478 = vadd.f32 0.0, %v1477
    %v1479 = vpop.f32.mrb[0].mxu0
    %v1480 = vpop.f32.mrb[0].mxu0
    %v1481 = vadd.f32 0.0, %v1480
    %v1482 = vpop.f32.mrb[0].mxu0
    %1483 = vmatprep.mubr.bf16.mxu0 0
    %1484 = vmatmul.mubr.bf16.gmra.mrb[0].mxu0 %v1441
    %v1485 = vpop.f32.mrb[0].mxu0
    %v1486 = vadd.f32 0.0, %v1485
    %v1487 = vpop.f32.mrb[0].mxu0
    %v1488 = vpop.f32.mrb[0].mxu0
    %v1489 = vadd.f32 0.0, %v1488
    %v1490 = vpop.f32.mrb[0].mxu0
    %1491 = vdwg.mxu0
    %v1492 = vrot.slane %v1478, 6
    %v1493 = vrot.slane %v1481, 6
    %v1494 = vrot.slane %v1486, 6
    %v1495 = vrot.slane %v1489, 6
    %v1496 = vsel %vm384, %v1494, %v1495
    %v1497 = vsel %vm384, %v1493, %v1494
    %v1498 = vsel %vm384, %v1492, %v1493
    %v1499 = vsel %vm384, %v1495, %v1492
    %v1500 = vsel %vm393, %v1499, 0.0
    %v1501 = vsel %vm394, %v1498, 0.0
    %v1502 = vsel %vm395, %v1497, 0.0
    %v1503 = vsel %vm396, %v1496, 0.0
    %v1505 = vlaneseq
    %v1506 = vshrl.u32 %v1505, 7
    %v1507 = vsub.s32 0, %v1506
    %v1508 = vrot.slane %v1403, %v1507
    %v1510 = vadd.f32 %v1508, %v1500
    %v1511 = vadd.f32 %v1508, %v1501
    %v1512 = vadd.f32 %v1508, %v1502
    %v1513 = vadd.f32 %v1508, %v1503
    %s1514 = scalar_lea.vmem [#allocation7], 352
    %v1515 = vld [vmem:[%s1514] sm:$0xf]
    %v1516 = vld [vmem:[%s1514 + $0x4] sm:$0xf]
    %v1517 = vld [vmem:[%s1514 + $0x8] sm:$0xf]
    %v1518 = vld [vmem:[%s1514 + $0xc] sm:$0xf]
    %v1519 = vld [vmem:[%s1514 + $0x10] sm:$0xf]
    %v1520 = vld [vmem:[%s1514 + $0x14] sm:$0xf]
    %v1521 = vld [vmem:[%s1514 + $0x18] sm:$0xf]
    %v1522 = vld [vmem:[%s1514 + $0x1c] sm:$0xf]
    %v1531 = vunpack.c.l.b16 %v1515
    %v1532 = vunpack.c.l.b16 %v1516
    %v1533 = vunpack.c.l.b16 %v1517
    %v1534 = vunpack.c.l.b16 %v1518
    %v1535 = vunpack.c.l.b16 %v1519
    %v1536 = vunpack.c.l.b16 %v1520
    %v1537 = vunpack.c.l.b16 %v1521
    %v1538 = vunpack.c.l.b16 %v1522
    %v1539 = vpack.c.b16 %v1532, %v1531
    %v1540 = vpack.c.b16 %v1534, %v1533
    %v1541 = vpack.c.b16 %v1536, %v1535
    %v1542 = vpack.c.b16 %v1538, %v1537
    %1547 = vmatprep.subr.bf16.mxu0 0
    %1548 = vmatpush1.bf16.msra.mxu0 %v1539
    %1549 = vmatprep.subr.bf16.mxu0 0
    %1550 = vmatpush1.bf16.msra.mxu0 %v1540
    %1551 = vmatprep.subr.bf16.mxu0 0
    %1552 = vmatpush1.bf16.msra.mxu0 %v1541
    %1553 = vmatprep.subr.bf16.mxu0 0
    %1554 = vmatpush1.bf16.msra.mxu0 %v1542
    %1555 = vmatprep.subr.bf16.mxu0 0
    %1556 = vmatpush1.bf16.msra.mxu0 0
    %1557 = vmatprep.subr.bf16.mxu0 0
    %1558 = vmatpush1.bf16.msra.mxu0 0
    %1559 = vmatprep.subr.bf16.mxu0 0
    %1560 = vmatpush1.bf16.msra.mxu0 0
    %1561 = vmatprep.subr.bf16.mxu0 0
    %1562 = vmatpush1.bf16.msra.mxu0 0
    %1563 = vmatprep.subr.bf16.mxu0 0
    %1564 = vmatpush1.bf16.msra.mxu0 0
    %1565 = vmatprep.subr.bf16.mxu0 0
    %1566 = vmatpush1.bf16.msra.mxu0 0
    %1567 = vmatprep.subr.bf16.mxu0 0
    %1568 = vmatpush1.bf16.msra.mxu0 0
    %1569 = vmatprep.subr.bf16.mxu0 0
    %1570 = vmatpush1.bf16.msra.mxu0 0
    %1571 = vmatprep.subr.bf16.mxu0 0
    %1572 = vmatpush1.bf16.msra.mxu0 0
    %1573 = vmatprep.subr.bf16.mxu0 0
    %1574 = vmatpush1.bf16.msra.mxu0 0
    %1575 = vmatprep.subr.bf16.mxu0 0
    %1576 = vmatpush1.bf16.msra.mxu0 0
    %1577 = vmatprep.subr.bf16.mxu0 0
    %1578 = vmatpush1.bf16.msra.mxu0 0
    %1579 = vmatprep.mubr.bf16.mxu0 0
    %1580 = vmatmul.mubr.bf16.gmra.mrb[0].mxu0 %v1438
    %v1581 = vpop.f32.mrb[0].mxu0
    %v1582 = vadd.f32 0.0, %v1581
    %v1583 = vpop.f32.mrb[0].mxu0
    %v1584 = vpop.f32.mrb[0].mxu0
    %v1585 = vadd.f32 0.0, %v1584
    %v1586 = vpop.f32.mrb[0].mxu0
    %1587 = vmatprep.mubr.bf16.mxu0 0
    %1588 = vmatmul.mubr.bf16.gmra.mrb[0].mxu0 %v1441
    %v1589 = vpop.f32.mrb[0].mxu0
    %v1590 = vadd.f32 0.0, %v1589
    %v1591 = vpop.f32.mrb[0].mxu0
    %v1592 = vpop.f32.mrb[0].mxu0
    %v1593 = vadd.f32 0.0, %v1592
    %v1594 = vpop.f32.mrb[0].mxu0
    %1595 = vdwg.mxu0
    %v1596 = vrot.slane %v1582, 7
    %v1597 = vrot.slane %v1585, 7
    %v1598 = vrot.slane %v1590, 7
    %v1599 = vrot.slane %v1593, 7
    %v1600 = vsel %vm497, %v1598, %v1599
    %v1601 = vsel %vm497, %v1597, %v1598
    %v1602 = vsel %vm497, %v1596, %v1597
    %v1603 = vsel %vm497, %v1599, %v1596
    %v1604 = vsel %vm506, %v1603, 0.0
    %v1605 = vsel %vm507, %v1602, 0.0
    %v1606 = vsel %vm508, %v1601, 0.0
    %v1607 = vsel %vm509, %v1600, 0.0
    %v1608 = vadd.f32 %v1510, %v1604
    %v1609 = vadd.f32 %v1511, %v1605
    %v1610 = vadd.f32 %v1512, %v1606
    %v1611 = vadd.f32 %v1513, %v1607
    %s1612 = scalar_lea.vmem [#allocation7], 384
    %v1613 = vld [vmem:[%s1612] sm:$0xf]
    %v1614 = vld [vmem:[%s1612 + $0x4] sm:$0xf]
    %v1615 = vld [vmem:[%s1612 + $0x8] sm:$0xf]
    %v1616 = vld [vmem:[%s1612 + $0xc] sm:$0xf]
    %v1617 = vld [vmem:[%s1612 + $0x10] sm:$0xf]
    %v1618 = vld [vmem:[%s1612 + $0x14] sm:$0xf]
    %v1619 = vld [vmem:[%s1612 + $0x18] sm:$0xf]
    %v1620 = vld [vmem:[%s1612 + $0x1c] sm:$0xf]
    %v1629 = vunpack.c.l.b16 %v1613
    %v1630 = vunpack.c.l.b16 %v1614
    %v1631 = vunpack.c.l.b16 %v1615
    %v1632 = vunpack.c.l.b16 %v1616
    %v1633 = vunpack.c.l.b16 %v1617
    %v1634 = vunpack.c.l.b16 %v1618
    %v1635 = vunpack.c.l.b16 %v1619
    %v1636 = vunpack.c.l.b16 %v1620
    %v1637 = vpack.c.b16 %v1630, %v1629
    %v1638 = vpack.c.b16 %v1632, %v1631
    %v1639 = vpack.c.b16 %v1634, %v1633
    %v1640 = vpack.c.b16 %v1636, %v1635
    %1645 = vmatprep.subr.bf16.mxu0 0
    %1646 = vmatpush1.bf16.msra.mxu0 %v1637
    %1647 = vmatprep.subr.bf16.mxu0 0
    %1648 = vmatpush1.bf16.msra.mxu0 %v1638
    %1649 = vmatprep.subr.bf16.mxu0 0
    %1650 = vmatpush1.bf16.msra.mxu0 %v1639
    %1651 = vmatprep.subr.bf16.mxu0 0
    %1652 = vmatpush1.bf16.msra.mxu0 %v1640
    %1653 = vmatprep.subr.bf16.mxu0 0
    %1654 = vmatpush1.bf16.msra.mxu0 0
    %1655 = vmatprep.subr.bf16.mxu0 0
    %1656 = vmatpush1.bf16.msra.mxu0 0
    %1657 = vmatprep.subr.bf16.mxu0 0
    %1658 = vmatpush1.bf16.msra.mxu0 0
    %1659 = vmatprep.subr.bf16.mxu0 0
    %1660 = vmatpush1.bf16.msra.mxu0 0
    %1661 = vmatprep.subr.bf16.mxu0 0
    %1662 = vmatpush1.bf16.msra.mxu0 0
    %1663 = vmatprep.subr.bf16.mxu0 0
    %1664 = vmatpush1.bf16.msra.mxu0 0
    %1665 = vmatprep.subr.bf16.mxu0 0
    %1666 = vmatpush1.bf16.msra.mxu0 0
    %1667 = vmatprep.subr.bf16.mxu0 0
    %1668 = vmatpush1.bf16.msra.mxu0 0
    %1669 = vmatprep.subr.bf16.mxu0 0
    %1670 = vmatpush1.bf16.msra.mxu0 0
    %1671 = vmatprep.subr.bf16.mxu0 0
    %1672 = vmatpush1.bf16.msra.mxu0 0
    %1673 = vmatprep.subr.bf16.mxu0 0
    %1674 = vmatpush1.bf16.msra.mxu0 0
    %1675 = vmatprep.subr.bf16.mxu0 0
    %1676 = vmatpush1.bf16.msra.mxu0 0
    %1677 = vmatprep.mubr.bf16.mxu0 0
    %1678 = vmatmul.mubr.bf16.gmra.mrb[0].mxu0 %v1438
    %v1679 = vpop.f32.mrb[0].mxu0
    %v1680 = vadd.f32 0.0, %v1679
    %v1681 = vpop.f32.mrb[0].mxu0
    %v1682 = vpop.f32.mrb[0].mxu0
    %v1683 = vadd.f32 0.0, %v1682
    %v1684 = vpop.f32.mrb[0].mxu0
    %1685 = vmatprep.mubr.bf16.mxu0 0
    %1686 = vmatmul.mubr.bf16.gmra.mrb[0].mxu0 %v1441
    %v1687 = vpop.f32.mrb[0].mxu0
    %v1688 = vadd.f32 0.0, %v1687
    %v1689 = vpop.f32.mrb[0].mxu0
    %v1690 = vpop.f32.mrb[0].mxu0
    %v1691 = vadd.f32 0.0, %v1690
    %v1692 = vpop.f32.mrb[0].mxu0
    %1693 = vdwg.mxu0
    %v1694 = vadd.f32 %v1608, %v1680
    %v1695 = vadd.f32 %v1609, %v1683
    %v1696 = vadd.f32 %v1610, %v1688
    %v1697 = vadd.f32 %v1611, %v1691
    %s1698 = scalar_lea.vmem [#allocation7], 416
    %v1699 = vld [vmem:[%s1698] sm:$0xf]
    %v1700 = vld [vmem:[%s1698 + $0x4] sm:$0xf]
    %v1701 = vld [vmem:[%s1698 + $0x8] sm:$0xf]
    %v1702 = vld [vmem:[%s1698 + $0xc] sm:$0xf]
    %v1703 = vld [vmem:[%s1698 + $0x10] sm:$0xf]
    %v1704 = vld [vmem:[%s1698 + $0x14] sm:$0xf]
    %v1705 = vld [vmem:[%s1698 + $0x18] sm:$0xf]
    %v1706 = vld [vmem:[%s1698 + $0x1c] sm:$0xf]
    %v1715 = vunpack.c.l.b16 %v1699
    %v1716 = vunpack.c.l.b16 %v1700
    %v1717 = vunpack.c.l.b16 %v1701
    %v1718 = vunpack.c.l.b16 %v1702
    %v1719 = vunpack.c.l.b16 %v1703
    %v1720 = vunpack.c.l.b16 %v1704
    %v1721 = vunpack.c.l.b16 %v1705
    %v1722 = vunpack.c.l.b16 %v1706
    %v1723 = vpack.c.b16 %v1716, %v1715
    %v1724 = vpack.c.b16 %v1718, %v1717
    %v1725 = vpack.c.b16 %v1720, %v1719
    %v1726 = vpack.c.b16 %v1722, %v1721
    %1731 = vmatprep.subr.bf16.mxu0 0
    %1732 = vmatpush1.bf16.msra.mxu0 %v1723
    %1733 = vmatprep.subr.bf16.mxu0 0
    %1734 = vmatpush1.bf16.msra.mxu0 %v1724
    %1735 = vmatprep.subr.bf16.mxu0 0
    %1736 = vmatpush1.bf16.msra.mxu0 %v1725
    %1737 = vmatprep.subr.bf16.mxu0 0
    %1738 = vmatpush1.bf16.msra.mxu0 %v1726
    %1739 = vmatprep.subr.bf16.mxu0 0
    %1740 = vmatpush1.bf16.msra.mxu0 0
    %1741 = vmatprep.subr.bf16.mxu0 0
    %1742 = vmatpush1.bf16.msra.mxu0 0
    %1743 = vmatprep.subr.bf16.mxu0 0
    %1744 = vmatpush1.bf16.msra.mxu0 0
    %1745 = vmatprep.subr.bf16.mxu0 0
    %1746 = vmatpush1.bf16.msra.mxu0 0
    %1747 = vmatprep.subr.bf16.mxu0 0
    %1748 = vmatpush1.bf16.msra.mxu0 0
    %1749 = vmatprep.subr.bf16.mxu0 0
    %1750 = vmatpush1.bf16.msra.mxu0 0
    %1751 = vmatprep.subr.bf16.mxu0 0
    %1752 = vmatpush1.bf16.msra.mxu0 0
    %1753 = vmatprep.subr.bf16.mxu0 0
    %1754 = vmatpush1.bf16.msra.mxu0 0
    %1755 = vmatprep.subr.bf16.mxu0 0
    %1756 = vmatpush1.bf16.msra.mxu0 0
    %1757 = vmatprep.subr.bf16.mxu0 0
    %1758 = vmatpush1.bf16.msra.mxu0 0
    %1759 = vmatprep.subr.bf16.mxu0 0
    %1760 = vmatpush1.bf16.msra.mxu0 0
    %1761 = vmatprep.subr.bf16.mxu0 0
    %1762 = vmatpush1.bf16.msra.mxu0 0
    %1763 = vmatprep.mubr.bf16.mxu0 0
    %1764 = vmatmul.mubr.bf16.gmra.mrb[0].mxu0 %v1438
    %v1765 = vpop.f32.mrb[0].mxu0
    %v1766 = vadd.f32 0.0, %v1765
    %v1767 = vpop.f32.mrb[0].mxu0
    %v1768 = vpop.f32.mrb[0].mxu0
    %v1769 = vadd.f32 0.0, %v1768
    %v1770 = vpop.f32.mrb[0].mxu0
    %1771 = vmatprep.mubr.bf16.mxu0 0
    %1772 = vmatmul.mubr.bf16.gmra.mrb[0].mxu0 %v1441
    %v1773 = vpop.f32.mrb[0].mxu0
    %v1774 = vadd.f32 0.0, %v1773
    %v1775 = vpop.f32.mrb[0].mxu0
    %v1776 = vpop.f32.mrb[0].mxu0
    %v1777 = vadd.f32 0.0, %v1776
    %v1778 = vpop.f32.mrb[0].mxu0
    %1779 = vdwg.mxu0
    %v1780 = vrot.slane %v1766, 1
    %v1781 = vrot.slane %v1769, 1
    %v1782 = vrot.slane %v1774, 1
    %v1783 = vrot.slane %v1777, 1
    %v1784 = vsel %vm690, %v1782, %v1783
    %v1785 = vsel %vm690, %v1781, %v1782
    %v1786 = vsel %vm690, %v1780, %v1781
    %v1787 = vsel %vm690, %v1783, %v1780
    %v1788 = vsel %vm699, %v1786, 0.0
    %v1789 = vsel %vm700, %v1785, 0.0
    %v1790 = vsel %vm701, %v1784, 0.0
    %v1791 = vsel %vm702, %v1787, 0.0
    %v1792 = vadd.f32 %v1694, %v1788
    %v1793 = vadd.f32 %v1695, %v1789
    %v1794 = vadd.f32 %v1696, %v1790
    %v1795 = vadd.f32 %v1697, %v1791
    %s1796 = scalar_lea.vmem [#allocation7], 448
    %v1797 = vld [vmem:[%s1796] sm:$0xf]
    %v1798 = vld [vmem:[%s1796 + $0x4] sm:$0xf]
    %v1799 = vld [vmem:[%s1796 + $0x8] sm:$0xf]
    %v1800 = vld [vmem:[%s1796 + $0xc] sm:$0xf]
    %v1801 = vld [vmem:[%s1796 + $0x10] sm:$0xf]
    %v1802 = vld [vmem:[%s1796 + $0x14] sm:$0xf]
    %v1803 = vld [vmem:[%s1796 + $0x18] sm:$0xf]
    %v1804 = vld [vmem:[%s1796 + $0x1c] sm:$0xf]
    %v1813 = vunpack.c.l.b16 %v1797
    %v1814 = vunpack.c.l.b16 %v1798
    %v1815 = vunpack.c.l.b16 %v1799
    %v1816 = vunpack.c.l.b16 %v1800
    %v1817 = vunpack.c.l.b16 %v1801
    %v1818 = vunpack.c.l.b16 %v1802
    %v1819 = vunpack.c.l.b16 %v1803
    %v1820 = vunpack.c.l.b16 %v1804
    %v1821 = vpack.c.b16 %v1814, %v1813
    %v1822 = vpack.c.b16 %v1816, %v1815
    %v1823 = vpack.c.b16 %v1818, %v1817
    %v1824 = vpack.c.b16 %v1820, %v1819
    %1829 = vmatprep.subr.bf16.mxu0 0
    %1830 = vmatpush1.bf16.msra.mxu0 %v1821
    %1831 = vmatprep.subr.bf16.mxu0 0
    %1832 = vmatpush1.bf16.msra.mxu0 %v1822
    %1833 = vmatprep.subr.bf16.mxu0 0
    %1834 = vmatpush1.bf16.msra.mxu0 %v1823
    %1835 = vmatprep.subr.bf16.mxu0 0
    %1836 = vmatpush1.bf16.msra.mxu0 %v1824
    %1837 = vmatprep.subr.bf16.mxu0 0
    %1838 = vmatpush1.bf16.msra.mxu0 0
    %1839 = vmatprep.subr.bf16.mxu0 0
    %1840 = vmatpush1.bf16.msra.mxu0 0
    %1841 = vmatprep.subr.bf16.mxu0 0
    %1842 = vmatpush1.bf16.msra.mxu0 0
    %1843 = vmatprep.subr.bf16.mxu0 0
    %1844 = vmatpush1.bf16.msra.mxu0 0
    %1845 = vmatprep.subr.bf16.mxu0 0
    %1846 = vmatpush1.bf16.msra.mxu0 0
    %1847 = vmatprep.subr.bf16.mxu0 0
    %1848 = vmatpush1.bf16.msra.mxu0 0
    %1849 = vmatprep.subr.bf16.mxu0 0
    %1850 = vmatpush1.bf16.msra.mxu0 0
    %1851 = vmatprep.subr.bf16.mxu0 0
    %1852 = vmatpush1.bf16.msra.mxu0 0
    %1853 = vmatprep.subr.bf16.mxu0 0
    %1854 = vmatpush1.bf16.msra.mxu0 0
    %1855 = vmatprep.subr.bf16.mxu0 0
    %1856 = vmatpush1.bf16.msra.mxu0 0
    %1857 = vmatprep.subr.bf16.mxu0 0
    %1858 = vmatpush1.bf16.msra.mxu0 0
    %1859 = vmatprep.subr.bf16.mxu0 0
    %1860 = vmatpush1.bf16.msra.mxu0 0
    %1861 = vmatprep.mubr.bf16.mxu0 0
    %1862 = vmatmul.mubr.bf16.gmra.mrb[0].mxu0 %v1438
    %v1863 = vpop.f32.mrb[0].mxu0
    %v1864 = vadd.f32 0.0, %v1863
    %v1865 = vpop.f32.mrb[0].mxu0
    %v1866 = vpop.f32.mrb[0].mxu0
    %v1867 = vadd.f32 0.0, %v1866
    %v1868 = vpop.f32.mrb[0].mxu0
    %1869 = vmatprep.mubr.bf16.mxu0 0
    %1870 = vmatmul.mubr.bf16.gmra.mrb[0].mxu0 %v1441
    %v1871 = vpop.f32.mrb[0].mxu0
    %v1872 = vadd.f32 0.0, %v1871
    %v1873 = vpop.f32.mrb[0].mxu0
    %v1874 = vpop.f32.mrb[0].mxu0
    %v1875 = vadd.f32 0.0, %v1874
    %v1876 = vpop.f32.mrb[0].mxu0
    %1877 = vdwg.mxu0
    %v1878 = vrot.slane %v1864, 2
    %v1879 = vrot.slane %v1867, 2
    %v1880 = vrot.slane %v1872, 2
    %v1881 = vrot.slane %v1875, 2
    %v1882 = vsel %vm797, %v1880, %v1881
    %v1883 = vsel %vm797, %v1879, %v1880
    %v1884 = vsel %vm797, %v1878, %v1879
    %v1885 = vsel %vm797, %v1881, %v1878
    %v1886 = vsel %vm806, %v1884, 0.0
    %v1887 = vsel %vm807, %v1883, 0.0
    %v1888 = vsel %vm808, %v1882, 0.0
    %v1889 = vsel %vm809, %v1885, 0.0
    %v1890 = vadd.f32 %v1792, %v1886
    %v1891 = vadd.f32 %v1793, %v1887
    %v1892 = vadd.f32 %v1794, %v1888
    %v1893 = vadd.f32 %v1795, %v1889
    %v1894 = vxor.u32 %v1890, 2147483648
    %v1895 = vxor.u32 %v1891, 2147483648
    %v1896 = vxor.u32 %v1892, 2147483648
    %v1897 = vxor.u32 %v1893, 2147483648
    %v1898 = vmul.f32 %v1894, 1.442695
    %v1899 = vpow.pop %v1898
    %v1900 = vmul.f32 %v1895, 1.442695
    %v1901 = vpow.pop %v1900
    %v1902 = vmul.f32 %v1896, 1.442695
    %v1903 = vpow.pop %v1902
    %v1904 = vmul.f32 %v1897, 1.442695
    %v1905 = vpow.pop %v1904
    %v1906 = vadd.f32 %v1899, 1.0
    %v1907 = vadd.f32 %v1901, 1.0
    %v1908 = vadd.f32 %v1903, 1.0
    %v1909 = vadd.f32 %v1905, 1.0
    %v1910 = vrcp.pop %v1906
    %v1911 = vmul.f32 1.0, %v1910
    %v1912 = vrcp.pop %v1907
    %v1913 = vmul.f32 1.0, %v1912
    %v1914 = vrcp.pop %v1908
    %v1915 = vmul.f32 1.0, %v1914
    %v1916 = vrcp.pop %v1909
    %v1917 = vmul.f32 1.0, %v1916
    %1918 = vrot.lane.b32.xlu0 %v1911, 64
    %v1919 = vpop.permute.xlu0 %1918
    %1920 = vrot.lane.b32.xlu0 %v1913, 64
    %v1921 = vpop.permute.xlu0 %1920
    %1922 = vrot.lane.b32.xlu0 %v1915, 64
    %v1923 = vpop.permute.xlu0 %1922
    %1924 = vrot.lane.b32.xlu0 %v1917, 64
    %v1925 = vpop.permute.xlu0 %1924
    %v1926 = vmul.f32 %v1890, %v1919
    %v1927 = vmul.f32 %v1891, %v1921
    %v1928 = vmul.f32 %v1892, %v1923
    %v1929 = vmul.f32 %v1893, %v1925
    %v1930 = vadd.f32 %v1926, %v1396
    %v1931 = vadd.f32 %v1927, %v1397
    %v1932 = vadd.f32 %v1928, %v1398
    %v1933 = vadd.f32 %v1929, %v1399
    %v1934 = vmul.f32 %v1930, 0.70710677
    %v1935 = vmul.f32 %v1931, 0.70710677
    %v1936 = vmul.f32 %v1932, 0.70710677
    %v1937 = vmul.f32 %v1933, 0.70710677
    %v1938 = vpack.c.bf16 %v1935, %v1934
    %v1939 = vpack.c.bf16 %v1937, %v1936
    %s1940 = scalar_lea.vmem %s4, 3
    %v1941 = vld [vmem:[%s1940] sm:$0x1]
    %s1942 = scalar_lea.vmem [#allocation7], 480
    %v1943 = vld [vmem:[%s1942] sm:$0xf]
    %v1944 = vld [vmem:[%s1942 + $0x4] sm:$0xf]
    %v1945 = vld [vmem:[%s1942 + $0x8] sm:$0xf]
    %v1946 = vld [vmem:[%s1942 + $0xc] sm:$0xf]
    %v1947 = vld [vmem:[%s1942 + $0x10] sm:$0xf]
    %v1948 = vld [vmem:[%s1942 + $0x14] sm:$0xf]
    %v1949 = vld [vmem:[%s1942 + $0x18] sm:$0xf]
    %v1950 = vld [vmem:[%s1942 + $0x1c] sm:$0xf]
    %v1959 = vunpack.c.l.b16 %v1943
    %v1960 = vunpack.c.l.b16 %v1944
    %v1961 = vunpack.c.l.b16 %v1945
    %v1962 = vunpack.c.l.b16 %v1946
    %v1963 = vunpack.c.l.b16 %v1947
    %v1964 = vunpack.c.l.b16 %v1948
    %v1965 = vunpack.c.l.b16 %v1949
    %v1966 = vunpack.c.l.b16 %v1950
    %v1967 = vpack.c.b16 %v1960, %v1959
    %v1968 = vpack.c.b16 %v1962, %v1961
    %v1969 = vpack.c.b16 %v1964, %v1963
    %v1970 = vpack.c.b16 %v1966, %v1965
    %v1976 = vsel %vm324, %v1938, 0
    %v1979 = vsel %vm324, %v1939, 0
    %1981 = vmatprep.subr.bf16.mxu0 0
    %1982 = vmatpush1.bf16.msra.mxu0 %v1967
    %1983 = vmatprep.subr.bf16.mxu0 0
    %1984 = vmatpush1.bf16.msra.mxu0 %v1968
    %1985 = vmatprep.subr.bf16.mxu0 0
    %1986 = vmatpush1.bf16.msra.mxu0 %v1969
    %1987 = vmatprep.subr.bf16.mxu0 0
    %1988 = vmatpush1.bf16.msra.mxu0 %v1970
    %1989 = vmatprep.subr.bf16.mxu0 0
    %1990 = vmatpush1.bf16.msra.mxu0 0
    %1991 = vmatprep.subr.bf16.mxu0 0
    %1992 = vmatpush1.bf16.msra.mxu0 0
    %1993 = vmatprep.subr.bf16.mxu0 0
    %1994 = vmatpush1.bf16.msra.mxu0 0
    %1995 = vmatprep.subr.bf16.mxu0 0
    %1996 = vmatpush1.bf16.msra.mxu0 0
    %1997 = vmatprep.subr.bf16.mxu0 0
    %1998 = vmatpush1.bf16.msra.mxu0 0
    %1999 = vmatprep.subr.bf16.mxu0 0
    %2000 = vmatpush1.bf16.msra.mxu0 0
    %2001 = vmatprep.subr.bf16.mxu0 0
    %2002 = vmatpush1.bf16.msra.mxu0 0
    %2003 = vmatprep.subr.bf16.mxu0 0
    %2004 = vmatpush1.bf16.msra.mxu0 0
    %2005 = vmatprep.subr.bf16.mxu0 0
    %2006 = vmatpush1.bf16.msra.mxu0 0
    %2007 = vmatprep.subr.bf16.mxu0 0
    %2008 = vmatpush1.bf16.msra.mxu0 0
    %2009 = vmatprep.subr.bf16.mxu0 0
    %2010 = vmatpush1.bf16.msra.mxu0 0
    %2011 = vmatprep.subr.bf16.mxu0 0
    %2012 = vmatpush1.bf16.msra.mxu0 0
    %2013 = vmatprep.mubr.bf16.mxu0 0
    %2014 = vmatmul.mubr.bf16.gmra.mrb[0].mxu0 %v1976
    %v2015 = vpop.f32.mrb[0].mxu0
    %v2016 = vadd.f32 0.0, %v2015
    %v2017 = vpop.f32.mrb[0].mxu0
    %v2018 = vpop.f32.mrb[0].mxu0
    %v2019 = vadd.f32 0.0, %v2018
    %v2020 = vpop.f32.mrb[0].mxu0
    %2021 = vmatprep.mubr.bf16.mxu0 0
    %2022 = vmatmul.mubr.bf16.gmra.mrb[0].mxu0 %v1979
    %v2023 = vpop.f32.mrb[0].mxu0
    %v2024 = vadd.f32 0.0, %v2023
    %v2025 = vpop.f32.mrb[0].mxu0
    %v2026 = vpop.f32.mrb[0].mxu0
    %v2027 = vadd.f32 0.0, %v2026
    %v2028 = vpop.f32.mrb[0].mxu0
    %2029 = vdwg.mxu0
    %v2030 = vrot.slane %v2016, 6
    %v2031 = vrot.slane %v2019, 6
    %v2032 = vrot.slane %v2024, 6
    %v2033 = vrot.slane %v2027, 6
    %v2034 = vsel %vm384, %v2032, %v2033
    %v2035 = vsel %vm384, %v2031, %v2032
    %v2036 = vsel %vm384, %v2030, %v2031
    %v2037 = vsel %vm384, %v2033, %v2030
    %v2038 = vsel %vm393, %v2037, 0.0
    %v2039 = vsel %vm394, %v2036, 0.0
    %v2040 = vsel %vm395, %v2035, 0.0
    %v2041 = vsel %vm396, %v2034, 0.0
    %v2043 = vlaneseq
    %v2044 = vshrl.u32 %v2043, 7
    %v2045 = vsub.s32 0, %v2044
    %v2046 = vrot.slane %v1941, %v2045
    %v2048 = vadd.f32 %v2046, %v2038
    %v2049 = vadd.f32 %v2046, %v2039
    %v2050 = vadd.f32 %v2046, %v2040
    %v2051 = vadd.f32 %v2046, %v2041
    %s2052 = scalar_lea.vmem [#allocation7], 512
    %v2053 = vld [vmem:[%s2052] sm:$0xf]
    %v2054 = vld [vmem:[%s2052 + $0x4] sm:$0xf]
    %v2055 = vld [vmem:[%s2052 + $0x8] sm:$0xf]
    %v2056 = vld [vmem:[%s2052 + $0xc] sm:$0xf]
    %v2057 = vld [vmem:[%s2052 + $0x10] sm:$0xf]
    %v2058 = vld [vmem:[%s2052 + $0x14] sm:$0xf]
    %v2059 = vld [vmem:[%s2052 + $0x18] sm:$0xf]
    %v2060 = vld [vmem:[%s2052 + $0x1c] sm:$0xf]
    %v2069 = vunpack.c.l.b16 %v2053
    %v2070 = vunpack.c.l.b16 %v2054
    %v2071 = vunpack.c.l.b16 %v2055
    %v2072 = vunpack.c.l.b16 %v2056
    %v2073 = vunpack.c.l.b16 %v2057
    %v2074 = vunpack.c.l.b16 %v2058
    %v2075 = vunpack.c.l.b16 %v2059
    %v2076 = vunpack.c.l.b16 %v2060
    %v2077 = vpack.c.b16 %v2070, %v2069
    %v2078 = vpack.c.b16 %v2072, %v2071
    %v2079 = vpack.c.b16 %v2074, %v2073
    %v2080 = vpack.c.b16 %v2076, %v2075
    %2085 = vmatprep.subr.bf16.mxu0 0
    %2086 = vmatpush1.bf16.msra.mxu0 %v2077
    %2087 = vmatprep.subr.bf16.mxu0 0
    %2088 = vmatpush1.bf16.msra.mxu0 %v2078
    %2089 = vmatprep.subr.bf16.mxu0 0
    %2090 = vmatpush1.bf16.msra.mxu0 %v2079
    %2091 = vmatprep.subr.bf16.mxu0 0
    %2092 = vmatpush1.bf16.msra.mxu0 %v2080
    %2093 = vmatprep.subr.bf16.mxu0 0
    %2094 = vmatpush1.bf16.msra.mxu0 0
    %2095 = vmatprep.subr.bf16.mxu0 0
    %2096 = vmatpush1.bf16.msra.mxu0 0
    %2097 = vmatprep.subr.bf16.mxu0 0
    %2098 = vmatpush1.bf16.msra.mxu0 0
    %2099 = vmatprep.subr.bf16.mxu0 0
    %2100 = vmatpush1.bf16.msra.mxu0 0
    %2101 = vmatprep.subr.bf16.mxu0 0
    %2102 = vmatpush1.bf16.msra.mxu0 0
    %2103 = vmatprep.subr.bf16.mxu0 0
    %2104 = vmatpush1.bf16.msra.mxu0 0
    %2105 = vmatprep.subr.bf16.mxu0 0
    %2106 = vmatpush1.bf16.msra.mxu0 0
    %2107 = vmatprep.subr.bf16.mxu0 0
    %2108 = vmatpush1.bf16.msra.mxu0 0
    %2109 = vmatprep.subr.bf16.mxu0 0
    %2110 = vmatpush1.bf16.msra.mxu0 0
    %2111 = vmatprep.subr.bf16.mxu0 0
    %2112 = vmatpush1.bf16.msra.mxu0 0
    %2113 = vmatprep.subr.bf16.mxu0 0
    %2114 = vmatpush1.bf16.msra.mxu0 0
    %2115 = vmatprep.subr.bf16.mxu0 0
    %2116 = vmatpush1.bf16.msra.mxu0 0
    %2117 = vmatprep.mubr.bf16.mxu0 0
    %2118 = vmatmul.mubr.bf16.gmra.mrb[0].mxu0 %v1976
    %v2119 = vpop.f32.mrb[0].mxu0
    %v2120 = vadd.f32 0.0, %v2119
    %v2121 = vpop.f32.mrb[0].mxu0
    %v2122 = vpop.f32.mrb[0].mxu0
    %v2123 = vadd.f32 0.0, %v2122
    %v2124 = vpop.f32.mrb[0].mxu0
    %2125 = vmatprep.mubr.bf16.mxu0 0
    %2126 = vmatmul.mubr.bf16.gmra.mrb[0].mxu0 %v1979
    %v2127 = vpop.f32.mrb[0].mxu0
    %v2128 = vadd.f32 0.0, %v2127
    %v2129 = vpop.f32.mrb[0].mxu0
    %v2130 = vpop.f32.mrb[0].mxu0
    %v2131 = vadd.f32 0.0, %v2130
    %v2132 = vpop.f32.mrb[0].mxu0
    %2133 = vdwg.mxu0
    %v2134 = vrot.slane %v2120, 7
    %v2135 = vrot.slane %v2123, 7
    %v2136 = vrot.slane %v2128, 7
    %v2137 = vrot.slane %v2131, 7
    %v2138 = vsel %vm497, %v2136, %v2137
    %v2139 = vsel %vm497, %v2135, %v2136
    %v2140 = vsel %vm497, %v2134, %v2135
    %v2141 = vsel %vm497, %v2137, %v2134
    %v2142 = vsel %vm506, %v2141, 0.0
    %v2143 = vsel %vm507, %v2140, 0.0
    %v2144 = vsel %vm508, %v2139, 0.0
    %v2145 = vsel %vm509, %v2138, 0.0
    %v2146 = vadd.f32 %v2048, %v2142
    %v2147 = vadd.f32 %v2049, %v2143
    %v2148 = vadd.f32 %v2050, %v2144
    %v2149 = vadd.f32 %v2051, %v2145
    %s2150 = scalar_lea.vmem [#allocation7], 544
    %v2151 = vld [vmem:[%s2150] sm:$0xf]
    %v2152 = vld [vmem:[%s2150 + $0x4] sm:$0xf]
    %v2153 = vld [vmem:[%s2150 + $0x8] sm:$0xf]
    %v2154 = vld [vmem:[%s2150 + $0xc] sm:$0xf]
    %v2155 = vld [vmem:[%s2150 + $0x10] sm:$0xf]
    %v2156 = vld [vmem:[%s2150 + $0x14] sm:$0xf]
    %v2157 = vld [vmem:[%s2150 + $0x18] sm:$0xf]
    %v2158 = vld [vmem:[%s2150 + $0x1c] sm:$0xf]
    %v2167 = vunpack.c.l.b16 %v2151
    %v2168 = vunpack.c.l.b16 %v2152
    %v2169 = vunpack.c.l.b16 %v2153
    %v2170 = vunpack.c.l.b16 %v2154
    %v2171 = vunpack.c.l.b16 %v2155
    %v2172 = vunpack.c.l.b16 %v2156
    %v2173 = vunpack.c.l.b16 %v2157
    %v2174 = vunpack.c.l.b16 %v2158
    %v2175 = vpack.c.b16 %v2168, %v2167
    %v2176 = vpack.c.b16 %v2170, %v2169
    %v2177 = vpack.c.b16 %v2172, %v2171
    %v2178 = vpack.c.b16 %v2174, %v2173
    %2183 = vmatprep.subr.bf16.mxu0 0
    %2184 = vmatpush1.bf16.msra.mxu0 %v2175
    %2185 = vmatprep.subr.bf16.mxu0 0
    %2186 = vmatpush1.bf16.msra.mxu0 %v2176
    %2187 = vmatprep.subr.bf16.mxu0 0
    %2188 = vmatpush1.bf16.msra.mxu0 %v2177
    %2189 = vmatprep.subr.bf16.mxu0 0
    %2190 = vmatpush1.bf16.msra.mxu0 %v2178
    %2191 = vmatprep.subr.bf16.mxu0 0
    %2192 = vmatpush1.bf16.msra.mxu0 0
    %2193 = vmatprep.subr.bf16.mxu0 0
    %2194 = vmatpush1.bf16.msra.mxu0 0
    %2195 = vmatprep.subr.bf16.mxu0 0
    %2196 = vmatpush1.bf16.msra.mxu0 0
    %2197 = vmatprep.subr.bf16.mxu0 0
    %2198 = vmatpush1.bf16.msra.mxu0 0
    %2199 = vmatprep.subr.bf16.mxu0 0
    %2200 = vmatpush1.bf16.msra.mxu0 0
    %2201 = vmatprep.subr.bf16.mxu0 0
    %2202 = vmatpush1.bf16.msra.mxu0 0
    %2203 = vmatprep.subr.bf16.mxu0 0
    %2204 = vmatpush1.bf16.msra.mxu0 0
    %2205 = vmatprep.subr.bf16.mxu0 0
    %2206 = vmatpush1.bf16.msra.mxu0 0
    %2207 = vmatprep.subr.bf16.mxu0 0
    %2208 = vmatpush1.bf16.msra.mxu0 0
    %2209 = vmatprep.subr.bf16.mxu0 0
    %2210 = vmatpush1.bf16.msra.mxu0 0
    %2211 = vmatprep.subr.bf16.mxu0 0
    %2212 = vmatpush1.bf16.msra.mxu0 0
    %2213 = vmatprep.subr.bf16.mxu0 0
    %2214 = vmatpush1.bf16.msra.mxu0 0
    %2215 = vmatprep.mubr.bf16.mxu0 0
    %2216 = vmatmul.mubr.bf16.gmra.mrb[0].mxu0 %v1976
    %v2217 = vpop.f32.mrb[0].mxu0
    %v2218 = vadd.f32 0.0, %v2217
    %v2219 = vpop.f32.mrb[0].mxu0
    %v2220 = vpop.f32.mrb[0].mxu0
    %v2221 = vadd.f32 0.0, %v2220
    %v2222 = vpop.f32.mrb[0].mxu0
    %2223 = vmatprep.mubr.bf16.mxu0 0
    %2224 = vmatmul.mubr.bf16.gmra.mrb[0].mxu0 %v1979
    %v2225 = vpop.f32.mrb[0].mxu0
    %v2226 = vadd.f32 0.0, %v2225
    %v2227 = vpop.f32.mrb[0].mxu0
    %v2228 = vpop.f32.mrb[0].mxu0
    %v2229 = vadd.f32 0.0, %v2228
    %v2230 = vpop.f32.mrb[0].mxu0
    %2231 = vdwg.mxu0
    %v2232 = vadd.f32 %v2146, %v2218
    %v2233 = vadd.f32 %v2147, %v2221
    %v2234 = vadd.f32 %v2148, %v2226
    %v2235 = vadd.f32 %v2149, %v2229
    %s2236 = scalar_lea.vmem [#allocation7], 576
    %v2237 = vld [vmem:[%s2236] sm:$0xf]
    %v2238 = vld [vmem:[%s2236 + $0x4] sm:$0xf]
    %v2239 = vld [vmem:[%s2236 + $0x8] sm:$0xf]
    %v2240 = vld [vmem:[%s2236 + $0xc] sm:$0xf]
    %v2241 = vld [vmem:[%s2236 + $0x10] sm:$0xf]
    %v2242 = vld [vmem:[%s2236 + $0x14] sm:$0xf]
    %v2243 = vld [vmem:[%s2236 + $0x18] sm:$0xf]
    %v2244 = vld [vmem:[%s2236 + $0x1c] sm:$0xf]
    %v2253 = vunpack.c.l.b16 %v2237
    %v2254 = vunpack.c.l.b16 %v2238
    %v2255 = vunpack.c.l.b16 %v2239
    %v2256 = vunpack.c.l.b16 %v2240
    %v2257 = vunpack.c.l.b16 %v2241
    %v2258 = vunpack.c.l.b16 %v2242
    %v2259 = vunpack.c.l.b16 %v2243
    %v2260 = vunpack.c.l.b16 %v2244
    %v2261 = vpack.c.b16 %v2254, %v2253
    %v2262 = vpack.c.b16 %v2256, %v2255
    %v2263 = vpack.c.b16 %v2258, %v2257
    %v2264 = vpack.c.b16 %v2260, %v2259
    %2269 = vmatprep.subr.bf16.mxu0 0
    %2270 = vmatpush1.bf16.msra.mxu0 %v2261
    %2271 = vmatprep.subr.bf16.mxu0 0
    %2272 = vmatpush1.bf16.msra.mxu0 %v2262
    %2273 = vmatprep.subr.bf16.mxu0 0
    %2274 = vmatpush1.bf16.msra.mxu0 %v2263
    %2275 = vmatprep.subr.bf16.mxu0 0
    %2276 = vmatpush1.bf16.msra.mxu0 %v2264
    %2277 = vmatprep.subr.bf16.mxu0 0
    %2278 = vmatpush1.bf16.msra.mxu0 0
    %2279 = vmatprep.subr.bf16.mxu0 0
    %2280 = vmatpush1.bf16.msra.mxu0 0
    %2281 = vmatprep.subr.bf16.mxu0 0
    %2282 = vmatpush1.bf16.msra.mxu0 0
    %2283 = vmatprep.subr.bf16.mxu0 0
    %2284 = vmatpush1.bf16.msra.mxu0 0
    %2285 = vmatprep.subr.bf16.mxu0 0
    %2286 = vmatpush1.bf16.msra.mxu0 0
    %2287 = vmatprep.subr.bf16.mxu0 0
    %2288 = vmatpush1.bf16.msra.mxu0 0
    %2289 = vmatprep.subr.bf16.mxu0 0
    %2290 = vmatpush1.bf16.msra.mxu0 0
    %2291 = vmatprep.subr.bf16.mxu0 0
    %2292 = vmatpush1.bf16.msra.mxu0 0
    %2293 = vmatprep.subr.bf16.mxu0 0
    %2294 = vmatpush1.bf16.msra.mxu0 0
    %2295 = vmatprep.subr.bf16.mxu0 0
    %2296 = vmatpush1.bf16.msra.mxu0 0
    %2297 = vmatprep.subr.bf16.mxu0 0
    %2298 = vmatpush1.bf16.msra.mxu0 0
    %2299 = vmatprep.subr.bf16.mxu0 0
    %2300 = vmatpush1.bf16.msra.mxu0 0
    %2301 = vmatprep.mubr.bf16.mxu0 0
    %2302 = vmatmul.mubr.bf16.gmra.mrb[0].mxu0 %v1976
    %v2303 = vpop.f32.mrb[0].mxu0
    %v2304 = vadd.f32 0.0, %v2303
    %v2305 = vpop.f32.mrb[0].mxu0
    %v2306 = vpop.f32.mrb[0].mxu0
    %v2307 = vadd.f32 0.0, %v2306
    %v2308 = vpop.f32.mrb[0].mxu0
    %2309 = vmatprep.mubr.bf16.mxu0 0
    %2310 = vmatmul.mubr.bf16.gmra.mrb[0].mxu0 %v1979
    %v2311 = vpop.f32.mrb[0].mxu0
    %v2312 = vadd.f32 0.0, %v2311
    %v2313 = vpop.f32.mrb[0].mxu0
    %v2314 = vpop.f32.mrb[0].mxu0
    %v2315 = vadd.f32 0.0, %v2314
    %v2316 = vpop.f32.mrb[0].mxu0
    %2317 = vdwg.mxu0
    %v2318 = vrot.slane %v2304, 1
    %v2319 = vrot.slane %v2307, 1
    %v2320 = vrot.slane %v2312, 1
    %v2321 = vrot.slane %v2315, 1
    %v2322 = vsel %vm690, %v2320, %v2321
    %v2323 = vsel %vm690, %v2319, %v2320
    %v2324 = vsel %vm690, %v2318, %v2319
    %v2325 = vsel %vm690, %v2321, %v2318
    %v2326 = vsel %vm699, %v2324, 0.0
    %v2327 = vsel %vm700, %v2323, 0.0
    %v2328 = vsel %vm701, %v2322, 0.0
    %v2329 = vsel %vm702, %v2325, 0.0
    %v2330 = vadd.f32 %v2232, %v2326
    %v2331 = vadd.f32 %v2233, %v2327
    %v2332 = vadd.f32 %v2234, %v2328
    %v2333 = vadd.f32 %v2235, %v2329
    %s2334 = scalar_lea.vmem [#allocation7], 608
    %v2335 = vld [vmem:[%s2334] sm:$0xf]
    %v2336 = vld [vmem:[%s2334 + $0x4] sm:$0xf]
    %v2337 = vld [vmem:[%s2334 + $0x8] sm:$0xf]
    %v2338 = vld [vmem:[%s2334 + $0xc] sm:$0xf]
    %v2339 = vld [vmem:[%s2334 + $0x10] sm:$0xf]
    %v2340 = vld [vmem:[%s2334 + $0x14] sm:$0xf]
    %v2341 = vld [vmem:[%s2334 + $0x18] sm:$0xf]
    %v2342 = vld [vmem:[%s2334 + $0x1c] sm:$0xf]
    %v2351 = vunpack.c.l.b16 %v2335
    %v2352 = vunpack.c.l.b16 %v2336
    %v2353 = vunpack.c.l.b16 %v2337
    %v2354 = vunpack.c.l.b16 %v2338
    %v2355 = vunpack.c.l.b16 %v2339
    %v2356 = vunpack.c.l.b16 %v2340
    %v2357 = vunpack.c.l.b16 %v2341
    %v2358 = vunpack.c.l.b16 %v2342
    %v2359 = vpack.c.b16 %v2352, %v2351
    %v2360 = vpack.c.b16 %v2354, %v2353
    %v2361 = vpack.c.b16 %v2356, %v2355
    %v2362 = vpack.c.b16 %v2358, %v2357
    %2367 = vmatprep.subr.bf16.mxu0 0
    %2368 = vmatpush1.bf16.msra.mxu0 %v2359
    %2369 = vmatprep.subr.bf16.mxu0 0
    %2370 = vmatpush1.bf16.msra.mxu0 %v2360
    %2371 = vmatprep.subr.bf16.mxu0 0
    %2372 = vmatpush1.bf16.msra.mxu0 %v2361
    %2373 = vmatprep.subr.bf16.mxu0 0
    %2374 = vmatpush1.bf16.msra.mxu0 %v2362
    %2375 = vmatprep.subr.bf16.mxu0 0
    %2376 = vmatpush1.bf16.msra.mxu0 0
    %2377 = vmatprep.subr.bf16.mxu0 0
    %2378 = vmatpush1.bf16.msra.mxu0 0
    %2379 = vmatprep.subr.bf16.mxu0 0
    %2380 = vmatpush1.bf16.msra.mxu0 0
    %2381 = vmatprep.subr.bf16.mxu0 0
    %2382 = vmatpush1.bf16.msra.mxu0 0
    %2383 = vmatprep.subr.bf16.mxu0 0
    %2384 = vmatpush1.bf16.msra.mxu0 0
    %2385 = vmatprep.subr.bf16.mxu0 0
    %2386 = vmatpush1.bf16.msra.mxu0 0
    %2387 = vmatprep.subr.bf16.mxu0 0
    %2388 = vmatpush1.bf16.msra.mxu0 0
    %2389 = vmatprep.subr.bf16.mxu0 0
    %2390 = vmatpush1.bf16.msra.mxu0 0
    %2391 = vmatprep.subr.bf16.mxu0 0
    %2392 = vmatpush1.bf16.msra.mxu0 0
    %2393 = vmatprep.subr.bf16.mxu0 0
    %2394 = vmatpush1.bf16.msra.mxu0 0
    %2395 = vmatprep.subr.bf16.mxu0 0
    %2396 = vmatpush1.bf16.msra.mxu0 0
    %2397 = vmatprep.subr.bf16.mxu0 0
    %2398 = vmatpush1.bf16.msra.mxu0 0
    %2399 = vmatprep.mubr.bf16.mxu0 0
    %2400 = vmatmul.mubr.bf16.gmra.mrb[0].mxu0 %v1976
    %v2401 = vpop.f32.mrb[0].mxu0
    %v2402 = vadd.f32 0.0, %v2401
    %v2403 = vpop.f32.mrb[0].mxu0
    %v2404 = vpop.f32.mrb[0].mxu0
    %v2405 = vadd.f32 0.0, %v2404
    %v2406 = vpop.f32.mrb[0].mxu0
    %2407 = vmatprep.mubr.bf16.mxu0 0
    %2408 = vmatmul.mubr.bf16.gmra.mrb[0].mxu0 %v1979
    %v2409 = vpop.f32.mrb[0].mxu0
    %v2410 = vadd.f32 0.0, %v2409
    %v2411 = vpop.f32.mrb[0].mxu0
    %v2412 = vpop.f32.mrb[0].mxu0
    %v2413 = vadd.f32 0.0, %v2412
    %v2414 = vpop.f32.mrb[0].mxu0
    %2415 = vdwg.mxu0
    %v2416 = vrot.slane %v2402, 2
    %v2417 = vrot.slane %v2405, 2
    %v2418 = vrot.slane %v2410, 2
    %v2419 = vrot.slane %v2413, 2
    %v2420 = vsel %vm797, %v2418, %v2419
    %v2421 = vsel %vm797, %v2417, %v2418
    %v2422 = vsel %vm797, %v2416, %v2417
    %v2423 = vsel %vm797, %v2419, %v2416
    %v2424 = vsel %vm806, %v2422, 0.0
    %v2425 = vsel %vm807, %v2421, 0.0
    %v2426 = vsel %vm808, %v2420, 0.0
    %v2427 = vsel %vm809, %v2423, 0.0
    %v2428 = vadd.f32 %v2330, %v2424
    %v2429 = vadd.f32 %v2331, %v2425
    %v2430 = vadd.f32 %v2332, %v2426
    %v2431 = vadd.f32 %v2333, %v2427
    %v2432 = vxor.u32 %v2428, 2147483648
    %v2433 = vxor.u32 %v2429, 2147483648
    %v2434 = vxor.u32 %v2430, 2147483648
    %v2435 = vxor.u32 %v2431, 2147483648
    %v2436 = vmul.f32 %v2432, 1.442695
    %v2437 = vpow.pop %v2436
    %v2438 = vmul.f32 %v2433, 1.442695
    %v2439 = vpow.pop %v2438
    %v2440 = vmul.f32 %v2434, 1.442695
    %v2441 = vpow.pop %v2440
    %v2442 = vmul.f32 %v2435, 1.442695
    %v2443 = vpow.pop %v2442
    %v2444 = vadd.f32 %v2437, 1.0
    %v2445 = vadd.f32 %v2439, 1.0
    %v2446 = vadd.f32 %v2441, 1.0
    %v2447 = vadd.f32 %v2443, 1.0
    %v2448 = vrcp.pop %v2444
    %v2449 = vmul.f32 1.0, %v2448
    %v2450 = vrcp.pop %v2445
    %v2451 = vmul.f32 1.0, %v2450
    %v2452 = vrcp.pop %v2446
    %v2453 = vmul.f32 1.0, %v2452
    %v2454 = vrcp.pop %v2447
    %v2455 = vmul.f32 1.0, %v2454
    %2456 = vrot.lane.b32.xlu0 %v2449, 64
    %v2457 = vpop.permute.xlu0 %2456
    %2458 = vrot.lane.b32.xlu0 %v2451, 64
    %v2459 = vpop.permute.xlu0 %2458
    %2460 = vrot.lane.b32.xlu0 %v2453, 64
    %v2461 = vpop.permute.xlu0 %2460
    %2462 = vrot.lane.b32.xlu0 %v2455, 64
    %v2463 = vpop.permute.xlu0 %2462
    %v2464 = vmul.f32 %v2428, %v2457
    %v2465 = vmul.f32 %v2429, %v2459
    %v2466 = vmul.f32 %v2430, %v2461
    %v2467 = vmul.f32 %v2431, %v2463
    %v2468 = vadd.f32 %v2464, %v1934
    %v2469 = vadd.f32 %v2465, %v1935
    %v2470 = vadd.f32 %v2466, %v1936
    %v2471 = vadd.f32 %v2467, %v1937
    %v2472 = vmul.f32 %v2468, 0.70710677
    %v2473 = vmul.f32 %v2469, 0.70710677
    %v2474 = vmul.f32 %v2470, 0.70710677
    %v2475 = vmul.f32 %v2471, 0.70710677
    %v2476 = vpack.c.bf16 %v2473, %v2472
    %v2477 = vpack.c.bf16 %v2475, %v2474
    %v2478 = vld [vmem:[#allocation8] sm:$0xf]
    %v2479 = vld [vmem:[#allocation8 + $0x4] sm:$0xf]
    %v2480 = vld [vmem:[#allocation8 + $0x8] sm:$0xf]
    %v2481 = vld [vmem:[#allocation8 + $0xc] sm:$0xf]
    %v2482 = vld [vmem:[#allocation8 + $0x10] sm:$0xf]
    %v2483 = vld [vmem:[#allocation8 + $0x14] sm:$0xf]
    %v2484 = vld [vmem:[#allocation8 + $0x18] sm:$0xf]
    %v2485 = vld [vmem:[#allocation8 + $0x1c] sm:$0xf]
    %v2486 = vld [vmem:[%s6] sm:$0x1]
    %v2488 = vlaneseq
    %v2489 = vshrl.u32 %v2488, 7
    %v2490 = vsub.s32 0, %v2489
    %v2491 = vrot.slane %v2486, %v2490
    %v2501 = vunpack.c.l.b16 %v2478
    %v2502 = vunpack.c.l.b16 %v2479
    %v2503 = vunpack.c.l.b16 %v2480
    %v2504 = vunpack.c.l.b16 %v2481
    %v2505 = vunpack.c.l.b16 %v2482
    %v2506 = vunpack.c.l.b16 %v2483
    %v2507 = vunpack.c.l.b16 %v2484
    %v2508 = vunpack.c.l.b16 %v2485
    %v2509 = vpack.c.b16 %v2502, %v2501
    %v2510 = vpack.c.b16 %v2504, %v2503
    %v2511 = vpack.c.b16 %v2506, %v2505
    %v2512 = vpack.c.b16 %v2508, %v2507
    %v2518 = vsel %vm324, %v2476, 0
    %v2521 = vsel %vm324, %v2477, 0
    %2523 = vmatprep.subr.bf16.mxu0 0
    %2524 = vmatpush1.bf16.msra.mxu0 %v2509
    %2525 = vmatprep.subr.bf16.mxu0 0
    %2526 = vmatpush1.bf16.msra.mxu0 %v2510
    %2527 = vmatprep.subr.bf16.mxu0 0
    %2528 = vmatpush1.bf16.msra.mxu0 %v2511
    %2529 = vmatprep.subr.bf16.mxu0 0
    %2530 = vmatpush1.bf16.msra.mxu0 %v2512
    %2531 = vmatprep.subr.bf16.mxu0 0
    %2532 = vmatpush1.bf16.msra.mxu0 0
    %2533 = vmatprep.subr.bf16.mxu0 0
    %2534 = vmatpush1.bf16.msra.mxu0 0
    %2535 = vmatprep.subr.bf16.mxu0 0
    %2536 = vmatpush1.bf16.msra.mxu0 0
    %2537 = vmatprep.subr.bf16.mxu0 0
    %2538 = vmatpush1.bf16.msra.mxu0 0
    %2539 = vmatprep.subr.bf16.mxu0 0
    %2540 = vmatpush1.bf16.msra.mxu0 0
    %2541 = vmatprep.subr.bf16.mxu0 0
    %2542 = vmatpush1.bf16.msra.mxu0 0
    %2543 = vmatprep.subr.bf16.mxu0 0
    %2544 = vmatpush1.bf16.msra.mxu0 0
    %2545 = vmatprep.subr.bf16.mxu0 0
    %2546 = vmatpush1.bf16.msra.mxu0 0
    %2547 = vmatprep.subr.bf16.mxu0 0
    %2548 = vmatpush1.bf16.msra.mxu0 0
    %2549 = vmatprep.subr.bf16.mxu0 0
    %2550 = vmatpush1.bf16.msra.mxu0 0
    %2551 = vmatprep.subr.bf16.mxu0 0
    %2552 = vmatpush1.bf16.msra.mxu0 0
    %2553 = vmatprep.subr.bf16.mxu0 0
    %2554 = vmatpush1.bf16.msra.mxu0 0
    %2555 = vmatprep.mubr.bf16.mxu0 0
    %2556 = vmatmul.mubr.bf16.gmra.mrb[0].mxu0 %v2518
    %v2557 = vpop.f32.mrb[0].mxu0
    %v2558 = vadd.f32 %v2491, %v2557
    %v2559 = vpop.f32.mrb[0].mxu0
    %v2560 = vpop.f32.mrb[0].mxu0
    %v2561 = vadd.f32 %v2491, %v2560
    %v2562 = vpop.f32.mrb[0].mxu0
    %2563 = vmatprep.mubr.bf16.mxu0 0
    %2564 = vmatmul.mubr.bf16.gmra.mrb[0].mxu0 %v2521
    %v2565 = vpop.f32.mrb[0].mxu0
    %v2566 = vadd.f32 %v2491, %v2565
    %v2567 = vpop.f32.mrb[0].mxu0
    %v2568 = vpop.f32.mrb[0].mxu0
    %v2569 = vadd.f32 %v2491, %v2568
    %v2570 = vpop.f32.mrb[0].mxu0
    %2571 = vdwg.mxu0
    %v2572 = vxor.u32 %v2558, 2147483648
    %v2573 = vxor.u32 %v2561, 2147483648
    %v2574 = vxor.u32 %v2566, 2147483648
    %v2575 = vxor.u32 %v2569, 2147483648
    %v2576 = vmul.f32 %v2572, 1.442695
    %v2577 = vpow.pop %v2576
    %v2578 = vmul.f32 %v2573, 1.442695
    %v2579 = vpow.pop %v2578
    %v2580 = vmul.f32 %v2574, 1.442695
    %v2581 = vpow.pop %v2580
    %v2582 = vmul.f32 %v2575, 1.442695
    %v2583 = vpow.pop %v2582
    %v2584 = vadd.f32 %v2577, 1.0
    %v2585 = vadd.f32 %v2579, 1.0
    %v2586 = vadd.f32 %v2581, 1.0
    %v2587 = vadd.f32 %v2583, 1.0
    %v2588 = vrcp.pop %v2584
    %v2589 = vmul.f32 1.0, %v2588
    %v2590 = vrcp.pop %v2585
    %v2591 = vmul.f32 1.0, %v2590
    %v2592 = vrcp.pop %v2586
    %v2593 = vmul.f32 1.0, %v2592
    %v2594 = vrcp.pop %v2587
    %v2595 = vmul.f32 1.0, %v2594
    %2596 = vst [vmem:[#allocation10] sm:$0xff] %v2589
    %2597 = vst [vmem:[#allocation10 + $0x8] sm:$0xff] %v2591
    %2598 = vst [vmem:[#allocation10 + $0x10] sm:$0xff] %v2593
    %2599 = vst [vmem:[#allocation10 + $0x18] sm:$0xff] %v2595
    // Predicated region
    $region46: #{tpu_custom_call.1} parent=1 // pred_check
      _
    $region47: #{tpu_custom_call.1} parent=1 // pred_check_branch
      %2601 = sbr.rel (0) target = $region49
    $region48: #{tpu_custom_call.1} parent=1 // pred_region
      %s2603 = ssub.s32 512, 512
      %2604 = vsyncadd [#allocation4], %s2603
      %s2605 = sshll.u32 [#allocation10], 4
      %s2606 = int_to_ptr.vmem [resolvable:$true] %s2605
      %2611 = dma.vmem_to_hbm [thread:$0]  %s2606, 512, %s7, [#allocation4], 128, 128, 8
    $region49: #{tpu_custom_call.1} parent=1 // pred_fallthru
      _
    // Predicated region
    $region50: #{tpu_custom_call.1} parent=1 // pred_check
      _
    $region51: #{tpu_custom_call.1} parent=1 // pred_check_branch
      %2613 = sbr.rel (0) target = $region53
    $region52: #{tpu_custom_call.1} parent=1 // pred_region
      %2614 = dma.done [#allocation4], 512
    $region53: #{tpu_custom_call.1} parent=1 // pred_fallthru
      _
    %2615 = vsyncpa [#allocation3], 1
    %2616 = vsyncpa [#allocation6], 1
    %2617 = vsyncpa [#allocation9], 1
    %2618 = vsyncpa [#allocation4], 1

</llo_original>
